<compile_context>
chip_gen: v7x
topology: tpu7x:2x2x1
jax: 0.10.0
libtpu: 0.0.40
codegen_flags: <defaults>
</compile_context>

<pallas_src>
import functools

import jax
import jax.numpy as jnp
from jax import lax
from jax.experimental import pallas as pl
from jax.experimental.pallas import tpu as pltpu

EPS = 1e-5
_VMEM_LIMIT = 32 * 1024 * 1024          # <= scoped VMEM on v5e/v6e/v7x


def _pick_tile_h(H, requested):
    """Largest divisor of H that is <= requested and TPU tileable (x8 or == H)."""
    for th in range(min(requested, H), 0, -1):
        if H % th == 0 and (th % 8 == 0 or th == H):
            return th
    return H


def _w_oihw_to_mat(w_oihw, dtype):
    """(O, I, 3, 3) -> (9*I, O) im2col weight matrix (tap-major, cin-minor rows)."""
    o, i, kh, kw = w_oihw.shape
    return jnp.transpose(w_oihw, (2, 3, 1, 0)).reshape(kh * kw * i, o).astype(dtype)


def _im2col_3x3(xp, th, w, c):
    """(th+2, w+2, c) padded tile -> (th*w, 9*c) patch matrix for one MXU matmul."""
    taps = []
    for dh in range(3):
        for dw in range(3):
            taps.append(xp[dh:dh + th, dw:dw + w, :])
    slab = jnp.concatenate(taps, axis=-1)          # (th, w, 9c)
    return slab.reshape(th * w, 9 * c)


def _conv3x3_tile(top, body, bot, w_mat, bias, th, W, C, conv_dtype):
    """3x3 'same' conv of one H-band.

    top/bot are the 1-row halos (already zeroed at image boundaries), body is
    (th, W, C).  Zero width-padding columns are constructed here, so no
    pre-padded HBM tensor and no interior mask are needed.
    """
    rows = jnp.concatenate([top, body, bot], axis=0).astype(conv_dtype)  # (th+2, W, C)
    zc = jnp.zeros((th + 2, 1, C), conv_dtype)
    xp = jnp.concatenate([zc, rows, zc], axis=1)                          # (th+2, W+2, C)
    slab = _im2col_3x3(xp, th, W, C)                                      # (th*W, 9C)
    return jnp.dot(slab, w_mat, preferred_element_type=jnp.float32) + bias


def _bn_affine(tile_stats, gamma, beta, count):
    """Fold global train-mode BN stats (per-tile sum/sumsq) into y*scale + shift."""
    s = jnp.sum(tile_stats, axis=(0, 1))           # (2, C)
    mean = s[0] / count
    var = jnp.maximum(s[1] / count - mean * mean, 0.0)   # biased, one-pass
    rstd = lax.rsqrt(var + EPS)
    scale = gamma.astype(jnp.float32) * rstd
    shift = beta.astype(jnp.float32) - mean * scale
    c = scale.shape[0]
    return scale.reshape(1, c), shift.reshape(1, c)


@functools.partial(jax.jit, static_argnames=("tile_h", "conv_dtype"))
def residual_block_forward(x_nchw, params, tile_h=32, conv_dtype=jnp.bfloat16):
    w1, b1, g1, be1, alpha, w2, b2, g2, be2 = params
    N, C, H, W = x_nchw.shape
    th = _pick_tile_h(H, tile_h)
    num_h = H // th
    count = N * H * W

    # NCHW -> NHWC (C = lane axis).  No zero-padding pass: padding is built
    # inside the kernels.
    x_nhwc = jnp.transpose(x_nchw, (0, 2, 3, 1)).astype(jnp.float32)

    w1m = _w_oihw_to_mat(w1, conv_dtype)              # (9C, C)
    w2m = _w_oihw_to_mat(w2, conv_dtype)
    b1r = b1.reshape(1, C).astype(jnp.float32)
    b2r = b2.reshape(1, C).astype(jnp.float32)
    alpha1 = jnp.reshape(alpha, (1,)).astype(jnp.float32)

    cparams = pltpu.CompilerParams(
        dimension_semantics=("parallel", "parallel"),  # megacore-shardable (v7x)
        vmem_limit_bytes=_VMEM_LIMIT)

    # Auto-pipelined (double-buffered) BlockSpecs.  The 1-row halos are clamped
    # at the image top/bottom; the kernel zeroes them there.
    top_spec = pl.BlockSpec(
        (1, 1, W, C), lambda n, i: (n, jnp.maximum(i * th - 1, 0), 0, 0))
    body_spec = pl.BlockSpec((1, th, W, C), lambda n, i: (n, i, 0, 0))
    bot_spec = pl.BlockSpec(
        (1, 1, W, C), lambda n, i: (n, jnp.minimum((i + 1) * th, H - 1), 0, 0))
    stats_spec = pl.BlockSpec((1, 1, 2, C), lambda n, i: (n, i, 0, 0))
    wmat_spec = pl.BlockSpec((9 * C, C), lambda n, i: (0, 0))
    crow_spec = pl.BlockSpec((1, C), lambda n, i: (0, 0))

    # ---------------- stage 1: conv1 (+bias) + per-tile BN1 partial stats ----
    def conv1_kernel(xt_ref, xb_ref, xbo_ref, w_ref, b_ref, y_ref, st_ref):
        i = pl.program_id(1)
        top = jnp.where(i == 0, 0.0, xt_ref[0])              # zero at image top
        bot = jnp.where(i == num_h - 1, 0.0, xbo_ref[0])     # zero at image bottom
        acc = _conv3x3_tile(top, xb_ref[0], bot, w_ref[...], b_ref[...],
                            th, W, C, conv_dtype)
        y_ref[...] = acc.reshape(1, th, W, C)
        s = jnp.sum(acc, axis=0, keepdims=True)
        sq = jnp.sum(acc * acc, axis=0, keepdims=True)
        st_ref[...] = jnp.concatenate([s, sq], axis=0).reshape(1, 1, 2, C)

    y1_raw, st1 = pl.pallas_call(
        conv1_kernel,
        out_shape=(jax.ShapeDtypeStruct((N, H, W, C), jnp.float32),
                   jax.ShapeDtypeStruct((N, num_h, 2, C), jnp.float32)),
        grid_spec=pltpu.PrefetchScalarGridSpec(
            num_scalar_prefetch=0,
            grid=(N, num_h),
            in_specs=[top_spec, body_spec, bot_spec, wmat_spec, crow_spec],
            out_specs=[body_spec, stats_spec],
        ),
        compiler_params=cparams,
    )(x_nhwc, x_nhwc, x_nhwc, w1m, b1r)

    scale1, shift1 = _bn_affine(st1, g1, be1, count)

    # ------- stage 2: BN1 + PReLU + conv2 (+bias) + per-tile BN2 stats -------
    def conv2_kernel(yt_ref, yb_ref, ybo_ref, w_ref, b_ref, sc_ref, sh_ref,
                     a_ref, y_ref, st_ref):
        i = pl.program_id(1)
        a = a_ref[0]                                  # PReLU alpha (SMEM scalar)
        sc = sc_ref[...]
        sh = sh_ref[...]

        def act(t):                                   # BN1 folded affine + PReLU
            t = t * sc + sh
            return jnp.where(t > 0, t, a * t)

        # Activate the real rows, THEN zero the out-of-image halo rows so
        # conv2's 'same' padding stays exactly zero (BN shift/PReLU never
        # touches padding).
        top = jnp.where(i == 0, 0.0, act(yt_ref[0]))
        bot = jnp.where(i == num_h - 1, 0.0, act(ybo_ref[0]))
        acc = _conv3x3_tile(top, act(yb_ref[0]), bot, w_ref[...], b_ref[...],
                            th, W, C, conv_dtype)
        y_ref[...] = acc.reshape(1, th, W, C)
        s = jnp.sum(acc, axis=0, keepdims=True)
        sq = jnp.sum(acc * acc, axis=0, keepdims=True)
        st_ref[...] = jnp.concatenate([s, sq], axis=0).reshape(1, 1, 2, C)

    y2_raw, st2 = pl.pallas_call(
        conv2_kernel,
        out_shape=(jax.ShapeDtypeStruct((N, H, W, C), jnp.float32),
                   jax.ShapeDtypeStruct((N, num_h, 2, C), jnp.float32)),
        grid_spec=pltpu.PrefetchScalarGridSpec(
            num_scalar_prefetch=0,
            grid=(N, num_h),
            in_specs=[top_spec, body_spec, bot_spec, wmat_spec, crow_spec,
                      crow_spec, crow_spec,
                      pl.BlockSpec(memory_space=pltpu.MemorySpace.SMEM)],
            out_specs=[body_spec, stats_spec],
        ),
        compiler_params=cparams,
    )(y1_raw, y1_raw, y1_raw, w2m, b2r, scale1, shift1, alpha1)

    scale2, shift2 = _bn_affine(st2, g2, be2, count)

    # ------------- stage 3: BN2 + residual add (lane-dense W*C layout) -------
    WC = W * C
    y2_flat = y2_raw.reshape(N, H, WC)    # trailing-dim merge: free bitcast
    x_flat = x_nhwc.reshape(N, H, WC)
    sc2_t = jnp.tile(scale2, (1, W))      # (1, W*C), matches w-major/c-minor
    sh2_t = jnp.tile(shift2, (1, W))

    def bn2_residual_kernel(y_ref, x_ref, sc_ref, sh_ref, o_ref):
        o_ref[...] = x_ref[...] + (y_ref[...] * sc_ref[...] + sh_ref[...])

    out_flat = pl.pallas_call(
        bn2_residual_kernel,
        out_shape=jax.ShapeDtypeStruct((N, H, WC), jnp.float32),
        grid_spec=pltpu.PrefetchScalarGridSpec(
            num_scalar_prefetch=0,
            grid=(N, num_h),
            in_specs=[
                pl.BlockSpec((1, th, WC), lambda n, i: (n, i, 0)),
                pl.BlockSpec((1, th, WC), lambda n, i: (n, i, 0)),
                pl.BlockSpec((1, WC), lambda n, i: (0, 0)),
                pl.BlockSpec((1, WC), lambda n, i: (0, 0)),
            ],
            out_specs=pl.BlockSpec((1, th, WC), lambda n, i: (n, i, 0)),
        ),
        compiler_params=cparams,
        input_output_aliases={0: 0},      # write residual result over y2 in place
    )(y2_flat, x_flat, sc2_t, sh2_t)

    out_nhwc = out_flat.reshape(N, H, W, C)
    return jnp.transpose(out_nhwc, (0, 3, 1, 2))      # back to PyTorch NCHW


def _reference_forward(x_nchw, params):
    """Pure-JAX reference mirroring the PyTorch module (train-mode BN)."""
    w1, b1, g1, be1, alpha, w2, b2, g2, be2 = params

    def conv(x, w, b):
        y = lax.conv_general_dilated(
            x, w, window_strides=(1, 1), padding="SAME",
            dimension_numbers=("NCHW", "OIHW", "NCHW"))
        return y + b.reshape(1, -1, 1, 1)

    def bn(y, g, be):
        mean = jnp.mean(y, axis=(0, 2, 3), keepdims=True)
        var = jnp.mean((y - mean) ** 2, axis=(0, 2, 3), keepdims=True)
        return (y - mean) * lax.rsqrt(var + EPS) * g.reshape(1, -1, 1, 1) \
            + be.reshape(1, -1, 1, 1)

    y = conv(x_nchw, w1, b1)
    y = bn(y, g1, be1)
    y = jnp.where(y > 0, y, alpha * y)
    y = conv(y, w2, b2)
    y = bn(y, g2, be2)
    return x_nchw + y


def init_params(key, channels):
    k1, k2, k3, k4, kx = jax.random.split(key, 5)
    fan_in = channels * 9
    bound = 1.0 / jnp.sqrt(fan_in)
    w1 = jax.random.uniform(k1, (channels, channels, 3, 3), jnp.float32,
                            -bound, bound)
    b1 = jax.random.uniform(k2, (channels,), jnp.float32, -bound, bound)
    w2 = jax.random.uniform(k3, (channels, channels, 3, 3), jnp.float32,
                            -bound, bound)
    b2 = jax.random.uniform(k4, (channels,), jnp.float32, -bound, bound)
    g1 = jnp.ones((channels,), jnp.float32)       # BatchNorm default init
    be1 = jnp.zeros((channels,), jnp.float32)
    g2 = jnp.ones((channels,), jnp.float32)
    be2 = jnp.zeros((channels,), jnp.float32)
    alpha = jnp.array(0.25, jnp.float32)          # PReLU default init
    return (w1, b1, g1, be1, alpha, w2, b2, g2, be2), kx


if __name__ == "__main__":
    N, C, H, W = 2, 4, 16, 16
    key = jax.random.PRNGKey(0)
    params, key = init_params(key, C)
    x = jax.random.normal(key, (N, C, H, W), jnp.float32)

    ref = _reference_forward(x, params)

    # f32 MXU path; tile_h=8 -> two H-bands per image (exercises the halo rows).
    out_f32 = jax.block_until_ready(
        residual_block_forward(x, params, tile_h=8, conv_dtype=jnp.float32))
    assert out_f32.shape == (N, C, H, W)
    err32 = jnp.max(jnp.abs(out_f32 - ref))
    assert jnp.allclose(out_f32, ref, rtol=1e-4, atol=2e-4), \
        f"f32 max abs err {err32}"

    # bf16 MXU fast path (v6e/v7x), default (larger) tile -> single band here.
    out_bf16 = jax.block_until_ready(
        residual_block_forward(x, params, conv_dtype=jnp.bfloat16))
    assert out_bf16.shape == (N, C, H, W)
    errbf = jnp.max(jnp.abs(out_bf16 - ref))
    assert jnp.allclose(out_bf16, ref, rtol=0.0, atol=5e-2), \
        f"bf16 max abs err {errbf}"

    print("KERNEL_OK")
</pallas_src>

<mosaic_0001>
module attributes {stable_mosaic.version = 11 : i64} {
  func.func @conv1_kernel(%arg0: i32, %arg1: i32, %arg2: memref<1x1x16x4xf32, #tpu.memory_space<vmem>>, %arg3: memref<1x8x16x4xf32, #tpu.memory_space<vmem>>, %arg4: memref<1x1x16x4xf32, #tpu.memory_space<vmem>>, %arg5: memref<36x4xf32, #tpu.memory_space<vmem>>, %arg6: memref<1x4xf32, #tpu.memory_space<vmem>>, %arg7: memref<1x8x16x4xf32, #tpu.memory_space<vmem>>, %arg8: memref<1x1x2x4xf32, #tpu.memory_space<vmem>>) attributes {dimension_semantics = [#tpu.dimension_semantics<parallel>, #tpu.dimension_semantics<parallel>], iteration_bounds = array<i64: 2, 2>, scalar_prefetch = 0 : i64, scratch_operands = 0 : i64, tpu.core_type = #tpu.core_type<tc>, window_params = [{transform_indices = @transform_0, window_bounds = array<i64: 1, 1, 16, 4>}, {transform_indices = @transform_1, window_bounds = array<i64: 1, 8, 16, 4>}, {transform_indices = @transform_2, window_bounds = array<i64: 1, 1, 16, 4>}, {pipeline_mode = #tpu.pipeline_mode<synchronous>, transform_indices = @transform_3, window_bounds = array<i64: 36, 4>}, {pipeline_mode = #tpu.pipeline_mode<synchronous>, transform_indices = @transform_4, window_bounds = array<i64: 1, 4>}, {transform_indices = @transform_5, window_bounds = array<i64: 1, 8, 16, 4>}, {transform_indices = @transform_6, window_bounds = array<i64: 1, 1, 2, 4>}]} {
    %c0_i32 = arith.constant 0 : i32
    %0 = arith.cmpi eq, %arg1, %c0_i32 : i32
    %c0 = arith.constant 0 : index
    %c0_0 = arith.constant 0 : index
    %c0_1 = arith.constant 0 : index
    %c0_2 = arith.constant 0 : index
    %1 = vector.load %arg2[%c0, %c0_0, %c0_1, %c0_2] : memref<1x1x16x4xf32, #tpu.memory_space<vmem>>, vector<1x1x16x4xf32>
    %2 = vector.shape_cast %1 : vector<1x1x16x4xf32> to vector<1x16x4xf32>
    %cst = arith.constant 0.000000e+00 : f32
    %3 = vector.broadcast %cst : f32 to vector<1x16x4xf32>
    %4 = arith.select %0, %3, %2 : vector<1x16x4xf32>
    %c1_i32 = arith.constant 1 : i32
    %5 = arith.cmpi eq, %arg1, %c1_i32 : i32
    %c0_3 = arith.constant 0 : index
    %c0_4 = arith.constant 0 : index
    %c0_5 = arith.constant 0 : index
    %c0_6 = arith.constant 0 : index
    %6 = vector.load %arg4[%c0_3, %c0_4, %c0_5, %c0_6] : memref<1x1x16x4xf32, #tpu.memory_space<vmem>>, vector<1x1x16x4xf32>
    %7 = vector.shape_cast %6 : vector<1x1x16x4xf32> to vector<1x16x4xf32>
    %cst_7 = arith.constant 0.000000e+00 : f32
    %8 = vector.broadcast %cst_7 : f32 to vector<1x16x4xf32>
    %9 = arith.select %5, %8, %7 : vector<1x16x4xf32>
    %c0_8 = arith.constant 0 : index
    %c0_9 = arith.constant 0 : index
    %c0_10 = arith.constant 0 : index
    %c0_11 = arith.constant 0 : index
    %10 = vector.load %arg3[%c0_8, %c0_9, %c0_10, %c0_11] : memref<1x8x16x4xf32, #tpu.memory_space<vmem>>, vector<1x8x16x4xf32>
    %11 = vector.shape_cast %10 : vector<1x8x16x4xf32> to vector<8x16x4xf32>
    %c0_12 = arith.constant 0 : index
    %c0_13 = arith.constant 0 : index
    %12 = vector.load %arg5[%c0_12, %c0_13] : memref<36x4xf32, #tpu.memory_space<vmem>>, vector<36x4xf32>
    %c0_14 = arith.constant 0 : index
    %c0_15 = arith.constant 0 : index
    %13 = vector.load %arg6[%c0_14, %c0_15] : memref<1x4xf32, #tpu.memory_space<vmem>>, vector<1x4xf32>
    %14 = tpu.concatenate %4, %11, %9 in 0 : vector<1x16x4xf32>, vector<8x16x4xf32>, vector<1x16x4xf32> -> vector<10x16x4xf32>
    %cst_16 = arith.constant 0.000000e+00 : f32
    %15 = vector.broadcast %cst_16 : f32 to vector<10x1x4xf32>
    %16 = tpu.concatenate %15, %14, %15 in 1 : vector<10x1x4xf32>, vector<10x16x4xf32>, vector<10x1x4xf32> -> vector<10x18x4xf32>
    %17 = vector.extract_strided_slice %16 {offsets = [0, 0, 0], sizes = [8, 16, 4], strides = [1, 1, 1]} : vector<10x18x4xf32> to vector<8x16x4xf32>
    %18 = vector.extract_strided_slice %16 {offsets = [0, 1, 0], sizes = [8, 16, 4], strides = [1, 1, 1]} : vector<10x18x4xf32> to vector<8x16x4xf32>
    %19 = vector.extract_strided_slice %16 {offsets = [0, 2, 0], sizes = [8, 16, 4], strides = [1, 1, 1]} : vector<10x18x4xf32> to vector<8x16x4xf32>
    %20 = vector.extract_strided_slice %16 {offsets = [1, 0, 0], sizes = [8, 16, 4], strides = [1, 1, 1]} : vector<10x18x4xf32> to vector<8x16x4xf32>
    %21 = vector.extract_strided_slice %16 {offsets = [1, 1, 0], sizes = [8, 16, 4], strides = [1, 1, 1]} : vector<10x18x4xf32> to vector<8x16x4xf32>
    %22 = vector.extract_strided_slice %16 {offsets = [1, 2, 0], sizes = [8, 16, 4], strides = [1, 1, 1]} : vector<10x18x4xf32> to vector<8x16x4xf32>
    %23 = vector.extract_strided_slice %16 {offsets = [2, 0, 0], sizes = [8, 16, 4], strides = [1, 1, 1]} : vector<10x18x4xf32> to vector<8x16x4xf32>
    %24 = vector.extract_strided_slice %16 {offsets = [2, 1, 0], sizes = [8, 16, 4], strides = [1, 1, 1]} : vector<10x18x4xf32> to vector<8x16x4xf32>
    %25 = vector.extract_strided_slice %16 {offsets = [2, 2, 0], sizes = [8, 16, 4], strides = [1, 1, 1]} : vector<10x18x4xf32> to vector<8x16x4xf32>
    %26 = tpu.concatenate %17, %18, %19, %20, %21, %22, %23, %24, %25 in 2 : vector<8x16x4xf32>, vector<8x16x4xf32>, vector<8x16x4xf32>, vector<8x16x4xf32>, vector<8x16x4xf32>, vector<8x16x4xf32>, vector<8x16x4xf32>, vector<8x16x4xf32>, vector<8x16x4xf32> -> vector<8x16x36xf32>
    %27 = vector.shape_cast %26 : vector<8x16x36xf32> to vector<128x36xf32>
    %cst_17 = arith.constant dense<0.000000e+00> : vector<128x4xf32>
    %28 = tpu.matmul %27, %12, %cst_17 {dimension_numbers = #tpu.dot_dimension_numbers<[1], [0], [0], [1], [0, 0, 1, 1], [], []>} : vector<128x36xf32>, vector<36x4xf32>, vector<128x4xf32> -> vector<128x4xf32>
    %29 = vector.broadcast %13 : vector<1x4xf32> to vector<128x4xf32>
    %30 = arith.addf %28, %29 : vector<128x4xf32>
    %31 = vector.shape_cast %30 : vector<128x4xf32> to vector<1x8x16x4xf32>
    %c0_18 = arith.constant 0 : index
    %c0_19 = arith.constant 0 : index
    %c0_20 = arith.constant 0 : index
    %c0_21 = arith.constant 0 : index
    %32 = vector.load %arg7[%c0_18, %c0_19, %c0_20, %c0_21] : memref<1x8x16x4xf32, #tpu.memory_space<vmem>>, vector<1x8x16x4xf32>
    tpu.vector_store %arg7[%c0_18, %c0_19, %c0_20, %c0_21], %31 {strides = array<i32>} : memref<1x8x16x4xf32, #tpu.memory_space<vmem>>, vector<1x8x16x4xf32>,
    %cst_22 = arith.constant dense<0.000000e+00> : vector<4xf32>
    %33 = vector.multi_reduction <add>, %30, %cst_22 [0] : vector<128x4xf32> to vector<4xf32>
    %34 = vector.shape_cast %33 : vector<4xf32> to vector<1x4xf32>
    %35 = arith.mulf %30, %30 : vector<128x4xf32>
    %cst_23 = arith.constant dense<0.000000e+00> : vector<4xf32>
    %36 = vector.multi_reduction <add>, %35, %cst_23 [0] : vector<128x4xf32> to vector<4xf32>
    %37 = vector.shape_cast %36 : vector<4xf32> to vector<1x4xf32>
    %38 = tpu.concatenate %34, %37 in 0 : vector<1x4xf32>, vector<1x4xf32> -> vector<2x4xf32>
    %39 = vector.shape_cast %38 : vector<2x4xf32> to vector<1x1x2x4xf32>
    %c0_24 = arith.constant 0 : index
    %c0_25 = arith.constant 0 : index
    %c0_26 = arith.constant 0 : index
    %c0_27 = arith.constant 0 : index
    %40 = vector.load %arg8[%c0_24, %c0_25, %c0_26, %c0_27] : memref<1x1x2x4xf32, #tpu.memory_space<vmem>>, vector<1x1x2x4xf32>
    tpu.vector_store %arg8[%c0_24, %c0_25, %c0_26, %c0_27], %39 {strides = array<i32>} : memref<1x1x2x4xf32, #tpu.memory_space<vmem>>, vector<1x1x2x4xf32>,
    return
  }
  func.func @transform_0(%arg0: i32, %arg1: i32) -> (i32, i32, i32, i32) {
    %c8_i32 = arith.constant 8 : i32
    %0 = arith.muli %arg1, %c8_i32 : i32
    %c1_i32 = arith.constant 1 : i32
    %1 = arith.subi %0, %c1_i32 : i32
    %c0_i32 = arith.constant 0 : i32
    %2 = arith.maxsi %1, %c0_i32 : i32
    %c0_i32_0 = arith.constant 0 : i32
    %c0_i32_1 = arith.constant 0 : i32
    %c0_i32_2 = arith.constant 0 : i32
    return %arg0, %2, %c0_i32_0, %c0_i32_1 : i32, i32, i32, i32
  }
  func.func @transform_1(%arg0: i32, %arg1: i32) -> (i32, i32, i32, i32) {
    %c0_i32 = arith.constant 0 : i32
    %c0_i32_0 = arith.constant 0 : i32
    %c0_i32_1 = arith.constant 0 : i32
    return %arg0, %arg1, %c0_i32, %c0_i32_0 : i32, i32, i32, i32
  }
  func.func @transform_2(%arg0: i32, %arg1: i32) -> (i32, i32, i32, i32) {
    %c1_i32 = arith.constant 1 : i32
    %0 = arith.addi %arg1, %c1_i32 : i32
    %c8_i32 = arith.constant 8 : i32
    %1 = arith.muli %0, %c8_i32 : i32
    %c15_i32 = arith.constant 15 : i32
    %2 = arith.minsi %1, %c15_i32 : i32
    %c0_i32 = arith.constant 0 : i32
    %c0_i32_0 = arith.constant 0 : i32
    %c0_i32_1 = arith.constant 0 : i32
    return %arg0, %2, %c0_i32, %c0_i32_0 : i32, i32, i32, i32
  }
  func.func @transform_3(%arg0: i32, %arg1: i32) -> (i32, i32) {
    %c0_i32 = arith.constant 0 : i32
    %c0_i32_0 = arith.constant 0 : i32
    %c0_i32_1 = arith.constant 0 : i32
    return %c0_i32, %c0_i32_0 : i32, i32
  }
  func.func @transform_4(%arg0: i32, %arg1: i32) -> (i32, i32) {
    %c0_i32 = arith.constant 0 : i32
    %c0_i32_0 = arith.constant 0 : i32
    %c0_i32_1 = arith.constant 0 : i32
    return %c0_i32, %c0_i32_0 : i32, i32
  }
  func.func @transform_5(%arg0: i32, %arg1: i32) -> (i32, i32, i32, i32) {
    %c0_i32 = arith.constant 0 : i32
    %c0_i32_0 = arith.constant 0 : i32
    %c0_i32_1 = arith.constant 0 : i32
    return %arg0, %arg1, %c0_i32, %c0_i32_0 : i32, i32, i32, i32
  }
  func.func @transform_6(%arg0: i32, %arg1: i32) -> (i32, i32, i32, i32) {
    %c0_i32 = arith.constant 0 : i32
    %c0_i32_0 = arith.constant 0 : i32
    %c0_i32_1 = arith.constant 0 : i32
    return %arg0, %arg1, %c0_i32, %c0_i32_0 : i32, i32, i32, i32
  }
}

module attributes {stable_mosaic.version = 11 : i64} {
  func.func @conv2_kernel(%arg0: i32, %arg1: i32, %arg2: memref<1x1x16x4xf32, #tpu.memory_space<vmem>>, %arg3: memref<1x8x16x4xf32, #tpu.memory_space<vmem>>, %arg4: memref<1x1x16x4xf32, #tpu.memory_space<vmem>>, %arg5: memref<36x4xf32, #tpu.memory_space<vmem>>, %arg6: memref<1x4xf32, #tpu.memory_space<vmem>>, %arg7: memref<1x4xf32, #tpu.memory_space<vmem>>, %arg8: memref<1x4xf32, #tpu.memory_space<vmem>>, %arg9: memref<1xf32, #tpu.memory_space<smem>>, %arg10: memref<1x8x16x4xf32, #tpu.memory_space<vmem>>, %arg11: memref<1x1x2x4xf32, #tpu.memory_space<vmem>>) attributes {dimension_semantics = [#tpu.dimension_semantics<parallel>, #tpu.dimension_semantics<parallel>], iteration_bounds = array<i64: 2, 2>, scalar_prefetch = 0 : i64, scratch_operands = 0 : i64, tpu.core_type = #tpu.core_type<tc>, window_params = [{transform_indices = @transform_0, window_bounds = array<i64: 1, 1, 16, 4>}, {transform_indices = @transform_1, window_bounds = array<i64: 1, 8, 16, 4>}, {transform_indices = @transform_2, window_bounds = array<i64: 1, 1, 16, 4>}, {pipeline_mode = #tpu.pipeline_mode<synchronous>, transform_indices = @transform_3, window_bounds = array<i64: 36, 4>}, {pipeline_mode = #tpu.pipeline_mode<synchronous>, transform_indices = @transform_4, window_bounds = array<i64: 1, 4>}, {pipeline_mode = #tpu.pipeline_mode<synchronous>, transform_indices = @transform_5, window_bounds = array<i64: 1, 4>}, {pipeline_mode = #tpu.pipeline_mode<synchronous>, transform_indices = @transform_6, window_bounds = array<i64: 1, 4>}, {transform_indices = @transform_7, window_bounds = array<i64: 1>}, {transform_indices = @transform_8, window_bounds = array<i64: 1, 8, 16, 4>}, {transform_indices = @transform_9, window_bounds = array<i64: 1, 1, 2, 4>}]} {
    %c0 = arith.constant 0 : index
    %0 = memref.load %arg9[%c0] : memref<1xf32, #tpu.memory_space<smem>>
    %c0_0 = arith.constant 0 : index
    %c0_1 = arith.constant 0 : index
    %1 = vector.load %arg7[%c0_0, %c0_1] : memref<1x4xf32, #tpu.memory_space<vmem>>, vector<1x4xf32>
    %c0_2 = arith.constant 0 : index
    %c0_3 = arith.constant 0 : index
    %2 = vector.load %arg8[%c0_2, %c0_3] : memref<1x4xf32, #tpu.memory_space<vmem>>, vector<1x4xf32>
    %c0_i32 = arith.constant 0 : i32
    %3 = arith.cmpi eq, %arg1, %c0_i32 : i32
    %c0_4 = arith.constant 0 : index
    %c0_5 = arith.constant 0 : index
    %c0_6 = arith.constant 0 : index
    %c0_7 = arith.constant 0 : index
    %4 = vector.load %arg2[%c0_4, %c0_5, %c0_6, %c0_7] : memref<1x1x16x4xf32, #tpu.memory_space<vmem>>, vector<1x1x16x4xf32>
    %5 = vector.shape_cast %4 : vector<1x1x16x4xf32> to vector<1x16x4xf32>
    %6 = vector.shape_cast %1 : vector<1x4xf32> to vector<1x1x4xf32>
    %7 = vector.broadcast %6 : vector<1x1x4xf32> to vector<1x16x4xf32>
    %8 = arith.mulf %5, %7 : vector<1x16x4xf32>
    %9 = vector.shape_cast %2 : vector<1x4xf32> to vector<1x1x4xf32>
    %10 = vector.broadcast %9 : vector<1x1x4xf32> to vector<1x16x4xf32>
    %11 = arith.addf %8, %10 : vector<1x16x4xf32>
    %cst = arith.constant 0.000000e+00 : f32
    %12 = vector.broadcast %cst : f32 to vector<1x16x4xf32>
    %13 = arith.cmpf ogt, %11, %12 : vector<1x16x4xf32>
    %14 = vector.broadcast %0 : f32 to vector<1x16x4xf32>
    %15 = arith.mulf %14, %11 : vector<1x16x4xf32>
    %16 = arith.select %13, %11, %15 : vector<1x16x4xi1>, vector<1x16x4xf32>
    %cst_8 = arith.constant 0.000000e+00 : f32
    %17 = vector.broadcast %cst_8 : f32 to vector<1x16x4xf32>
    %18 = arith.select %3, %17, %16 : vector<1x16x4xf32>
    %c1_i32 = arith.constant 1 : i32
    %19 = arith.cmpi eq, %arg1, %c1_i32 : i32
    %c0_9 = arith.constant 0 : index
    %c0_10 = arith.constant 0 : index
    %c0_11 = arith.constant 0 : index
    %c0_12 = arith.constant 0 : index
    %20 = vector.load %arg4[%c0_9, %c0_10, %c0_11, %c0_12] : memref<1x1x16x4xf32, #tpu.memory_space<vmem>>, vector<1x1x16x4xf32>
    %21 = vector.shape_cast %20 : vector<1x1x16x4xf32> to vector<1x16x4xf32>
    %22 = vector.shape_cast %1 : vector<1x4xf32> to vector<1x1x4xf32>
    %23 = vector.broadcast %22 : vector<1x1x4xf32> to vector<1x16x4xf32>
    %24 = arith.mulf %21, %23 : vector<1x16x4xf32>
    %25 = vector.shape_cast %2 : vector<1x4xf32> to vector<1x1x4xf32>
    %26 = vector.broadcast %25 : vector<1x1x4xf32> to vector<1x16x4xf32>
    %27 = arith.addf %24, %26 : vector<1x16x4xf32>
    %cst_13 = arith.constant 0.000000e+00 : f32
    %28 = vector.broadcast %cst_13 : f32 to vector<1x16x4xf32>
    %29 = arith.cmpf ogt, %27, %28 : vector<1x16x4xf32>
    %30 = vector.broadcast %0 : f32 to vector<1x16x4xf32>
    %31 = arith.mulf %30, %27 : vector<1x16x4xf32>
    %32 = arith.select %29, %27, %31 : vector<1x16x4xi1>, vector<1x16x4xf32>
    %cst_14 = arith.constant 0.000000e+00 : f32
    %33 = vector.broadcast %cst_14 : f32 to vector<1x16x4xf32>
    %34 = arith.select %19, %33, %32 : vector<1x16x4xf32>
    %c0_15 = arith.constant 0 : index
    %c0_16 = arith.constant 0 : index
    %c0_17 = arith.constant 0 : index
    %c0_18 = arith.constant 0 : index
    %35 = vector.load %arg3[%c0_15, %c0_16, %c0_17, %c0_18] : memref<1x8x16x4xf32, #tpu.memory_space<vmem>>, vector<1x8x16x4xf32>
    %36 = vector.shape_cast %35 : vector<1x8x16x4xf32> to vector<8x16x4xf32>
    %37 = vector.shape_cast %1 : vector<1x4xf32> to vector<1x1x4xf32>
    %38 = vector.broadcast %37 : vector<1x1x4xf32> to vector<8x16x4xf32>
    %39 = arith.mulf %36, %38 : vector<8x16x4xf32>
    %40 = vector.shape_cast %2 : vector<1x4xf32> to vector<1x1x4xf32>
    %41 = vector.broadcast %40 : vector<1x1x4xf32> to vector<8x16x4xf32>
    %42 = arith.addf %39, %41 : vector<8x16x4xf32>
    %cst_19 = arith.constant 0.000000e+00 : f32
    %43 = vector.broadcast %cst_19 : f32 to vector<8x16x4xf32>
    %44 = arith.cmpf ogt, %42, %43 : vector<8x16x4xf32>
    %45 = vector.broadcast %0 : f32 to vector<8x16x4xf32>
    %46 = arith.mulf %45, %42 : vector<8x16x4xf32>
    %47 = arith.select %44, %42, %46 : vector<8x16x4xi1>, vector<8x16x4xf32>
    %c0_20 = arith.constant 0 : index
    %c0_21 = arith.constant 0 : index
    %48 = vector.load %arg5[%c0_20, %c0_21] : memref<36x4xf32, #tpu.memory_space<vmem>>, vector<36x4xf32>
    %c0_22 = arith.constant 0 : index
    %c0_23 = arith.constant 0 : index
    %49 = vector.load %arg6[%c0_22, %c0_23] : memref<1x4xf32, #tpu.memory_space<vmem>>, vector<1x4xf32>
    %50 = tpu.concatenate %18, %47, %34 in 0 : vector<1x16x4xf32>, vector<8x16x4xf32>, vector<1x16x4xf32> -> vector<10x16x4xf32>
    %cst_24 = arith.constant 0.000000e+00 : f32
    %51 = vector.broadcast %cst_24 : f32 to vector<10x1x4xf32>
    %52 = tpu.concatenate %51, %50, %51 in 1 : vector<10x1x4xf32>, vector<10x16x4xf32>, vector<10x1x4xf32> -> vector<10x18x4xf32>
    %53 = vector.extract_strided_slice %52 {offsets = [0, 0, 0], sizes = [8, 16, 4], strides = [1, 1, 1]} : vector<10x18x4xf32> to vector<8x16x4xf32>
    %54 = vector.extract_strided_slice %52 {offsets = [0, 1, 0], sizes = [8, 16, 4], strides = [1, 1, 1]} : vector<10x18x4xf32> to vector<8x16x4xf32>
    %55 = vector.extract_strided_slice %52 {offsets = [0, 2, 0], sizes = [8, 16, 4], strides = [1, 1, 1]} : vector<10x18x4xf32> to vector<8x16x4xf32>
    %56 = vector.extract_strided_slice %52 {offsets = [1, 0, 0], sizes = [8, 16, 4], strides = [1, 1, 1]} : vector<10x18x4xf32> to vector<8x16x4xf32>
    %57 = vector.extract_strided_slice %52 {offsets = [1, 1, 0], sizes = [8, 16, 4], strides = [1, 1, 1]} : vector<10x18x4xf32> to vector<8x16x4xf32>
    %58 = vector.extract_strided_slice %52 {offsets = [1, 2, 0], sizes = [8, 16, 4], strides = [1, 1, 1]} : vector<10x18x4xf32> to vector<8x16x4xf32>
    %59 = vector.extract_strided_slice %52 {offsets = [2, 0, 0], sizes = [8, 16, 4], strides = [1, 1, 1]} : vector<10x18x4xf32> to vector<8x16x4xf32>
    %60 = vector.extract_strided_slice %52 {offsets = [2, 1, 0], sizes = [8, 16, 4], strides = [1, 1, 1]} : vector<10x18x4xf32> to vector<8x16x4xf32>
    %61 = vector.extract_strided_slice %52 {offsets = [2, 2, 0], sizes = [8, 16, 4], strides = [1, 1, 1]} : vector<10x18x4xf32> to vector<8x16x4xf32>
    %62 = tpu.concatenate %53, %54, %55, %56, %57, %58, %59, %60, %61 in 2 : vector<8x16x4xf32>, vector<8x16x4xf32>, vector<8x16x4xf32>, vector<8x16x4xf32>, vector<8x16x4xf32>, vector<8x16x4xf32>, vector<8x16x4xf32>, vector<8x16x4xf32>, vector<8x16x4xf32> -> vector<8x16x36xf32>
    %63 = vector.shape_cast %62 : vector<8x16x36xf32> to vector<128x36xf32>
    %cst_25 = arith.constant dense<0.000000e+00> : vector<128x4xf32>
    %64 = tpu.matmul %63, %48, %cst_25 {dimension_numbers = #tpu.dot_dimension_numbers<[1], [0], [0], [1], [0, 0, 1, 1], [], []>} : vector<128x36xf32>, vector<36x4xf32>, vector<128x4xf32> -> vector<128x4xf32>
    %65 = vector.broadcast %49 : vector<1x4xf32> to vector<128x4xf32>
    %66 = arith.addf %64, %65 : vector<128x4xf32>
    %67 = vector.shape_cast %66 : vector<128x4xf32> to vector<1x8x16x4xf32>
    %c0_26 = arith.constant 0 : index
    %c0_27 = arith.constant 0 : index
    %c0_28 = arith.constant 0 : index
    %c0_29 = arith.constant 0 : index
    %68 = vector.load %arg10[%c0_26, %c0_27, %c0_28, %c0_29] : memref<1x8x16x4xf32, #tpu.memory_space<vmem>>, vector<1x8x16x4xf32>
    tpu.vector_store %arg10[%c0_26, %c0_27, %c0_28, %c0_29], %67 {strides = array<i32>} : memref<1x8x16x4xf32, #tpu.memory_space<vmem>>, vector<1x8x16x4xf32>,
    %cst_30 = arith.constant dense<0.000000e+00> : vector<4xf32>
    %69 = vector.multi_reduction <add>, %66, %cst_30 [0] : vector<128x4xf32> to vector<4xf32>
    %70 = vector.shape_cast %69 : vector<4xf32> to vector<1x4xf32>
    %71 = arith.mulf %66, %66 : vector<128x4xf32>
    %cst_31 = arith.constant dense<0.000000e+00> : vector<4xf32>
    %72 = vector.multi_reduction <add>, %71, %cst_31 [0] : vector<128x4xf32> to vector<4xf32>
    %73 = vector.shape_cast %72 : vector<4xf32> to vector<1x4xf32>
    %74 = tpu.concatenate %70, %73 in 0 : vector<1x4xf32>, vector<1x4xf32> -> vector<2x4xf32>
    %75 = vector.shape_cast %74 : vector<2x4xf32> to vector<1x1x2x4xf32>
    %c0_32 = arith.constant 0 : index
    %c0_33 = arith.constant 0 : index
    %c0_34 = arith.constant 0 : index
    %c0_35 = arith.constant 0 : index
    %76 = vector.load %arg11[%c0_32, %c0_33, %c0_34, %c0_35] : memref<1x1x2x4xf32, #tpu.memory_space<vmem>>, vector<1x1x2x4xf32>
    tpu.vector_store %arg11[%c0_32, %c0_33, %c0_34, %c0_35], %75 {strides = array<i32>} : memref<1x1x2x4xf32, #tpu.memory_space<vmem>>, vector<1x1x2x4xf32>,
    return
  }
  func.func @transform_0(%arg0: i32, %arg1: i32) -> (i32, i32, i32, i32) {
    %c8_i32 = arith.constant 8 : i32
    %0 = arith.muli %arg1, %c8_i32 : i32
    %c1_i32 = arith.constant 1 : i32
    %1 = arith.subi %0, %c1_i32 : i32
    %c0_i32 = arith.constant 0 : i32
    %2 = arith.maxsi %1, %c0_i32 : i32
    %c0_i32_0 = arith.constant 0 : i32
    %c0_i32_1 = arith.constant 0 : i32
    %c0_i32_2 = arith.constant 0 : i32
    return %arg0, %2, %c0_i32_0, %c0_i32_1 : i32, i32, i32, i32
  }
  func.func @transform_1(%arg0: i32, %arg1: i32) -> (i32, i32, i32, i32) {
    %c0_i32 = arith.constant 0 : i32
    %c0_i32_0 = arith.constant 0 : i32
    %c0_i32_1 = arith.constant 0 : i32
    return %arg0, %arg1, %c0_i32, %c0_i32_0 : i32, i32, i32, i32
  }
  func.func @transform_2(%arg0: i32, %arg1: i32) -> (i32, i32, i32, i32) {
    %c1_i32 = arith.constant 1 : i32
    %0 = arith.addi %arg1, %c1_i32 : i32
    %c8_i32 = arith.constant 8 : i32
    %1 = arith.muli %0, %c8_i32 : i32
    %c15_i32 = arith.constant 15 : i32
    %2 = arith.minsi %1, %c15_i32 : i32
    %c0_i32 = arith.constant 0 : i32
    %c0_i32_0 = arith.constant 0 : i32
    %c0_i32_1 = arith.constant 0 : i32
    return %arg0, %2, %c0_i32, %c0_i32_0 : i32, i32, i32, i32
  }
  func.func @transform_3(%arg0: i32, %arg1: i32) -> (i32, i32) {
    %c0_i32 = arith.constant 0 : i32
    %c0_i32_0 = arith.constant 0 : i32
    %c0_i32_1 = arith.constant 0 : i32
    return %c0_i32, %c0_i32_0 : i32, i32
  }
  func.func @transform_4(%arg0: i32, %arg1: i32) -> (i32, i32) {
    %c0_i32 = arith.constant 0 : i32
    %c0_i32_0 = arith.constant 0 : i32
    %c0_i32_1 = arith.constant 0 : i32
    return %c0_i32, %c0_i32_0 : i32, i32
  }
  func.func @transform_5(%arg0: i32, %arg1: i32) -> (i32, i32) {
    %c0_i32 = arith.constant 0 : i32
    %c0_i32_0 = arith.constant 0 : i32
    %c0_i32_1 = arith.constant 0 : i32
    return %c0_i32, %c0_i32_0 : i32, i32
  }
  func.func @transform_6(%arg0: i32, %arg1: i32) -> (i32, i32) {
    %c0_i32 = arith.constant 0 : i32
    %c0_i32_0 = arith.constant 0 : i32
    %c0_i32_1 = arith.constant 0 : i32
    return %c0_i32, %c0_i32_0 : i32, i32
  }
  func.func @transform_7(%arg0: i32, %arg1: i32) -> i32 {
    %c0_i32 = arith.constant 0 : i32
    %c0_i32_0 = arith.constant 0 : i32
    return %c0_i32 : i32
  }
  func.func @transform_8(%arg0: i32, %arg1: i32) -> (i32, i32, i32, i32) {
    %c0_i32 = arith.constant 0 : i32
    %c0_i32_0 = arith.constant 0 : i32
    %c0_i32_1 = arith.constant 0 : i32
    return %arg0, %arg1, %c0_i32, %c0_i32_0 : i32, i32, i32, i32
  }
  func.func @transform_9(%arg0: i32, %arg1: i32) -> (i32, i32, i32, i32) {
    %c0_i32 = arith.constant 0 : i32
    %c0_i32_0 = arith.constant 0 : i32
    %c0_i32_1 = arith.constant 0 : i32
    return %arg0, %arg1, %c0_i32, %c0_i32_0 : i32, i32, i32, i32
  }
}

module attributes {stable_mosaic.version = 11 : i64} {
  func.func @bn2_residual_kernel(%arg0: i32, %arg1: i32, %arg2: memref<1x8x64xf32, #tpu.memory_space<vmem>>, %arg3: memref<1x8x64xf32, #tpu.memory_space<vmem>>, %arg4: memref<1x64xf32, #tpu.memory_space<vmem>>, %arg5: memref<1x64xf32, #tpu.memory_space<vmem>>, %arg6: memref<1x8x64xf32, #tpu.memory_space<vmem>>) attributes {dimension_semantics = [#tpu.dimension_semantics<parallel>, #tpu.dimension_semantics<parallel>], iteration_bounds = array<i64: 2, 2>, scalar_prefetch = 0 : i64, scratch_operands = 0 : i64, tpu.core_type = #tpu.core_type<tc>, window_params = [{transform_indices = @transform_0, window_bounds = array<i64: 1, 8, 64>}, {transform_indices = @transform_1, window_bounds = array<i64: 1, 8, 64>}, {pipeline_mode = #tpu.pipeline_mode<synchronous>, transform_indices = @transform_2, window_bounds = array<i64: 1, 64>}, {pipeline_mode = #tpu.pipeline_mode<synchronous>, transform_indices = @transform_3, window_bounds = array<i64: 1, 64>}, {transform_indices = @transform_4, window_bounds = array<i64: 1, 8, 64>}]} {
    %c0 = arith.constant 0 : index
    %c0_0 = arith.constant 0 : index
    %c0_1 = arith.constant 0 : index
    %0 = vector.load %arg3[%c0, %c0_0, %c0_1] : memref<1x8x64xf32, #tpu.memory_space<vmem>>, vector<1x8x64xf32>
    %c0_2 = arith.constant 0 : index
    %c0_3 = arith.constant 0 : index
    %c0_4 = arith.constant 0 : index
    %1 = vector.load %arg2[%c0_2, %c0_3, %c0_4] : memref<1x8x64xf32, #tpu.memory_space<vmem>>, vector<1x8x64xf32>
    %c0_5 = arith.constant 0 : index
    %c0_6 = arith.constant 0 : index
    %2 = vector.load %arg4[%c0_5, %c0_6] : memref<1x64xf32, #tpu.memory_space<vmem>>, vector<1x64xf32>
    %3 = vector.shape_cast %2 : vector<1x64xf32> to vector<1x1x64xf32>
    %4 = vector.broadcast %3 : vector<1x1x64xf32> to vector<1x8x64xf32>
    %5 = arith.mulf %1, %4 : vector<1x8x64xf32>
    %c0_7 = arith.constant 0 : index
    %c0_8 = arith.constant 0 : index
    %6 = vector.load %arg5[%c0_7, %c0_8] : memref<1x64xf32, #tpu.memory_space<vmem>>, vector<1x64xf32>
    %7 = vector.shape_cast %6 : vector<1x64xf32> to vector<1x1x64xf32>
    %8 = vector.broadcast %7 : vector<1x1x64xf32> to vector<1x8x64xf32>
    %9 = arith.addf %5, %8 : vector<1x8x64xf32>
    %10 = arith.addf %0, %9 : vector<1x8x64xf32>
    %c0_9 = arith.constant 0 : index
    %c0_10 = arith.constant 0 : index
    %c0_11 = arith.constant 0 : index
    %11 = vector.load %arg6[%c0_9, %c0_10, %c0_11] : memref<1x8x64xf32, #tpu.memory_space<vmem>>, vector<1x8x64xf32>
    tpu.vector_store %arg6[%c0_9, %c0_10, %c0_11], %10 {strides = array<i32>} : memref<1x8x64xf32, #tpu.memory_space<vmem>>, vector<1x8x64xf32>,
    return
  }
  func.func @transform_0(%arg0: i32, %arg1: i32) -> (i32, i32, i32) {
    %c0_i32 = arith.constant 0 : i32
    %c0_i32_0 = arith.constant 0 : i32
    return %arg0, %arg1, %c0_i32 : i32, i32, i32
  }
  func.func @transform_1(%arg0: i32, %arg1: i32) -> (i32, i32, i32) {
    %c0_i32 = arith.constant 0 : i32
    %c0_i32_0 = arith.constant 0 : i32
    return %arg0, %arg1, %c0_i32 : i32, i32, i32
  }
  func.func @transform_2(%arg0: i32, %arg1: i32) -> (i32, i32) {
    %c0_i32 = arith.constant 0 : i32
    %c0_i32_0 = arith.constant 0 : i32
    %c0_i32_1 = arith.constant 0 : i32
    return %c0_i32, %c0_i32_0 : i32, i32
  }
  func.func @transform_3(%arg0: i32, %arg1: i32) -> (i32, i32) {
    %c0_i32 = arith.constant 0 : i32
    %c0_i32_0 = arith.constant 0 : i32
    %c0_i32_1 = arith.constant 0 : i32
    return %c0_i32, %c0_i32_0 : i32, i32
  }
  func.func @transform_4(%arg0: i32, %arg1: i32) -> (i32, i32, i32) {
    %c0_i32 = arith.constant 0 : i32
    %c0_i32_0 = arith.constant 0 : i32
    return %arg0, %arg1, %c0_i32 : i32, i32, i32
  }
}

</mosaic_0001>

<llo_original>
// kernel: residual_block_forward.3
$region0: #{residual_block_forward.3}
  #allocation0 [shape = 'u32[]', space=smem, size = 0x4, offset = 0x4, fixed_abs, tag = 'smem constant byte address 0x4 - core index']
  #allocation1 [shape = 'u32[144,128]{1,0:T(1,128)}', space=vmem, size = 0x12000, scoped, tag = 'internal scratch']
  %s0 = inlined_call_operand.vmem [shape: f32[2,16,16,4], index: 0, kind: input, shape index: {}, may-alias: {0,1,2}]
  %s1 = inlined_call_operand.vmem [shape: f32[2,16,16,4], index: 1, kind: input, shape index: {}, may-alias: {0,1,2}]
  %s2 = inlined_call_operand.vmem [shape: f32[2,16,16,4], index: 2, kind: input, shape index: {}, may-alias: {0,1,2}]
  %s3 = inlined_call_operand.vmem [shape: f32[36,4], index: 3, kind: input, shape index: {}]
  %s4 = inlined_call_operand.vmem [shape: f32[1,4], index: 4, kind: input, shape index: {}]
  %s5 = inlined_call_operand.vmem [shape: f32[2,16,16,4], index: 5, kind: output, shape index: {0}]
  %s6 = inlined_call_operand.vmem [shape: f32[2,2,2,4], index: 6, kind: output, shape index: {1}]
  %7 = xla_tuple %s5, %s6
  %s8 = sld [smem:[#allocation0]]
  $region61: #{residual_block_forward.3} parent=0
    _
  %s10 = ssub.s32 1, %s8
  %s11 = scalar_select 0, %s10, %s8
  loop: start=0, step=1, limit=6
  $region2: #{residual_block_forward.3} parent=0 // loop_pre_header
    _
  $region3: #{residual_block_forward.3} parent=0 // loop_header
    %s13 = sphi 0, %s17
    %p14 = scmp.ge.s32.totalorder %s13, 6
    %s20 = sphi 0, %s32
    %s21 = sphi 0, %s28
    %s22 = sphi 0, %s20
    %s23 = sphi 0, %s21
    %s24 = sphi 0, %s22
    %s25 = sphi 0, %s23
    %s45 = sphi 0, %s47
    %s48 = sphi 0, %s45
    %s49 = sphi 0, %s48
    %s65 = sphi 0, %s49
    %s73 = sphi 0, %s75
    %s76 = sphi 0, %s73
    %s77 = sphi 0, %s76
    %s93 = sphi 0, %s77
    %s109 = sphi 0, %s111
    %s112 = sphi 0, %s109
    %s113 = sphi 0, %s112
    %s129 = sphi 0, %s113
    %s133 = sphi 0, %s133
    %s135 = sphi 0, %s133
    %s136 = sphi 0, %s135
    %s150 = sphi 0, %s136
    %s154 = sphi 0, %s154
    %s156 = sphi 0, %s154
    %s157 = sphi 0, %s156
    %s171 = sphi 0, %s157
    %s179 = sphi 0, %s181
    %s182 = sphi 0, %s179
    %s183 = sphi 0, %s182
    %s199 = sphi 0, %s183
    %s207 = sphi 0, %s209
    %s210 = sphi 0, %s207
    %s211 = sphi 0, %s210
    %s227 = sphi 0, %s211
  $region4: #{residual_block_forward.3} parent=0 // loop_header_branch
    %16 = sbr.rel (%p14) target = $region8
  $region5: #{residual_block_forward.3} parent=0 // loop_body
    %s18 = ssub.s32 %s13, 1
    %s19 = ssub.s32 %s13, 2
    %s26 = sadd.s32 1, %s21
    %p27 = scmp.ge.s32.totalorder %s26, 2
    %s28 = scalar_select %p27, 0, %s26
    %s29 = sadd.s32 1, %s20
    %s30 = scalar_select %p27, %s29, %s20
    %p31 = scmp.ge.s32.totalorder %s30, 2
    %s32 = scalar_select %p31, 0, %s30
    %s33 = smul.u32 %s21, 8
    %s34 = ssub.s32 %s33, 1
    %p35 = scmp.gt.s32.totalorder %s34, 0
    %s36 = scalar_select %p35, %s34, 0
    %s37 = smul.u32 %s28, 8
    %s38 = ssub.s32 %s37, 1
    %p39 = scmp.gt.s32.totalorder %s38, 0
    %s40 = scalar_select %p39, %s38, 0
    %s41 = ssub.s32 %s20, %s32
    %s42 = ssub.s32 %s36, %s40
    %s43 = sor.u32 %s41, %s42
    %p44 = scmp.eq.s32.totalorder %s43, 0
    %s46 = sadd.s32 %s45, 1
    %s47 = scalar_select %p44, %s45, %s46
    %p50 = pneg %p44
    %p51 = scmp.eq.s32.totalorder %s13, 3
    %p52 = por %p50, %p51
    %p53 = scmp.ne.s32.totalorder %s45, %s48
    %p54 = scmp.eq.s32.totalorder %s13, 0
    %p55 = por %p53, %p54
    %p56 = scmp.ne.s32.totalorder %s45, %s48
    %p57 = scmp.eq.s32.totalorder %s18, 3
    %p58 = por %p56, %p57
    %p59 = scmp.ne.s32.totalorder %s48, %s49
    %p60 = scmp.eq.s32.totalorder %s18, 0
    %p61 = por %p59, %p60
    %p62 = scmp.ne.s32.totalorder %s48, %s49
    %p63 = scmp.eq.s32.totalorder %s19, 3
    %p64 = por %p62, %p63
    %p66 = scmp.ne.s32.totalorder %s49, %s65
    %p67 = scmp.eq.s32.totalorder %s19, 0
    %p68 = por %p66, %p67
    %s69 = ssub.s32 %s20, %s32
    %s70 = ssub.s32 %s21, %s28
    %s71 = sor.u32 %s69, %s70
    %p72 = scmp.eq.s32.totalorder %s71, 0
    %s74 = sadd.s32 %s73, 1
    %s75 = scalar_select %p72, %s73, %s74
    %p78 = pneg %p72
    %p79 = scmp.eq.s32.totalorder %s13, 3
    %p80 = por %p78, %p79
    %p81 = scmp.ne.s32.totalorder %s73, %s76
    %p82 = scmp.eq.s32.totalorder %s13, 0
    %p83 = por %p81, %p82
    %p84 = scmp.ne.s32.totalorder %s73, %s76
    %p85 = scmp.eq.s32.totalorder %s18, 3
    %p86 = por %p84, %p85
    %p87 = scmp.ne.s32.totalorder %s76, %s77
    %p88 = scmp.eq.s32.totalorder %s18, 0
    %p89 = por %p87, %p88
    %p90 = scmp.ne.s32.totalorder %s76, %s77
    %p91 = scmp.eq.s32.totalorder %s19, 3
    %p92 = por %p90, %p91
    %p94 = scmp.ne.s32.totalorder %s77, %s93
    %p95 = scmp.eq.s32.totalorder %s19, 0
    %p96 = por %p94, %p95
    %s97 = sadd.s32 %s21, 1
    %s98 = smul.u32 %s97, 8
    %p99 = scmp.lt.s32.totalorder %s98, 15
    %s100 = scalar_select %p99, %s98, 15
    %s101 = sadd.s32 %s28, 1
    %s102 = smul.u32 %s101, 8
    %p103 = scmp.lt.s32.totalorder %s102, 15
    %s104 = scalar_select %p103, %s102, 15
    %s105 = ssub.s32 %s20, %s32
    %s106 = ssub.s32 %s100, %s104
    %s107 = sor.u32 %s105, %s106
    %p108 = scmp.eq.s32.totalorder %s107, 0
    %s110 = sadd.s32 %s109, 1
    %s111 = scalar_select %p108, %s109, %s110
    %p114 = pneg %p108
    %p115 = scmp.eq.s32.totalorder %s13, 3
    %p116 = por %p114, %p115
    %p117 = scmp.ne.s32.totalorder %s109, %s112
    %p118 = scmp.eq.s32.totalorder %s13, 0
    %p119 = por %p117, %p118
    %p120 = scmp.ne.s32.totalorder %s109, %s112
    %p121 = scmp.eq.s32.totalorder %s18, 3
    %p122 = por %p120, %p121
    %p123 = scmp.ne.s32.totalorder %s112, %s113
    %p124 = scmp.eq.s32.totalorder %s18, 0
    %p125 = por %p123, %p124
    %p126 = scmp.ne.s32.totalorder %s112, %s113
    %p127 = scmp.eq.s32.totalorder %s19, 3
    %p128 = por %p126, %p127
    %p130 = scmp.ne.s32.totalorder %s113, %s129
    %p131 = scmp.eq.s32.totalorder %s19, 0
    %p132 = por %p130, %p131
    %s134 = sadd.s32 %s133, 1
    %p137 = scmp.eq.s32.totalorder %s13, 3
    %p138 = scmp.ne.s32.totalorder %s133, %s135
    %p139 = scmp.eq.s32.totalorder %s13, 0
    %p140 = por %p138, %p139
    %p141 = scmp.ne.s32.totalorder %s133, %s135
    %p142 = scmp.eq.s32.totalorder %s18, 3
    %p143 = por %p141, %p142
    %p144 = scmp.ne.s32.totalorder %s135, %s136
    %p145 = scmp.eq.s32.totalorder %s18, 0
    %p146 = por %p144, %p145
    %p147 = scmp.ne.s32.totalorder %s135, %s136
    %p148 = scmp.eq.s32.totalorder %s19, 3
    %p149 = por %p147, %p148
    %p151 = scmp.ne.s32.totalorder %s136, %s150
    %p152 = scmp.eq.s32.totalorder %s19, 0
    %p153 = por %p151, %p152
    %s155 = sadd.s32 %s154, 1
    %p158 = scmp.eq.s32.totalorder %s13, 3
    %p159 = scmp.ne.s32.totalorder %s154, %s156
    %p160 = scmp.eq.s32.totalorder %s13, 0
    %p161 = por %p159, %p160
    %p162 = scmp.ne.s32.totalorder %s154, %s156
    %p163 = scmp.eq.s32.totalorder %s18, 3
    %p164 = por %p162, %p163
    %p165 = scmp.ne.s32.totalorder %s156, %s157
    %p166 = scmp.eq.s32.totalorder %s18, 0
    %p167 = por %p165, %p166
    %p168 = scmp.ne.s32.totalorder %s156, %s157
    %p169 = scmp.eq.s32.totalorder %s19, 3
    %p170 = por %p168, %p169
    %p172 = scmp.ne.s32.totalorder %s157, %s171
    %p173 = scmp.eq.s32.totalorder %s19, 0
    %p174 = por %p172, %p173
    %s175 = ssub.s32 %s20, %s32
    %s176 = ssub.s32 %s21, %s28
    %s177 = sor.u32 %s175, %s176
    %p178 = scmp.eq.s32.totalorder %s177, 0
    %s180 = sadd.s32 %s179, 1
    %s181 = scalar_select %p178, %s179, %s180
    %p184 = pneg %p178
    %p185 = scmp.eq.s32.totalorder %s13, 3
    %p186 = por %p184, %p185
    %p187 = scmp.ne.s32.totalorder %s179, %s182
    %p188 = scmp.eq.s32.totalorder %s13, 0
    %p189 = por %p187, %p188
    %p190 = scmp.ne.s32.totalorder %s179, %s182
    %p191 = scmp.eq.s32.totalorder %s18, 3
    %p192 = por %p190, %p191
    %p193 = scmp.ne.s32.totalorder %s182, %s183
    %p194 = scmp.eq.s32.totalorder %s18, 0
    %p195 = por %p193, %p194
    %p196 = scmp.ne.s32.totalorder %s182, %s183
    %p197 = scmp.eq.s32.totalorder %s19, 3
    %p198 = por %p196, %p197
    %p200 = scmp.ne.s32.totalorder %s183, %s199
    %p201 = scmp.eq.s32.totalorder %s19, 0
    %p202 = por %p200, %p201
    %s203 = ssub.s32 %s20, %s32
    %s204 = ssub.s32 %s21, %s28
    %s205 = sor.u32 %s203, %s204
    %p206 = scmp.eq.s32.totalorder %s205, 0
    %s208 = sadd.s32 %s207, 1
    %s209 = scalar_select %p206, %s207, %s208
    %p212 = pneg %p206
    %p213 = scmp.eq.s32.totalorder %s13, 3
    %p214 = por %p212, %p213
    %p215 = scmp.ne.s32.totalorder %s207, %s210
    %p216 = scmp.eq.s32.totalorder %s13, 0
    %p217 = por %p215, %p216
    %p218 = scmp.ne.s32.totalorder %s207, %s210
    %p219 = scmp.eq.s32.totalorder %s18, 3
    %p220 = por %p218, %p219
    %p221 = scmp.ne.s32.totalorder %s210, %s211
    %p222 = scmp.eq.s32.totalorder %s18, 0
    %p223 = por %p221, %p222
    %p224 = scmp.ne.s32.totalorder %s210, %s211
    %p225 = scmp.eq.s32.totalorder %s19, 3
    %p226 = por %p224, %p225
    %p228 = scmp.ne.s32.totalorder %s211, %s227
    %p229 = scmp.eq.s32.totalorder %s19, 0
    %p230 = por %p228, %p229
    %p231 = scmp.le.s32.totalorder 1, %s13
    %p232 = scmp.lt.s32.totalorder %s13, 5
    %p233 = pnand %p231, %p232
    %p234 = pneg %p233
    // Predicated region
    $region9: #{residual_block_forward.3} parent=5 // pred_check
      _
    $region10: #{residual_block_forward.3} parent=5 // pred_check_branch
      %236 = sbr.rel (%p233) target = $region12
    $region11: #{residual_block_forward.3} parent=5 // pred_region
      %s237 = ssub.s32 %s13, 1
      // Predicated region
      $region13: #{residual_block_forward.3} parent=11 // pred_check
        %p238 = pneg %p146
      $region14: #{residual_block_forward.3} parent=11 // pred_check_branch
        %240 = sbr.rel (%p238) target = $region16
      $region15: #{residual_block_forward.3} parent=11 // pred_region
        _
      $region16: #{residual_block_forward.3} parent=11 // pred_fallthru
        _
      // Predicated region
      $region17: #{residual_block_forward.3} parent=11 // pred_check
        %p241 = pneg %p167
      $region18: #{residual_block_forward.3} parent=11 // pred_check_branch
        %243 = sbr.rel (%p241) target = $region20
      $region19: #{residual_block_forward.3} parent=11 // pred_region
        _
      $region20: #{residual_block_forward.3} parent=11 // pred_fallthru
        _
    $region12: #{residual_block_forward.3} parent=5 // pred_fallthru
      _
    %p244 = scmp.lt.s32.totalorder %s13, 4
    // Predicated region
    $region21: #{residual_block_forward.3} parent=5 // pred_check
      %p245 = pneg %p244
    $region22: #{residual_block_forward.3} parent=5 // pred_check_branch
      %247 = sbr.rel (%p245) target = $region24
    $region23: #{residual_block_forward.3} parent=5 // pred_region
      // Predicated region
      $region25: #{residual_block_forward.3} parent=23 // pred_check
        %p248 = pneg %p55
      $region26: #{residual_block_forward.3} parent=23 // pred_check_branch
        %250 = sbr.rel (%p248) target = $region28
      $region27: #{residual_block_forward.3} parent=23 // pred_region
        %s251 = smul.u32 %s21, 8
        %s252 = ssub.s32 %s251, 1
        %p253 = scmp.gt.s32.totalorder %s252, 0
        %s254 = scalar_select %p253, %s252, 0
        %p255 = scmp.lt.s32.totalorder %s20, 1
        %s256 = scalar_select %p255, %s20, 1
        %p257 = scmp.lt.s32.totalorder %s254, 15
        %s258 = scalar_select %p257, %s254, 15
        %s259 = smul.addr %s258, 2
        %s260 = smul.addr %s256, 32
        %s261 = sadd.s32 %s259, %s260
        %s262 = smul.addr %s261, 8
        %s263 = scalar_lea.vmem %s0, %s262
        %s264 = smul.u32 %s21, 8
        %s265 = ssub.s32 %s264, 1
        %p266 = scmp.gt.s32.totalorder %s265, 0
        %s267 = scalar_select %p266, %s265, 0
      $region28: #{residual_block_forward.3} parent=23 // pred_fallthru
        _
      // Predicated region
      $region29: #{residual_block_forward.3} parent=23 // pred_check
        %p268 = pneg %p83
      $region30: #{residual_block_forward.3} parent=23 // pred_check_branch
        %270 = sbr.rel (%p268) target = $region32
      $region31: #{residual_block_forward.3} parent=23 // pred_region
        %s271 = smul.u32 8, %s21
        %p272 = scmp.lt.s32.totalorder %s20, 1
        %s273 = scalar_select %p272, %s20, 1
        %p274 = scmp.lt.s32.totalorder %s271, 15
        %s275 = scalar_select %p274, %s271, 15
        %s276 = smul.addr %s275, 2
        %s277 = smul.addr %s273, 32
        %s278 = sadd.s32 %s276, %s277
        %s279 = smul.addr %s278, 8
        %s280 = scalar_lea.vmem %s1, %s279
        %s281 = smul.u32 8, %s21
      $region32: #{residual_block_forward.3} parent=23 // pred_fallthru
        _
      // Predicated region
      $region33: #{residual_block_forward.3} parent=23 // pred_check
        %p282 = pneg %p119
      $region34: #{residual_block_forward.3} parent=23 // pred_check_branch
        %284 = sbr.rel (%p282) target = $region36
      $region35: #{residual_block_forward.3} parent=23 // pred_region
        %s285 = sadd.s32 %s21, 1
        %s286 = smul.u32 %s285, 8
        %p287 = scmp.lt.s32.totalorder %s286, 15
        %s288 = scalar_select %p287, %s286, 15
        %p289 = scmp.lt.s32.totalorder %s20, 1
        %s290 = scalar_select %p289, %s20, 1
        %p291 = scmp.lt.s32.totalorder %s288, 15
        %s292 = scalar_select %p291, %s288, 15
        %s293 = smul.addr %s292, 2
        %s294 = smul.addr %s290, 32
        %s295 = sadd.s32 %s293, %s294
        %s296 = smul.addr %s295, 8
        %s297 = scalar_lea.vmem %s2, %s296
        %s298 = sadd.s32 %s21, 1
        %s299 = smul.u32 %s298, 8
        %p300 = scmp.lt.s32.totalorder %s299, 15
        %s301 = scalar_select %p300, %s299, 15
      $region36: #{residual_block_forward.3} parent=23 // pred_fallthru
        _
    $region24: #{residual_block_forward.3} parent=5 // pred_fallthru
      _
    %p302 = scmp.le.s32.totalorder 1, %s13
    %p303 = scmp.lt.s32.totalorder %s13, 5
    %p304 = pnand %p302, %p303
    %p305 = pneg %p304
    // Predicated region
    $region37: #{residual_block_forward.3} parent=5 // pred_check
      _
    $region38: #{residual_block_forward.3} parent=5 // pred_check_branch
      %307 = sbr.rel (%p304) target = $region40
    $region39: #{residual_block_forward.3} parent=5 // pred_region
      %s308 = ssub.s32 %s13, 1
      %s309 = smul.u32 %s23, 8
      %s310 = ssub.s32 %s309, 1
      %p311 = scmp.gt.s32.totalorder %s310, 0
      %s312 = scalar_select %p311, %s310, 0
      %p313 = scmp.lt.s32.totalorder %s22, 1
      %s314 = scalar_select %p313, %s22, 1
      %p315 = scmp.lt.s32.totalorder %s312, 15
      %s316 = scalar_select %p315, %s312, 15
      %s317 = smul.addr %s316, 2
      %s318 = smul.addr %s314, 32
      %s319 = sadd.s32 %s317, %s318
      %s320 = smul.addr %s319, 8
      %s321 = scalar_lea.vmem %s0, %s320
      %p322 = pneg %p61
      %p323 = pneg %p58
      %s324 = smul.u32 8, %s23
      %p325 = scmp.lt.s32.totalorder %s22, 1
      %s326 = scalar_select %p325, %s22, 1
      %p327 = scmp.lt.s32.totalorder %s324, 15
      %s328 = scalar_select %p327, %s324, 15
      %s329 = smul.addr %s328, 2
      %s330 = smul.addr %s326, 32
      %s331 = sadd.s32 %s329, %s330
      %s332 = smul.addr %s331, 8
      %s333 = scalar_lea.vmem %s1, %s332
      %p334 = pneg %p89
      %p335 = pneg %p86
      %s336 = sadd.s32 %s23, 1
      %s337 = smul.u32 %s336, 8
      %p338 = scmp.lt.s32.totalorder %s337, 15
      %s339 = scalar_select %p338, %s337, 15
      %p340 = scmp.lt.s32.totalorder %s22, 1
      %s341 = scalar_select %p340, %s22, 1
      %p342 = scmp.lt.s32.totalorder %s339, 15
      %s343 = scalar_select %p342, %s339, 15
      %s344 = smul.addr %s343, 2
      %s345 = smul.addr %s341, 32
      %s346 = sadd.s32 %s344, %s345
      %s347 = smul.addr %s346, 8
      %s348 = scalar_lea.vmem %s2, %s347
      %p349 = pneg %p125
      %p350 = pneg %p122
      %p351 = pneg %p146
      %p352 = pneg %p143
      %p353 = pneg %p167
      %p354 = pneg %p164
      %p355 = pneg %p195
      %p356 = pneg %p192
      %s357 = smul.u32 8, %s23
      %p358 = scmp.lt.s32.totalorder %s22, 1
      %s359 = scalar_select %p358, %s22, 1
      %p360 = scmp.lt.s32.totalorder %s357, 15
      %s361 = scalar_select %p360, %s357, 15
      %s362 = smul.addr %s361, 2
      %s363 = smul.addr %s359, 32
      %s364 = sadd.s32 %s362, %s363
      %s365 = smul.addr %s364, 8
      %s366 = scalar_lea.vmem %s5, %s365
      %p367 = pneg %p223
      %p368 = pneg %p220
      %p369 = scmp.lt.s32.totalorder %s22, 1
      %s370 = scalar_select %p369, %s22, 1
      %p371 = scmp.lt.s32.totalorder %s23, 1
      %s372 = scalar_select %p371, %s23, 1
      %s373 = smul.addr %s370, 2
      %s374 = sadd.s32 %s372, %s373
      %s375 = smul.addr %s374, 2
      %s376 = scalar_lea.vmem %s6, %s375
      %s377 = smul.u32 %s23, 8
      %s378 = ssub.s32 %s377, 1
      %p379 = scmp.gt.s32.totalorder %s378, 0
      %s380 = scalar_select %p379, %s378, 0
      %p381 = scmp.lt.s32.totalorder %s22, 1
      %s382 = scalar_select %p381, %s22, 1
      %p383 = scmp.lt.s32.totalorder %s380, 15
      %s384 = scalar_select %p383, %s380, 15
      %s385 = smul.addr %s384, 2
      %s386 = smul.addr %s382, 32
      %s387 = sadd.s32 %s385, %s386
      %s388 = smul.addr %s387, 8
      %s389 = scalar_lea.vmem %s0, %s388
      %s390 = smul.u32 %s23, 8
      %s391 = ssub.s32 %s390, 1
      %p392 = scmp.gt.s32.totalorder %s391, 0
      %s393 = scalar_select %p392, %s391, 0
      %s394 = smul.u32 8, %s23
      %p395 = scmp.lt.s32.totalorder %s22, 1
      %s396 = scalar_select %p395, %s22, 1
      %p397 = scmp.lt.s32.totalorder %s394, 15
      %s398 = scalar_select %p397, %s394, 15
      %s399 = smul.addr %s398, 2
      %s400 = smul.addr %s396, 32
      %s401 = sadd.s32 %s399, %s400
      %s402 = smul.addr %s401, 8
      %s403 = scalar_lea.vmem %s1, %s402
      %s404 = smul.u32 8, %s23
      %s405 = sadd.s32 %s23, 1
      %s406 = smul.u32 %s405, 8
      %p407 = scmp.lt.s32.totalorder %s406, 15
      %s408 = scalar_select %p407, %s406, 15
      %p409 = scmp.lt.s32.totalorder %s22, 1
      %s410 = scalar_select %p409, %s22, 1
      %p411 = scmp.lt.s32.totalorder %s408, 15
      %s412 = scalar_select %p411, %s408, 15
      %s413 = smul.addr %s412, 2
      %s414 = smul.addr %s410, 32
      %s415 = sadd.s32 %s413, %s414
      %s416 = smul.addr %s415, 8
      %s417 = scalar_lea.vmem %s2, %s416
      %s418 = sadd.s32 %s23, 1
      %s419 = smul.u32 %s418, 8
      %p420 = scmp.lt.s32.totalorder %s419, 15
      %s421 = scalar_select %p420, %s419, 15
      %s422 = smul.u32 8, %s23
      %p423 = scmp.lt.s32.totalorder %s22, 1
      %s424 = scalar_select %p423, %s22, 1
      %p425 = scmp.lt.s32.totalorder %s422, 15
      %s426 = scalar_select %p425, %s422, 15
      %s427 = smul.addr %s426, 2
      %s428 = smul.addr %s424, 32
      %s429 = sadd.s32 %s427, %s428
      %s430 = smul.addr %s429, 8
      %s431 = scalar_lea.vmem %s5, %s430
      %s432 = smul.u32 8, %s23
      %p433 = scmp.lt.s32.totalorder %s22, 1
      %s434 = scalar_select %p433, %s22, 1
      %p435 = scmp.lt.s32.totalorder %s23, 1
      %s436 = scalar_select %p435, %s23, 1
      %s437 = smul.addr %s434, 2
      %s438 = sadd.s32 %s436, %s437
      %s439 = smul.addr %s438, 2
      %s440 = scalar_lea.vmem %s6, %s439
      %p441 = scmp.eq.s32.totalorder %s23, 0
      %v442 = vld [vmem:[%s389] sm:$0xff]
      %v443 = vld [vmem:[%s389 + $0x8] sm:$0xff]
      %s444 = scalar_select %p441, 1, 0
      %v445 = vstv %s444
      %vm446 = vcmp.eq.s32.totalorder %v445, 1
      %v447 = vsel %vm446, 0.0, %v442
      %v448 = vsel %vm446, 0.0, %v443
      %p449 = scmp.eq.s32.totalorder %s23, 1
      %v450 = vld [vmem:[%s417] sm:$0xff]
      %v451 = vld [vmem:[%s417 + $0x8] sm:$0xff]
      %s452 = scalar_select %p449, 1, 0
      %v453 = vstv %s452
      %vm454 = vcmp.eq.s32.totalorder %v453, 1
      %v455 = vsel %vm454, 0.0, %v450
      %v456 = vsel %vm454, 0.0, %v451
      %v457 = vld [vmem:[%s403] sm:$0xff]
      %v458 = vld [vmem:[%s403 + $0x8] sm:$0xff]
      %v459 = vld [vmem:[%s403 + $0x10] sm:$0xff]
      %v460 = vld [vmem:[%s403 + $0x18] sm:$0xff]
      %v461 = vld [vmem:[%s403 + $0x20] sm:$0xff]
      %v462 = vld [vmem:[%s403 + $0x28] sm:$0xff]
      %v463 = vld [vmem:[%s403 + $0x30] sm:$0xff]
      %v464 = vld [vmem:[%s403 + $0x38] sm:$0xff]
      %v465 = vld [vmem:[%s403 + $0x40] sm:$0xff]
      %v466 = vld [vmem:[%s403 + $0x48] sm:$0xff]
      %v467 = vld [vmem:[%s403 + $0x50] sm:$0xff]
      %v468 = vld [vmem:[%s403 + $0x58] sm:$0xff]
      %v469 = vld [vmem:[%s403 + $0x60] sm:$0xff]
      %v470 = vld [vmem:[%s403 + $0x68] sm:$0xff]
      %v471 = vld [vmem:[%s403 + $0x70] sm:$0xff]
      %v472 = vld [vmem:[%s403 + $0x78] sm:$0xff]
      %v473 = vld [vmem:[%s3] sm:$0xff]
      %v474 = vld [vmem:[%s3 + $0x8] sm:$0xff]
      %v475 = vld [vmem:[%s3 + $0x10] sm:$0xff]
      %v476 = vld [vmem:[%s3 + $0x18] sm:$0xff]
      %v477 = vld [vmem:[%s3 + $0x20] sm:$0xf]
      %v478 = vld [vmem:[%s4] sm:$0x1]
      %vm499 = vcmask 1040384
      %v500 = vrot.slane %v447, 7
      %v501 = vrot.slane %v448, 7
      %v502 = vsel %vm499, %v500, %v501
      %v503 = vrot.slane %v457, 7
      %v504 = vrot.slane %v458, 7
      %v505 = vsel %vm499, %v503, %v504
      %v506 = vrot.slane %v459, 7
      %v507 = vrot.slane %v460, 7
      %v508 = vsel %vm499, %v506, %v507
      %v509 = vrot.slane %v461, 7
      %v510 = vrot.slane %v462, 7
      %v511 = vsel %vm499, %v509, %v510
      %v512 = vrot.slane %v463, 7
      %v513 = vrot.slane %v464, 7
      %v514 = vsel %vm499, %v512, %v513
      %v515 = vrot.slane %v465, 7
      %v516 = vrot.slane %v466, 7
      %v517 = vsel %vm499, %v515, %v516
      %v518 = vrot.slane %v467, 7
      %v519 = vrot.slane %v468, 7
      %v520 = vsel %vm499, %v518, %v519
      %v521 = vrot.slane %v469, 7
      %v522 = vrot.slane %v470, 7
      %v523 = vsel %vm499, %v521, %v522
      %v524 = vrot.slane %v471, 7
      %v525 = vrot.slane %v472, 7
      %v526 = vsel %vm499, %v524, %v525
      %v527 = vrot.slane %v455, 7
      %v528 = vrot.slane %v456, 7
      %v529 = vsel %vm499, %v527, %v528
      %v558 = vsel %vm499, 0.0, %v500
      %v559 = vsel %vm499, 0.0, %v503
      %v560 = vsel %vm499, 0.0, %v506
      %v561 = vsel %vm499, 0.0, %v509
      %v562 = vsel %vm499, 0.0, %v512
      %v563 = vsel %vm499, 0.0, %v515
      %v564 = vsel %vm499, 0.0, %v518
      %v565 = vsel %vm499, 0.0, %v521
      %v566 = vsel %vm499, 0.0, %v524
      %v567 = vsel %vm499, 0.0, %v527
      %v568 = vsel %vm499, %v501, 0.0
      %v569 = vsel %vm499, %v504, 0.0
      %v570 = vsel %vm499, %v507, 0.0
      %v571 = vsel %vm499, %v510, 0.0
      %v572 = vsel %vm499, %v513, 0.0
      %v573 = vsel %vm499, %v516, 0.0
      %v574 = vsel %vm499, %v519, 0.0
      %v575 = vsel %vm499, %v522, 0.0
      %v576 = vsel %vm499, %v525, 0.0
      %v577 = vsel %vm499, %v528, 0.0
      %vm594 = vcmask 1046528
      %v595 = vrot.slane %v558, 1
      %v596 = vrot.slane %v502, 1
      %v597 = vsel %vm594, %v595, %v596
      %v598 = vrot.slane %v568, 1
      %v599 = vsel %vm594, %v596, %v598
      %v600 = vrot.slane %v559, 1
      %v601 = vrot.slane %v505, 1
      %v602 = vsel %vm594, %v600, %v601
      %v603 = vrot.slane %v569, 1
      %v604 = vsel %vm594, %v601, %v603
      %v605 = vrot.slane %v560, 1
      %v606 = vrot.slane %v508, 1
      %v607 = vsel %vm594, %v605, %v606
      %v608 = vrot.slane %v570, 1
      %v609 = vsel %vm594, %v606, %v608
      %v610 = vrot.slane %v561, 1
      %v611 = vrot.slane %v511, 1
      %v612 = vsel %vm594, %v610, %v611
      %v613 = vrot.slane %v571, 1
      %v614 = vsel %vm594, %v611, %v613
      %v615 = vrot.slane %v562, 1
      %v616 = vrot.slane %v514, 1
      %v617 = vsel %vm594, %v615, %v616
      %v618 = vrot.slane %v572, 1
      %v619 = vsel %vm594, %v616, %v618
      %v620 = vrot.slane %v563, 1
      %v621 = vrot.slane %v517, 1
      %v622 = vsel %vm594, %v620, %v621
      %v623 = vrot.slane %v573, 1
      %v624 = vsel %vm594, %v621, %v623
      %v625 = vrot.slane %v564, 1
      %v626 = vrot.slane %v520, 1
      %v627 = vsel %vm594, %v625, %v626
      %v628 = vrot.slane %v574, 1
      %v629 = vsel %vm594, %v626, %v628
      %v630 = vrot.slane %v565, 1
      %v631 = vrot.slane %v523, 1
      %v632 = vsel %vm594, %v630, %v631
      %v633 = vrot.slane %v575, 1
      %v634 = vsel %vm594, %v631, %v633
      %635 = vrot.lane.b32.xlu0 %v597, 4
      %v636 = vpop.permute.xlu0 %635
      %637 = vrot.lane.b32.xlu0 %v599, 4
      %v638 = vpop.permute.xlu0 %637
      %639 = vrot.lane.b32.xlu0 %v602, 4
      %v640 = vpop.permute.xlu0 %639
      %641 = vrot.lane.b32.xlu0 %v604, 4
      %v642 = vpop.permute.xlu0 %641
      %643 = vrot.lane.b32.xlu0 %v607, 4
      %v644 = vpop.permute.xlu0 %643
      %645 = vrot.lane.b32.xlu0 %v609, 4
      %v646 = vpop.permute.xlu0 %645
      %647 = vrot.lane.b32.xlu0 %v612, 4
      %v648 = vpop.permute.xlu0 %647
      %649 = vrot.lane.b32.xlu0 %v614, 4
      %v650 = vpop.permute.xlu0 %649
      %651 = vrot.lane.b32.xlu0 %v617, 4
      %v652 = vpop.permute.xlu0 %651
      %653 = vrot.lane.b32.xlu0 %v619, 4
      %v654 = vpop.permute.xlu0 %653
      %655 = vrot.lane.b32.xlu0 %v622, 4
      %v656 = vpop.permute.xlu0 %655
      %657 = vrot.lane.b32.xlu0 %v624, 4
      %v658 = vpop.permute.xlu0 %657
      %659 = vrot.lane.b32.xlu0 %v627, 4
      %v660 = vpop.permute.xlu0 %659
      %661 = vrot.lane.b32.xlu0 %v629, 4
      %v662 = vpop.permute.xlu0 %661
      %663 = vrot.lane.b32.xlu0 %v632, 4
      %v664 = vpop.permute.xlu0 %663
      %665 = vrot.lane.b32.xlu0 %v634, 4
      %v666 = vpop.permute.xlu0 %665
      %vm683 = vcmask 1045504
      %v684 = vrot.slane %v558, 2
      %v685 = vrot.slane %v502, 2
      %v686 = vsel %vm683, %v684, %v685
      %v687 = vrot.slane %v568, 2
      %v688 = vsel %vm683, %v685, %v687
      %v689 = vrot.slane %v559, 2
      %v690 = vrot.slane %v505, 2
      %v691 = vsel %vm683, %v689, %v690
      %v692 = vrot.slane %v569, 2
      %v693 = vsel %vm683, %v690, %v692
      %v694 = vrot.slane %v560, 2
      %v695 = vrot.slane %v508, 2
      %v696 = vsel %vm683, %v694, %v695
      %v697 = vrot.slane %v570, 2
      %v698 = vsel %vm683, %v695, %v697
      %v699 = vrot.slane %v561, 2
      %v700 = vrot.slane %v511, 2
      %v701 = vsel %vm683, %v699, %v700
      %v702 = vrot.slane %v571, 2
      %v703 = vsel %vm683, %v700, %v702
      %v704 = vrot.slane %v562, 2
      %v705 = vrot.slane %v514, 2
      %v706 = vsel %vm683, %v704, %v705
      %v707 = vrot.slane %v572, 2
      %v708 = vsel %vm683, %v705, %v707
      %v709 = vrot.slane %v563, 2
      %v710 = vrot.slane %v517, 2
      %v711 = vsel %vm683, %v709, %v710
      %v712 = vrot.slane %v573, 2
      %v713 = vsel %vm683, %v710, %v712
      %v714 = vrot.slane %v564, 2
      %v715 = vrot.slane %v520, 2
      %v716 = vsel %vm683, %v714, %v715
      %v717 = vrot.slane %v574, 2
      %v718 = vsel %vm683, %v715, %v717
      %v719 = vrot.slane %v565, 2
      %v720 = vrot.slane %v523, 2
      %v721 = vsel %vm683, %v719, %v720
      %v722 = vrot.slane %v575, 2
      %v723 = vsel %vm683, %v720, %v722
      %724 = vrot.lane.b32.xlu0 %v686, 8
      %v725 = vpop.permute.xlu0 %724
      %726 = vrot.lane.b32.xlu0 %v688, 8
      %v727 = vpop.permute.xlu0 %726
      %728 = vrot.lane.b32.xlu0 %v691, 8
      %v729 = vpop.permute.xlu0 %728
      %730 = vrot.lane.b32.xlu0 %v693, 8
      %v731 = vpop.permute.xlu0 %730
      %732 = vrot.lane.b32.xlu0 %v696, 8
      %v733 = vpop.permute.xlu0 %732
      %734 = vrot.lane.b32.xlu0 %v698, 8
      %v735 = vpop.permute.xlu0 %734
      %736 = vrot.lane.b32.xlu0 %v701, 8
      %v737 = vpop.permute.xlu0 %736
      %738 = vrot.lane.b32.xlu0 %v703, 8
      %v739 = vpop.permute.xlu0 %738
      %740 = vrot.lane.b32.xlu0 %v706, 8
      %v741 = vpop.permute.xlu0 %740
      %742 = vrot.lane.b32.xlu0 %v708, 8
      %v743 = vpop.permute.xlu0 %742
      %744 = vrot.lane.b32.xlu0 %v711, 8
      %v745 = vpop.permute.xlu0 %744
      %746 = vrot.lane.b32.xlu0 %v713, 8
      %v747 = vpop.permute.xlu0 %746
      %748 = vrot.lane.b32.xlu0 %v716, 8
      %v749 = vpop.permute.xlu0 %748
      %750 = vrot.lane.b32.xlu0 %v718, 8
      %v751 = vpop.permute.xlu0 %750
      %752 = vrot.lane.b32.xlu0 %v721, 8
      %v753 = vpop.permute.xlu0 %752
      %754 = vrot.lane.b32.xlu0 %v723, 8
      %v755 = vpop.permute.xlu0 %754
      %773 = vrot.lane.b32.xlu0 %v559, 12
      %v774 = vpop.permute.xlu0 %773
      %775 = vrot.lane.b32.xlu0 %v505, 12
      %v776 = vpop.permute.xlu0 %775
      %777 = vrot.lane.b32.xlu0 %v560, 12
      %v778 = vpop.permute.xlu0 %777
      %779 = vrot.lane.b32.xlu0 %v508, 12
      %v780 = vpop.permute.xlu0 %779
      %781 = vrot.lane.b32.xlu0 %v561, 12
      %v782 = vpop.permute.xlu0 %781
      %783 = vrot.lane.b32.xlu0 %v511, 12
      %v784 = vpop.permute.xlu0 %783
      %785 = vrot.lane.b32.xlu0 %v562, 12
      %v786 = vpop.permute.xlu0 %785
      %787 = vrot.lane.b32.xlu0 %v514, 12
      %v788 = vpop.permute.xlu0 %787
      %789 = vrot.lane.b32.xlu0 %v563, 12
      %v790 = vpop.permute.xlu0 %789
      %791 = vrot.lane.b32.xlu0 %v517, 12
      %v792 = vpop.permute.xlu0 %791
      %793 = vrot.lane.b32.xlu0 %v564, 12
      %v794 = vpop.permute.xlu0 %793
      %795 = vrot.lane.b32.xlu0 %v520, 12
      %v796 = vpop.permute.xlu0 %795
      %797 = vrot.lane.b32.xlu0 %v565, 12
      %v798 = vpop.permute.xlu0 %797
      %799 = vrot.lane.b32.xlu0 %v523, 12
      %v800 = vpop.permute.xlu0 %799
      %801 = vrot.lane.b32.xlu0 %v566, 12
      %v802 = vpop.permute.xlu0 %801
      %803 = vrot.lane.b32.xlu0 %v526, 12
      %v804 = vpop.permute.xlu0 %803
      %v822 = vrot.slane %v566, 1
      %v823 = vrot.slane %v526, 1
      %v824 = vsel %vm594, %v822, %v823
      %v825 = vrot.slane %v576, 1
      %v826 = vsel %vm594, %v823, %v825
      %827 = vrot.lane.b32.xlu0 %v602, 16
      %v828 = vpop.permute.xlu0 %827
      %829 = vrot.lane.b32.xlu0 %v604, 16
      %v830 = vpop.permute.xlu0 %829
      %831 = vrot.lane.b32.xlu0 %v607, 16
      %v832 = vpop.permute.xlu0 %831
      %833 = vrot.lane.b32.xlu0 %v609, 16
      %v834 = vpop.permute.xlu0 %833
      %835 = vrot.lane.b32.xlu0 %v612, 16
      %v836 = vpop.permute.xlu0 %835
      %837 = vrot.lane.b32.xlu0 %v614, 16
      %v838 = vpop.permute.xlu0 %837
      %839 = vrot.lane.b32.xlu0 %v617, 16
      %v840 = vpop.permute.xlu0 %839
      %841 = vrot.lane.b32.xlu0 %v619, 16
      %v842 = vpop.permute.xlu0 %841
      %843 = vrot.lane.b32.xlu0 %v622, 16
      %v844 = vpop.permute.xlu0 %843
      %845 = vrot.lane.b32.xlu0 %v624, 16
      %v846 = vpop.permute.xlu0 %845
      %847 = vrot.lane.b32.xlu0 %v627, 16
      %v848 = vpop.permute.xlu0 %847
      %849 = vrot.lane.b32.xlu0 %v629, 16
      %v850 = vpop.permute.xlu0 %849
      %851 = vrot.lane.b32.xlu0 %v632, 16
      %v852 = vpop.permute.xlu0 %851
      %853 = vrot.lane.b32.xlu0 %v634, 16
      %v854 = vpop.permute.xlu0 %853
      %855 = vrot.lane.b32.xlu0 %v824, 16
      %v856 = vpop.permute.xlu0 %855
      %857 = vrot.lane.b32.xlu0 %v826, 16
      %v858 = vpop.permute.xlu0 %857
      %v875 = vrot.slane %v566, 2
      %v876 = vrot.slane %v526, 2
      %v877 = vsel %vm683, %v875, %v876
      %v878 = vrot.slane %v576, 2
      %v879 = vsel %vm683, %v876, %v878
      %880 = vrot.lane.b32.xlu0 %v691, 20
      %v881 = vpop.permute.xlu0 %880
      %882 = vrot.lane.b32.xlu0 %v693, 20
      %v883 = vpop.permute.xlu0 %882
      %884 = vrot.lane.b32.xlu0 %v696, 20
      %v885 = vpop.permute.xlu0 %884
      %886 = vrot.lane.b32.xlu0 %v698, 20
      %v887 = vpop.permute.xlu0 %886
      %888 = vrot.lane.b32.xlu0 %v701, 20
      %v889 = vpop.permute.xlu0 %888
      %890 = vrot.lane.b32.xlu0 %v703, 20
      %v891 = vpop.permute.xlu0 %890
      %892 = vrot.lane.b32.xlu0 %v706, 20
      %v893 = vpop.permute.xlu0 %892
      %894 = vrot.lane.b32.xlu0 %v708, 20
      %v895 = vpop.permute.xlu0 %894
      %896 = vrot.lane.b32.xlu0 %v711, 20
      %v897 = vpop.permute.xlu0 %896
      %898 = vrot.lane.b32.xlu0 %v713, 20
      %v899 = vpop.permute.xlu0 %898
      %900 = vrot.lane.b32.xlu0 %v716, 20
      %v901 = vpop.permute.xlu0 %900
      %902 = vrot.lane.b32.xlu0 %v718, 20
      %v903 = vpop.permute.xlu0 %902
      %904 = vrot.lane.b32.xlu0 %v721, 20
      %v905 = vpop.permute.xlu0 %904
      %906 = vrot.lane.b32.xlu0 %v723, 20
      %v907 = vpop.permute.xlu0 %906
      %908 = vrot.lane.b32.xlu0 %v877, 20
      %v909 = vpop.permute.xlu0 %908
      %910 = vrot.lane.b32.xlu0 %v879, 20
      %v911 = vpop.permute.xlu0 %910
      %929 = vrot.lane.b32.xlu0 %v560, 24
      %v930 = vpop.permute.xlu0 %929
      %931 = vrot.lane.b32.xlu0 %v508, 24
      %v932 = vpop.permute.xlu0 %931
      %933 = vrot.lane.b32.xlu0 %v561, 24
      %v934 = vpop.permute.xlu0 %933
      %935 = vrot.lane.b32.xlu0 %v511, 24
      %v936 = vpop.permute.xlu0 %935
      %937 = vrot.lane.b32.xlu0 %v562, 24
      %v938 = vpop.permute.xlu0 %937
      %939 = vrot.lane.b32.xlu0 %v514, 24
      %v940 = vpop.permute.xlu0 %939
      %941 = vrot.lane.b32.xlu0 %v563, 24
      %v942 = vpop.permute.xlu0 %941
      %943 = vrot.lane.b32.xlu0 %v517, 24
      %v944 = vpop.permute.xlu0 %943
      %945 = vrot.lane.b32.xlu0 %v564, 24
      %v946 = vpop.permute.xlu0 %945
      %947 = vrot.lane.b32.xlu0 %v520, 24
      %v948 = vpop.permute.xlu0 %947
      %949 = vrot.lane.b32.xlu0 %v565, 24
      %v950 = vpop.permute.xlu0 %949
      %951 = vrot.lane.b32.xlu0 %v523, 24
      %v952 = vpop.permute.xlu0 %951
      %953 = vrot.lane.b32.xlu0 %v566, 24
      %v954 = vpop.permute.xlu0 %953
      %955 = vrot.lane.b32.xlu0 %v526, 24
      %v956 = vpop.permute.xlu0 %955
      %957 = vrot.lane.b32.xlu0 %v567, 24
      %v958 = vpop.permute.xlu0 %957
      %959 = vrot.lane.b32.xlu0 %v529, 24
      %v960 = vpop.permute.xlu0 %959
      %v978 = vrot.slane %v567, 1
      %v979 = vrot.slane %v529, 1
      %v980 = vsel %vm594, %v978, %v979
      %v981 = vrot.slane %v577, 1
      %v982 = vsel %vm594, %v979, %v981
      %983 = vrot.lane.b32.xlu0 %v607, 28
      %v984 = vpop.permute.xlu0 %983
      %985 = vrot.lane.b32.xlu0 %v609, 28
      %v986 = vpop.permute.xlu0 %985
      %987 = vrot.lane.b32.xlu0 %v612, 28
      %v988 = vpop.permute.xlu0 %987
      %989 = vrot.lane.b32.xlu0 %v614, 28
      %v990 = vpop.permute.xlu0 %989
      %991 = vrot.lane.b32.xlu0 %v617, 28
      %v992 = vpop.permute.xlu0 %991
      %993 = vrot.lane.b32.xlu0 %v619, 28
      %v994 = vpop.permute.xlu0 %993
      %995 = vrot.lane.b32.xlu0 %v622, 28
      %v996 = vpop.permute.xlu0 %995
      %997 = vrot.lane.b32.xlu0 %v624, 28
      %v998 = vpop.permute.xlu0 %997
      %999 = vrot.lane.b32.xlu0 %v627, 28
      %v1000 = vpop.permute.xlu0 %999
      %1001 = vrot.lane.b32.xlu0 %v629, 28
      %v1002 = vpop.permute.xlu0 %1001
      %1003 = vrot.lane.b32.xlu0 %v632, 28
      %v1004 = vpop.permute.xlu0 %1003
      %1005 = vrot.lane.b32.xlu0 %v634, 28
      %v1006 = vpop.permute.xlu0 %1005
      %1007 = vrot.lane.b32.xlu0 %v824, 28
      %v1008 = vpop.permute.xlu0 %1007
      %1009 = vrot.lane.b32.xlu0 %v826, 28
      %v1010 = vpop.permute.xlu0 %1009
      %1011 = vrot.lane.b32.xlu0 %v980, 28
      %v1012 = vpop.permute.xlu0 %1011
      %1013 = vrot.lane.b32.xlu0 %v982, 28
      %v1014 = vpop.permute.xlu0 %1013
      %v1031 = vrot.slane %v567, 2
      %v1032 = vrot.slane %v529, 2
      %v1033 = vsel %vm683, %v1031, %v1032
      %v1034 = vrot.slane %v577, 2
      %v1035 = vsel %vm683, %v1032, %v1034
      %1036 = vrot.lane.b32.xlu0 %v696, 32
      %v1037 = vpop.permute.xlu0 %1036
      %1038 = vrot.lane.b32.xlu0 %v698, 32
      %v1039 = vpop.permute.xlu0 %1038
      %1040 = vrot.lane.b32.xlu0 %v701, 32
      %v1041 = vpop.permute.xlu0 %1040
      %1042 = vrot.lane.b32.xlu0 %v703, 32
      %v1043 = vpop.permute.xlu0 %1042
      %1044 = vrot.lane.b32.xlu0 %v706, 32
      %v1045 = vpop.permute.xlu0 %1044
      %1046 = vrot.lane.b32.xlu0 %v708, 32
      %v1047 = vpop.permute.xlu0 %1046
      %1048 = vrot.lane.b32.xlu0 %v711, 32
      %v1049 = vpop.permute.xlu0 %1048
      %1050 = vrot.lane.b32.xlu0 %v713, 32
      %v1051 = vpop.permute.xlu0 %1050
      %1052 = vrot.lane.b32.xlu0 %v716, 32
      %v1053 = vpop.permute.xlu0 %1052
      %1054 = vrot.lane.b32.xlu0 %v718, 32
      %v1055 = vpop.permute.xlu0 %1054
      %1056 = vrot.lane.b32.xlu0 %v721, 32
      %v1057 = vpop.permute.xlu0 %1056
      %1058 = vrot.lane.b32.xlu0 %v723, 32
      %v1059 = vpop.permute.xlu0 %1058
      %1060 = vrot.lane.b32.xlu0 %v877, 32
      %v1061 = vpop.permute.xlu0 %1060
      %1062 = vrot.lane.b32.xlu0 %v879, 32
      %v1063 = vpop.permute.xlu0 %1062
      %1064 = vrot.lane.b32.xlu0 %v1033, 32
      %v1065 = vpop.permute.xlu0 %1064
      %1066 = vrot.lane.b32.xlu0 %v1035, 32
      %v1067 = vpop.permute.xlu0 %1066
      %vm1084 = vcmask 31744
      %v1085 = vsel %vm1084, %v558, %v636
      %v1086 = vsel %vm1084, %v502, %v638
      %v1087 = vsel %vm1084, %v559, %v640
      %v1088 = vsel %vm1084, %v505, %v642
      %v1089 = vsel %vm1084, %v560, %v644
      %v1090 = vsel %vm1084, %v508, %v646
      %v1091 = vsel %vm1084, %v561, %v648
      %v1092 = vsel %vm1084, %v511, %v650
      %v1093 = vsel %vm1084, %v562, %v652
      %v1094 = vsel %vm1084, %v514, %v654
      %v1095 = vsel %vm1084, %v563, %v656
      %v1096 = vsel %vm1084, %v517, %v658
      %v1097 = vsel %vm1084, %v564, %v660
      %v1098 = vsel %vm1084, %v520, %v662
      %v1099 = vsel %vm1084, %v565, %v664
      %v1100 = vsel %vm1084, %v523, %v666
      %vm1101 = vcmask 64512
      %v1102 = vsel %vm1101, %v1085, %v725
      %v1103 = vsel %vm1101, %v1086, %v727
      %v1104 = vsel %vm1101, %v1087, %v729
      %v1105 = vsel %vm1101, %v1088, %v731
      %v1106 = vsel %vm1101, %v1089, %v733
      %v1107 = vsel %vm1101, %v1090, %v735
      %v1108 = vsel %vm1101, %v1091, %v737
      %v1109 = vsel %vm1101, %v1092, %v739
      %v1110 = vsel %vm1101, %v1093, %v741
      %v1111 = vsel %vm1101, %v1094, %v743
      %v1112 = vsel %vm1101, %v1095, %v745
      %v1113 = vsel %vm1101, %v1096, %v747
      %v1114 = vsel %vm1101, %v1097, %v749
      %v1115 = vsel %vm1101, %v1098, %v751
      %v1116 = vsel %vm1101, %v1099, %v753
      %v1117 = vsel %vm1101, %v1100, %v755
      %vm1118 = vcmask 97280
      %v1119 = vsel %vm1118, %v1102, %v774
      %v1120 = vsel %vm1118, %v1103, %v776
      %v1121 = vsel %vm1118, %v1104, %v778
      %v1122 = vsel %vm1118, %v1105, %v780
      %v1123 = vsel %vm1118, %v1106, %v782
      %v1124 = vsel %vm1118, %v1107, %v784
      %v1125 = vsel %vm1118, %v1108, %v786
      %v1126 = vsel %vm1118, %v1109, %v788
      %v1127 = vsel %vm1118, %v1110, %v790
      %v1128 = vsel %vm1118, %v1111, %v792
      %v1129 = vsel %vm1118, %v1112, %v794
      %v1130 = vsel %vm1118, %v1113, %v796
      %v1131 = vsel %vm1118, %v1114, %v798
      %v1132 = vsel %vm1118, %v1115, %v800
      %v1133 = vsel %vm1118, %v1116, %v802
      %v1134 = vsel %vm1118, %v1117, %v804
      %vm1135 = vcmask 130048
      %v1136 = vsel %vm1135, %v1119, %v828
      %v1137 = vsel %vm1135, %v1120, %v830
      %v1138 = vsel %vm1135, %v1121, %v832
      %v1139 = vsel %vm1135, %v1122, %v834
      %v1140 = vsel %vm1135, %v1123, %v836
      %v1141 = vsel %vm1135, %v1124, %v838
      %v1142 = vsel %vm1135, %v1125, %v840
      %v1143 = vsel %vm1135, %v1126, %v842
      %v1144 = vsel %vm1135, %v1127, %v844
      %v1145 = vsel %vm1135, %v1128, %v846
      %v1146 = vsel %vm1135, %v1129, %v848
      %v1147 = vsel %vm1135, %v1130, %v850
      %v1148 = vsel %vm1135, %v1131, %v852
      %v1149 = vsel %vm1135, %v1132, %v854
      %v1150 = vsel %vm1135, %v1133, %v856
      %v1151 = vsel %vm1135, %v1134, %v858
      %vm1152 = vcmask 162816
      %v1153 = vsel %vm1152, %v1136, %v881
      %v1154 = vsel %vm1152, %v1137, %v883
      %v1155 = vsel %vm1152, %v1138, %v885
      %v1156 = vsel %vm1152, %v1139, %v887
      %v1157 = vsel %vm1152, %v1140, %v889
      %v1158 = vsel %vm1152, %v1141, %v891
      %v1159 = vsel %vm1152, %v1142, %v893
      %v1160 = vsel %vm1152, %v1143, %v895
      %v1161 = vsel %vm1152, %v1144, %v897
      %v1162 = vsel %vm1152, %v1145, %v899
      %v1163 = vsel %vm1152, %v1146, %v901
      %v1164 = vsel %vm1152, %v1147, %v903
      %v1165 = vsel %vm1152, %v1148, %v905
      %v1166 = vsel %vm1152, %v1149, %v907
      %v1167 = vsel %vm1152, %v1150, %v909
      %v1168 = vsel %vm1152, %v1151, %v911
      %vm1169 = vcmask 195584
      %v1170 = vsel %vm1169, %v1153, %v930
      %v1171 = vsel %vm1169, %v1154, %v932
      %v1172 = vsel %vm1169, %v1155, %v934
      %v1173 = vsel %vm1169, %v1156, %v936
      %v1174 = vsel %vm1169, %v1157, %v938
      %v1175 = vsel %vm1169, %v1158, %v940
      %v1176 = vsel %vm1169, %v1159, %v942
      %v1177 = vsel %vm1169, %v1160, %v944
      %v1178 = vsel %vm1169, %v1161, %v946
      %v1179 = vsel %vm1169, %v1162, %v948
      %v1180 = vsel %vm1169, %v1163, %v950
      %v1181 = vsel %vm1169, %v1164, %v952
      %v1182 = vsel %vm1169, %v1165, %v954
      %v1183 = vsel %vm1169, %v1166, %v956
      %v1184 = vsel %vm1169, %v1167, %v958
      %v1185 = vsel %vm1169, %v1168, %v960
      %vm1186 = vcmask 228352
      %v1187 = vsel %vm1186, %v1170, %v984
      %v1188 = vsel %vm1186, %v1171, %v986
      %v1189 = vsel %vm1186, %v1172, %v988
      %v1190 = vsel %vm1186, %v1173, %v990
      %v1191 = vsel %vm1186, %v1174, %v992
      %v1192 = vsel %vm1186, %v1175, %v994
      %v1193 = vsel %vm1186, %v1176, %v996
      %v1194 = vsel %vm1186, %v1177, %v998
      %v1195 = vsel %vm1186, %v1178, %v1000
      %v1196 = vsel %vm1186, %v1179, %v1002
      %v1197 = vsel %vm1186, %v1180, %v1004
      %v1198 = vsel %vm1186, %v1181, %v1006
      %v1199 = vsel %vm1186, %v1182, %v1008
      %v1200 = vsel %vm1186, %v1183, %v1010
      %v1201 = vsel %vm1186, %v1184, %v1012
      %v1202 = vsel %vm1186, %v1185, %v1014
      %vm1203 = vcmask 261120
      %v1204 = vsel %vm1203, %v1187, %v1037
      %v1205 = vsel %vm1203, %v1188, %v1039
      %v1206 = vsel %vm1203, %v1189, %v1041
      %v1207 = vsel %vm1203, %v1190, %v1043
      %v1208 = vsel %vm1203, %v1191, %v1045
      %v1209 = vsel %vm1203, %v1192, %v1047
      %v1210 = vsel %vm1203, %v1193, %v1049
      %v1211 = vsel %vm1203, %v1194, %v1051
      %v1212 = vsel %vm1203, %v1195, %v1053
      %v1213 = vsel %vm1203, %v1196, %v1055
      %v1214 = vsel %vm1203, %v1197, %v1057
      %v1215 = vsel %vm1203, %v1198, %v1059
      %v1216 = vsel %vm1203, %v1199, %v1061
      %v1217 = vsel %vm1203, %v1200, %v1063
      %v1218 = vsel %vm1203, %v1201, %v1065
      %v1219 = vsel %vm1203, %v1202, %v1067
      %v1221 = vlaneseq
      %v1222 = vshrl.u32 %v1221, 7
      %v1223 = vsub.s32 0, %v1222
      %v1224 = vrot.slane %v478, %v1223
      %vm1226 = vcmask 293888
      %v1228 = vsel %vm1226, %v1204, 0
      %v1231 = vsel %vm1226, %v1205, 0
      %v1234 = vsel %vm1226, %v1206, 0
      %v1237 = vsel %vm1226, %v1207, 0
      %v1240 = vsel %vm1226, %v1208, 0
      %v1243 = vsel %vm1226, %v1209, 0
      %v1246 = vsel %vm1226, %v1210, 0
      %v1249 = vsel %vm1226, %v1211, 0
      %v1252 = vsel %vm1226, %v1212, 0
      %v1255 = vsel %vm1226, %v1213, 0
      %v1258 = vsel %vm1226, %v1214, 0
      %v1261 = vsel %vm1226, %v1215, 0
      %v1264 = vsel %vm1226, %v1216, 0
      %v1267 = vsel %vm1226, %v1217, 0
      %v1270 = vsel %vm1226, %v1218, 0
      %v1273 = vsel %vm1226, %v1219, 0
      %vm1275 = vcmask 1043456
      %v1277 = vsel %vm1275, %v477, 0
      %1279 = vmatprep.subr.mxu0 0.0
      %1280 = vmatpush1.msra.mxu0 %v473
      %1281 = vmatprep.subr.mxu0 0.0
      %1282 = vmatpush1.msra.mxu0 %v474
      %1283 = vmatprep.subr.mxu0 0.0
      %1284 = vmatpush1.msra.mxu0 %v475
      %1285 = vmatprep.subr.mxu0 0.0
      %1286 = vmatpush1.msra.mxu0 %v476
      %1287 = vmatprep.subr.mxu0 0.0
      %1288 = vmatpush1.msra.mxu0 %v1277
      %1289 = vmatprep.subr.mxu0 0.0
      %1290 = vmatpush1.msra.mxu0 0.0
      %1291 = vmatprep.subr.mxu0 0.0
      %1292 = vmatpush1.msra.mxu0 0.0
      %1293 = vmatprep.subr.mxu0 0.0
      %1294 = vmatpush1.msra.mxu0 0.0
      %1295 = vmatprep.subr.mxu0 0.0
      %1296 = vmatpush1.msra.mxu0 0.0
      %1297 = vmatprep.subr.mxu0 0.0
      %1298 = vmatpush1.msra.mxu0 0.0
      %1299 = vmatprep.subr.mxu0 0.0
      %1300 = vmatpush1.msra.mxu0 0.0
      %1301 = vmatprep.subr.mxu0 0.0
      %1302 = vmatpush1.msra.mxu0 0.0
      %1303 = vmatprep.subr.mxu0 0.0
      %1304 = vmatpush1.msra.mxu0 0.0
      %1305 = vmatprep.subr.mxu0 0.0
      %1306 = vmatpush1.msra.mxu0 0.0
      %1307 = vmatprep.subr.mxu0 0.0
      %1308 = vmatpush1.msra.mxu0 0.0
      %1309 = vmatprep.subr.mxu0 0.0
      %1310 = vmatpush1.msra.mxu0 0.0
      %1311 = vmatprep.subr.mxu0 0.0
      %1312 = vmatpush1.msra.mxu0 0.0
      %1313 = vmatprep.subr.mxu0 0.0
      %1314 = vmatpush1.msra.mxu0 0.0
      %1315 = vmatprep.subr.mxu0 0.0
      %1316 = vmatpush1.msra.mxu0 0.0
      %1317 = vmatprep.subr.mxu0 0.0
      %1318 = vmatpush1.msra.mxu0 0.0
      %1319 = vmatprep.subr.mxu0 0.0
      %1320 = vmatpush1.msra.mxu0 0.0
      %1321 = vmatprep.subr.mxu0 0.0
      %1322 = vmatpush1.msra.mxu0 0.0
      %1323 = vmatprep.subr.mxu0 0.0
      %1324 = vmatpush1.msra.mxu0 0.0
      %1325 = vmatprep.subr.mxu0 0.0
      %1326 = vmatpush1.msra.mxu0 0.0
      %1327 = vmatprep.subr.mxu0 0.0
      %1328 = vmatpush1.msra.mxu0 0.0
      %1329 = vmatprep.subr.mxu0 0.0
      %1330 = vmatpush1.msra.mxu0 0.0
      %1331 = vmatprep.subr.mxu0 0.0
      %1332 = vmatpush1.msra.mxu0 0.0
      %1333 = vmatprep.subr.mxu0 0.0
      %1334 = vmatpush1.msra.mxu0 0.0
      %1335 = vmatprep.subr.mxu0 0.0
      %1336 = vmatpush1.msra.mxu0 0.0
      %1337 = vmatprep.subr.mxu0 0.0
      %1338 = vmatpush1.msra.mxu0 0.0
      %1339 = vmatprep.subr.mxu0 0.0
      %1340 = vmatpush1.msra.mxu0 0.0
      %1341 = vmatprep.subr.mxu0 0.0
      %1342 = vmatpush1.msra.mxu0 0.0
      %1343 = vmatprep.mubr.f32.mxu0 0.0
      %1344 = vmatmul.mubr.f32.gmra.mrb[0].mxu0 %v1228
      %v1345 = vpop.f32.mrb[0].mxu0
      %v1346 = vadd.f32 %v1224, %v1345
      %v1347 = vpop.f32.mrb[0].mxu0
      %1348 = vmatprep.mubr.f32.mxu0 0.0
      %1349 = vmatmul.mubr.f32.gmra.mrb[0].mxu0 %v1231
      %v1350 = vpop.f32.mrb[0].mxu0
      %v1351 = vadd.f32 %v1224, %v1350
      %v1352 = vpop.f32.mrb[0].mxu0
      %1353 = vmatprep.mubr.f32.mxu0 0.0
      %1354 = vmatmul.mubr.f32.gmra.mrb[0].mxu0 %v1234
      %v1355 = vpop.f32.mrb[0].mxu0
      %v1356 = vadd.f32 %v1224, %v1355
      %v1357 = vpop.f32.mrb[0].mxu0
      %1358 = vmatprep.mubr.f32.mxu0 0.0
      %1359 = vmatmul.mubr.f32.gmra.mrb[0].mxu0 %v1237
      %v1360 = vpop.f32.mrb[0].mxu0
      %v1361 = vadd.f32 %v1224, %v1360
      %v1362 = vpop.f32.mrb[0].mxu0
      %1363 = vmatprep.mubr.f32.mxu0 0.0
      %1364 = vmatmul.mubr.f32.gmra.mrb[0].mxu0 %v1240
      %v1365 = vpop.f32.mrb[0].mxu0
      %v1366 = vadd.f32 %v1224, %v1365
      %v1367 = vpop.f32.mrb[0].mxu0
      %1368 = vmatprep.mubr.f32.mxu0 0.0
      %1369 = vmatmul.mubr.f32.gmra.mrb[0].mxu0 %v1243
      %v1370 = vpop.f32.mrb[0].mxu0
      %v1371 = vadd.f32 %v1224, %v1370
      %v1372 = vpop.f32.mrb[0].mxu0
      %1373 = vmatprep.mubr.f32.mxu0 0.0
      %1374 = vmatmul.mubr.f32.gmra.mrb[0].mxu0 %v1246
      %v1375 = vpop.f32.mrb[0].mxu0
      %v1376 = vadd.f32 %v1224, %v1375
      %v1377 = vpop.f32.mrb[0].mxu0
      %1378 = vmatprep.mubr.f32.mxu0 0.0
      %1379 = vmatmul.mubr.f32.gmra.mrb[0].mxu0 %v1249
      %v1380 = vpop.f32.mrb[0].mxu0
      %v1381 = vadd.f32 %v1224, %v1380
      %v1382 = vpop.f32.mrb[0].mxu0
      %1383 = vmatprep.mubr.f32.mxu0 0.0
      %1384 = vmatmul.mubr.f32.gmra.mrb[0].mxu0 %v1252
      %v1385 = vpop.f32.mrb[0].mxu0
      %v1386 = vadd.f32 %v1224, %v1385
      %v1387 = vpop.f32.mrb[0].mxu0
      %1388 = vmatprep.mubr.f32.mxu0 0.0
      %1389 = vmatmul.mubr.f32.gmra.mrb[0].mxu0 %v1255
      %v1390 = vpop.f32.mrb[0].mxu0
      %v1391 = vadd.f32 %v1224, %v1390
      %v1392 = vpop.f32.mrb[0].mxu0
      %1393 = vmatprep.mubr.f32.mxu0 0.0
      %1394 = vmatmul.mubr.f32.gmra.mrb[0].mxu0 %v1258
      %v1395 = vpop.f32.mrb[0].mxu0
      %v1396 = vadd.f32 %v1224, %v1395
      %v1397 = vpop.f32.mrb[0].mxu0
      %1398 = vmatprep.mubr.f32.mxu0 0.0
      %1399 = vmatmul.mubr.f32.gmra.mrb[0].mxu0 %v1261
      %v1400 = vpop.f32.mrb[0].mxu0
      %v1401 = vadd.f32 %v1224, %v1400
      %v1402 = vpop.f32.mrb[0].mxu0
      %1403 = vmatprep.mubr.f32.mxu0 0.0
      %1404 = vmatmul.mubr.f32.gmra.mrb[0].mxu0 %v1264
      %v1405 = vpop.f32.mrb[0].mxu0
      %v1406 = vadd.f32 %v1224, %v1405
      %v1407 = vpop.f32.mrb[0].mxu0
      %1408 = vmatprep.mubr.f32.mxu0 0.0
      %1409 = vmatmul.mubr.f32.gmra.mrb[0].mxu0 %v1267
      %v1410 = vpop.f32.mrb[0].mxu0
      %v1411 = vadd.f32 %v1224, %v1410
      %v1412 = vpop.f32.mrb[0].mxu0
      %1413 = vmatprep.mubr.f32.mxu0 0.0
      %1414 = vmatmul.mubr.f32.gmra.mrb[0].mxu0 %v1270
      %v1415 = vpop.f32.mrb[0].mxu0
      %v1416 = vadd.f32 %v1224, %v1415
      %v1417 = vpop.f32.mrb[0].mxu0
      %1418 = vmatprep.mubr.f32.mxu0 0.0
      %1419 = vmatmul.mubr.f32.gmra.mrb[0].mxu0 %v1273
      %v1420 = vpop.f32.mrb[0].mxu0
      %v1421 = vadd.f32 %v1224, %v1420
      %v1422 = vpop.f32.mrb[0].mxu0
      %1423 = vdwg.mxu0
      %1424 = vst.msk [vmem:[%s431] sm:$0xff] %vm1084, %v1346
      %1425 = vst.msk [vmem:[%s431 + $0x8] sm:$0xff] %vm1084, %v1351
      %1426 = vst.msk [vmem:[%s431 + $0x10] sm:$0xff] %vm1084, %v1356
      %1427 = vst.msk [vmem:[%s431 + $0x18] sm:$0xff] %vm1084, %v1361
      %1428 = vst.msk [vmem:[%s431 + $0x20] sm:$0xff] %vm1084, %v1366
      %1429 = vst.msk [vmem:[%s431 + $0x28] sm:$0xff] %vm1084, %v1371
      %1430 = vst.msk [vmem:[%s431 + $0x30] sm:$0xff] %vm1084, %v1376
      %1431 = vst.msk [vmem:[%s431 + $0x38] sm:$0xff] %vm1084, %v1381
      %1432 = vst.msk [vmem:[%s431 + $0x40] sm:$0xff] %vm1084, %v1386
      %1433 = vst.msk [vmem:[%s431 + $0x48] sm:$0xff] %vm1084, %v1391
      %1434 = vst.msk [vmem:[%s431 + $0x50] sm:$0xff] %vm1084, %v1396
      %1435 = vst.msk [vmem:[%s431 + $0x58] sm:$0xff] %vm1084, %v1401
      %1436 = vst.msk [vmem:[%s431 + $0x60] sm:$0xff] %vm1084, %v1406
      %1437 = vst.msk [vmem:[%s431 + $0x68] sm:$0xff] %vm1084, %v1411
      %1438 = vst.msk [vmem:[%s431 + $0x70] sm:$0xff] %vm1084, %v1416
      %1439 = vst.msk [vmem:[%s431 + $0x78] sm:$0xff] %vm1084, %v1421
      %v1440 = vsel %vm1084, %v1346, 0.0
      %v1441 = vsel %vm1084, %v1351, 0.0
      %v1442 = vadd.f32 %v1440, %v1441
      %v1443 = vsel %vm1084, %v1356, 0.0
      %v1444 = vadd.f32 %v1442, %v1443
      %v1445 = vsel %vm1084, %v1361, 0.0
      %v1446 = vadd.f32 %v1444, %v1445
      %v1447 = vsel %vm1084, %v1366, 0.0
      %v1448 = vadd.f32 %v1446, %v1447
      %v1449 = vsel %vm1084, %v1371, 0.0
      %v1450 = vadd.f32 %v1448, %v1449
      %v1451 = vsel %vm1084, %v1376, 0.0
      %v1452 = vadd.f32 %v1450, %v1451
      %v1453 = vsel %vm1084, %v1381, 0.0
      %v1454 = vadd.f32 %v1452, %v1453
      %v1455 = vsel %vm1084, %v1386, 0.0
      %v1456 = vadd.f32 %v1454, %v1455
      %v1457 = vsel %vm1084, %v1391, 0.0
      %v1458 = vadd.f32 %v1456, %v1457
      %v1459 = vsel %vm1084, %v1396, 0.0
      %v1460 = vadd.f32 %v1458, %v1459
      %v1461 = vsel %vm1084, %v1401, 0.0
      %v1462 = vadd.f32 %v1460, %v1461
      %v1463 = vsel %vm1084, %v1406, 0.0
      %v1464 = vadd.f32 %v1462, %v1463
      %v1465 = vsel %vm1084, %v1411, 0.0
      %v1466 = vadd.f32 %v1464, %v1465
      %v1467 = vsel %vm1084, %v1416, 0.0
      %v1468 = vadd.f32 %v1466, %v1467
      %v1469 = vsel %vm1084, %v1421, 0.0
      %v1470 = vadd.f32 %v1468, %v1469
      %v1471 = vrot.slane %v1470, 4
      %v1472 = vadd.f32 %v1470, %v1471
      %v1473 = vrot.slane %v1472, 2
      %v1474 = vadd.f32 %v1472, %v1473
      %v1475 = vrot.slane %v1474, 1
      %v1476 = vadd.f32 %v1474, %v1475
      %v1477 = vmul.f32 %v1346, %v1346
      %v1478 = vmul.f32 %v1351, %v1351
      %v1479 = vmul.f32 %v1356, %v1356
      %v1480 = vmul.f32 %v1361, %v1361
      %v1481 = vmul.f32 %v1366, %v1366
      %v1482 = vmul.f32 %v1371, %v1371
      %v1483 = vmul.f32 %v1376, %v1376
      %v1484 = vmul.f32 %v1381, %v1381
      %v1485 = vmul.f32 %v1386, %v1386
      %v1486 = vmul.f32 %v1391, %v1391
      %v1487 = vmul.f32 %v1396, %v1396
      %v1488 = vmul.f32 %v1401, %v1401
      %v1489 = vmul.f32 %v1406, %v1406
      %v1490 = vmul.f32 %v1411, %v1411
      %v1491 = vmul.f32 %v1416, %v1416
      %v1492 = vmul.f32 %v1421, %v1421
      %v1493 = vsel %vm1084, %v1477, 0.0
      %v1494 = vsel %vm1084, %v1478, 0.0
      %v1495 = vadd.f32 %v1493, %v1494
      %v1496 = vsel %vm1084, %v1479, 0.0
      %v1497 = vadd.f32 %v1495, %v1496
      %v1498 = vsel %vm1084, %v1480, 0.0
      %v1499 = vadd.f32 %v1497, %v1498
      %v1500 = vsel %vm1084, %v1481, 0.0
      %v1501 = vadd.f32 %v1499, %v1500
      %v1502 = vsel %vm1084, %v1482, 0.0
      %v1503 = vadd.f32 %v1501, %v1502
      %v1504 = vsel %vm1084, %v1483, 0.0
      %v1505 = vadd.f32 %v1503, %v1504
      %v1506 = vsel %vm1084, %v1484, 0.0
      %v1507 = vadd.f32 %v1505, %v1506
      %v1508 = vsel %vm1084, %v1485, 0.0
      %v1509 = vadd.f32 %v1507, %v1508
      %v1510 = vsel %vm1084, %v1486, 0.0
      %v1511 = vadd.f32 %v1509, %v1510
      %v1512 = vsel %vm1084, %v1487, 0.0
      %v1513 = vadd.f32 %v1511, %v1512
      %v1514 = vsel %vm1084, %v1488, 0.0
      %v1515 = vadd.f32 %v1513, %v1514
      %v1516 = vsel %vm1084, %v1489, 0.0
      %v1517 = vadd.f32 %v1515, %v1516
      %v1518 = vsel %vm1084, %v1490, 0.0
      %v1519 = vadd.f32 %v1517, %v1518
      %v1520 = vsel %vm1084, %v1491, 0.0
      %v1521 = vadd.f32 %v1519, %v1520
      %v1522 = vsel %vm1084, %v1492, 0.0
      %v1523 = vadd.f32 %v1521, %v1522
      %v1524 = vrot.slane %v1523, 4
      %v1525 = vadd.f32 %v1523, %v1524
      %v1526 = vrot.slane %v1525, 2
      %v1527 = vadd.f32 %v1525, %v1526
      %v1528 = vrot.slane %v1527, 1
      %v1529 = vadd.f32 %v1527, %v1528
      %v1530 = vsel %vm499, %v1476, %v1529
      %vm1531 = vcmask 25600
      %1532 = vst.msk [vmem:[%s440] sm:$0x3] %vm1531, %v1530
      %s1533 = smul.u32 8, %s23
      %p1534 = scmp.lt.s32.totalorder %s22, 1
      %s1535 = scalar_select %p1534, %s22, 1
      %p1536 = scmp.lt.s32.totalorder %s1533, 15
      %s1537 = scalar_select %p1536, %s1533, 15
      %s1538 = smul.addr %s1537, 2
      %s1539 = smul.addr %s1535, 32
      %s1540 = sadd.s32 %s1538, %s1539
      %s1541 = smul.addr %s1540, 8
      %s1542 = scalar_lea.vmem %s5, %s1541
      %p1543 = scmp.lt.s32.totalorder %s22, 1
      %s1544 = scalar_select %p1543, %s22, 1
      %p1545 = scmp.lt.s32.totalorder %s23, 1
      %s1546 = scalar_select %p1545, %s23, 1
      %s1547 = smul.addr %s1544, 2
      %s1548 = sadd.s32 %s1546, %s1547
      %s1549 = smul.addr %s1548, 2
      %s1550 = scalar_lea.vmem %s6, %s1549
      // Predicated region
      $region41: #{residual_block_forward.3} parent=39 // pred_check
        %p1551 = pneg %p192
      $region42: #{residual_block_forward.3} parent=39 // pred_check_branch
        %1553 = sbr.rel (%p1551) target = $region44
      $region43: #{residual_block_forward.3} parent=39 // pred_region
        %s1554 = smul.u32 8, %s23
      $region44: #{residual_block_forward.3} parent=39 // pred_fallthru
        _
      // Predicated region
      $region45: #{residual_block_forward.3} parent=39 // pred_check
        %p1555 = pneg %p220
      $region46: #{residual_block_forward.3} parent=39 // pred_check_branch
        %1557 = sbr.rel (%p1555) target = $region48
      $region47: #{residual_block_forward.3} parent=39 // pred_region
        _
      $region48: #{residual_block_forward.3} parent=39 // pred_fallthru
        _
    $region40: #{residual_block_forward.3} parent=5 // pred_fallthru
      _
    %p1558 = scmp.le.s32.totalorder 2, %s13
    // Predicated region
    $region49: #{residual_block_forward.3} parent=5 // pred_check
      %p1559 = pneg %p1558
    $region50: #{residual_block_forward.3} parent=5 // pred_check_branch
      %1561 = sbr.rel (%p1559) target = $region52
    $region51: #{residual_block_forward.3} parent=5 // pred_region
      %s1562 = ssub.s32 %s13, 2
      // Predicated region
      $region53: #{residual_block_forward.3} parent=51 // pred_check
        %p1563 = pneg %p198
      $region54: #{residual_block_forward.3} parent=51 // pred_check_branch
        %1565 = sbr.rel (%p1563) target = $region56
      $region55: #{residual_block_forward.3} parent=51 // pred_region
        %s1566 = smul.u32 8, %s25
        %p1567 = scmp.lt.s32.totalorder %s24, 1
        %s1568 = scalar_select %p1567, %s24, 1
        %p1569 = scmp.lt.s32.totalorder %s1566, 15
        %s1570 = scalar_select %p1569, %s1566, 15
        %s1571 = smul.addr %s1570, 2
        %s1572 = smul.addr %s1568, 32
        %s1573 = sadd.s32 %s1571, %s1572
        %s1574 = smul.addr %s1573, 8
        %s1575 = scalar_lea.vmem %s5, %s1574
      $region56: #{residual_block_forward.3} parent=51 // pred_fallthru
        _
      // Predicated region
      $region57: #{residual_block_forward.3} parent=51 // pred_check
        %p1576 = pneg %p226
      $region58: #{residual_block_forward.3} parent=51 // pred_check_branch
        %1578 = sbr.rel (%p1576) target = $region60
      $region59: #{residual_block_forward.3} parent=51 // pred_region
        %p1579 = scmp.lt.s32.totalorder %s24, 1
        %s1580 = scalar_select %p1579, %s24, 1
        %p1581 = scmp.lt.s32.totalorder %s25, 1
        %s1582 = scalar_select %p1581, %s25, 1
        %s1583 = smul.addr %s1580, 2
        %s1584 = sadd.s32 %s1582, %s1583
        %s1585 = smul.addr %s1584, 2
        %s1586 = scalar_lea.vmem %s6, %s1585
      $region60: #{residual_block_forward.3} parent=51 // pred_fallthru
        _
    $region52: #{residual_block_forward.3} parent=5 // pred_fallthru
      _
  $region6: #{residual_block_forward.3} parent=0 // loop_footer
    %s17 = sadd.s32 1, %s13
  $region7: #{residual_block_forward.3} parent=0 // loop_footer_branch
    %12 = sbr.rel target = $region3
  $region8: #{residual_block_forward.3} parent=0 // loop_exit
    _

// kernel: residual_block_forward.5
$region0: #{residual_block_forward.5}
  #allocation0 [shape = 'u32[]', space=smem, size = 0x4, offset = 0x4, fixed_abs, tag = 'smem constant byte address 0x4 - core index']
  #allocation1 [shape = 'u32[144,128]{1,0:T(1,128)}', space=vmem, size = 0x12000, scoped, tag = 'internal scratch']
  %s0 = inlined_call_operand.vmem [shape: f32[2,16,64], index: 0, kind: input, shape index: {}, may-alias: {0,4}]
  %s1 = inlined_call_operand.vmem [shape: f32[2,16,64], index: 1, kind: input, shape index: {}]
  %s2 = inlined_call_operand.vmem [shape: f32[1,64], index: 2, kind: input, shape index: {}]
  %s3 = inlined_call_operand.vmem [shape: f32[1,64], index: 3, kind: input, shape index: {}]
  %s4 = inlined_call_operand.vmem [shape: f32[2,16,64], index: 4, kind: output, shape index: {}, may-alias: {0,4}]
  %s5 = sld [smem:[#allocation0]]
  $region49: #{residual_block_forward.5} parent=0
    _
  %s7 = ssub.s32 1, %s5
  %s8 = scalar_select 0, %s7, %s5
  loop: start=0, step=1, limit=6
  $region2: #{residual_block_forward.5} parent=0 // loop_pre_header
    _
  $region3: #{residual_block_forward.5} parent=0 // loop_header
    %s10 = sphi 0, %s14
    %p11 = scmp.ge.s32.totalorder %s10, 6
    %s17 = sphi 0, %s29
    %s18 = sphi 0, %s25
    %s19 = sphi 0, %s17
    %s20 = sphi 0, %s18
    %s21 = sphi 0, %s19
    %s22 = sphi 0, %s20
    %s34 = sphi 0, %s36
    %s37 = sphi 0, %s34
    %s38 = sphi 0, %s37
    %s54 = sphi 0, %s38
    %s62 = sphi 0, %s64
    %s65 = sphi 0, %s62
    %s66 = sphi 0, %s65
    %s82 = sphi 0, %s66
    %s86 = sphi 0, %s86
    %s88 = sphi 0, %s86
    %s89 = sphi 0, %s88
    %s103 = sphi 0, %s89
    %s107 = sphi 0, %s107
    %s109 = sphi 0, %s107
    %s110 = sphi 0, %s109
    %s124 = sphi 0, %s110
    %s132 = sphi 0, %s134
    %s135 = sphi 0, %s132
    %s136 = sphi 0, %s135
    %s152 = sphi 0, %s136
  $region4: #{residual_block_forward.5} parent=0 // loop_header_branch
    %13 = sbr.rel (%p11) target = $region8
  $region5: #{residual_block_forward.5} parent=0 // loop_body
    %s15 = ssub.s32 %s10, 1
    %s16 = ssub.s32 %s10, 2
    %s23 = sadd.s32 1, %s18
    %p24 = scmp.ge.s32.totalorder %s23, 2
    %s25 = scalar_select %p24, 0, %s23
    %s26 = sadd.s32 1, %s17
    %s27 = scalar_select %p24, %s26, %s17
    %p28 = scmp.ge.s32.totalorder %s27, 2
    %s29 = scalar_select %p28, 0, %s27
    %s30 = ssub.s32 %s17, %s29
    %s31 = ssub.s32 %s18, %s25
    %s32 = sor.u32 %s30, %s31
    %p33 = scmp.eq.s32.totalorder %s32, 0
    %s35 = sadd.s32 %s34, 1
    %s36 = scalar_select %p33, %s34, %s35
    %p39 = pneg %p33
    %p40 = scmp.eq.s32.totalorder %s10, 3
    %p41 = por %p39, %p40
    %p42 = scmp.ne.s32.totalorder %s34, %s37
    %p43 = scmp.eq.s32.totalorder %s10, 0
    %p44 = por %p42, %p43
    %p45 = scmp.ne.s32.totalorder %s34, %s37
    %p46 = scmp.eq.s32.totalorder %s15, 3
    %p47 = por %p45, %p46
    %p48 = scmp.ne.s32.totalorder %s37, %s38
    %p49 = scmp.eq.s32.totalorder %s15, 0
    %p50 = por %p48, %p49
    %p51 = scmp.ne.s32.totalorder %s37, %s38
    %p52 = scmp.eq.s32.totalorder %s16, 3
    %p53 = por %p51, %p52
    %p55 = scmp.ne.s32.totalorder %s38, %s54
    %p56 = scmp.eq.s32.totalorder %s16, 0
    %p57 = por %p55, %p56
    %s58 = ssub.s32 %s17, %s29
    %s59 = ssub.s32 %s18, %s25
    %s60 = sor.u32 %s58, %s59
    %p61 = scmp.eq.s32.totalorder %s60, 0
    %s63 = sadd.s32 %s62, 1
    %s64 = scalar_select %p61, %s62, %s63
    %p67 = pneg %p61
    %p68 = scmp.eq.s32.totalorder %s10, 3
    %p69 = por %p67, %p68
    %p70 = scmp.ne.s32.totalorder %s62, %s65
    %p71 = scmp.eq.s32.totalorder %s10, 0
    %p72 = por %p70, %p71
    %p73 = scmp.ne.s32.totalorder %s62, %s65
    %p74 = scmp.eq.s32.totalorder %s15, 3
    %p75 = por %p73, %p74
    %p76 = scmp.ne.s32.totalorder %s65, %s66
    %p77 = scmp.eq.s32.totalorder %s15, 0
    %p78 = por %p76, %p77
    %p79 = scmp.ne.s32.totalorder %s65, %s66
    %p80 = scmp.eq.s32.totalorder %s16, 3
    %p81 = por %p79, %p80
    %p83 = scmp.ne.s32.totalorder %s66, %s82
    %p84 = scmp.eq.s32.totalorder %s16, 0
    %p85 = por %p83, %p84
    %s87 = sadd.s32 %s86, 1
    %p90 = scmp.eq.s32.totalorder %s10, 3
    %p91 = scmp.ne.s32.totalorder %s86, %s88
    %p92 = scmp.eq.s32.totalorder %s10, 0
    %p93 = por %p91, %p92
    %p94 = scmp.ne.s32.totalorder %s86, %s88
    %p95 = scmp.eq.s32.totalorder %s15, 3
    %p96 = por %p94, %p95
    %p97 = scmp.ne.s32.totalorder %s88, %s89
    %p98 = scmp.eq.s32.totalorder %s15, 0
    %p99 = por %p97, %p98
    %p100 = scmp.ne.s32.totalorder %s88, %s89
    %p101 = scmp.eq.s32.totalorder %s16, 3
    %p102 = por %p100, %p101
    %p104 = scmp.ne.s32.totalorder %s89, %s103
    %p105 = scmp.eq.s32.totalorder %s16, 0
    %p106 = por %p104, %p105
    %s108 = sadd.s32 %s107, 1
    %p111 = scmp.eq.s32.totalorder %s10, 3
    %p112 = scmp.ne.s32.totalorder %s107, %s109
    %p113 = scmp.eq.s32.totalorder %s10, 0
    %p114 = por %p112, %p113
    %p115 = scmp.ne.s32.totalorder %s107, %s109
    %p116 = scmp.eq.s32.totalorder %s15, 3
    %p117 = por %p115, %p116
    %p118 = scmp.ne.s32.totalorder %s109, %s110
    %p119 = scmp.eq.s32.totalorder %s15, 0
    %p120 = por %p118, %p119
    %p121 = scmp.ne.s32.totalorder %s109, %s110
    %p122 = scmp.eq.s32.totalorder %s16, 3
    %p123 = por %p121, %p122
    %p125 = scmp.ne.s32.totalorder %s110, %s124
    %p126 = scmp.eq.s32.totalorder %s16, 0
    %p127 = por %p125, %p126
    %s128 = ssub.s32 %s17, %s29
    %s129 = ssub.s32 %s18, %s25
    %s130 = sor.u32 %s128, %s129
    %p131 = scmp.eq.s32.totalorder %s130, 0
    %s133 = sadd.s32 %s132, 1
    %s134 = scalar_select %p131, %s132, %s133
    %p137 = pneg %p131
    %p138 = scmp.eq.s32.totalorder %s10, 3
    %p139 = por %p137, %p138
    %p140 = scmp.ne.s32.totalorder %s132, %s135
    %p141 = scmp.eq.s32.totalorder %s10, 0
    %p142 = por %p140, %p141
    %p143 = scmp.ne.s32.totalorder %s132, %s135
    %p144 = scmp.eq.s32.totalorder %s15, 3
    %p145 = por %p143, %p144
    %p146 = scmp.ne.s32.totalorder %s135, %s136
    %p147 = scmp.eq.s32.totalorder %s15, 0
    %p148 = por %p146, %p147
    %p149 = scmp.ne.s32.totalorder %s135, %s136
    %p150 = scmp.eq.s32.totalorder %s16, 3
    %p151 = por %p149, %p150
    %p153 = scmp.ne.s32.totalorder %s136, %s152
    %p154 = scmp.eq.s32.totalorder %s16, 0
    %p155 = por %p153, %p154
    %p156 = scmp.le.s32.totalorder 1, %s10
    %p157 = scmp.lt.s32.totalorder %s10, 5
    %p158 = pnand %p156, %p157
    %p159 = pneg %p158
    // Predicated region
    $region9: #{residual_block_forward.5} parent=5 // pred_check
      _
    $region10: #{residual_block_forward.5} parent=5 // pred_check_branch
      %161 = sbr.rel (%p158) target = $region12
    $region11: #{residual_block_forward.5} parent=5 // pred_region
      %s162 = ssub.s32 %s10, 1
      // Predicated region
      $region13: #{residual_block_forward.5} parent=11 // pred_check
        %p163 = pneg %p99
      $region14: #{residual_block_forward.5} parent=11 // pred_check_branch
        %165 = sbr.rel (%p163) target = $region16
      $region15: #{residual_block_forward.5} parent=11 // pred_region
        _
      $region16: #{residual_block_forward.5} parent=11 // pred_fallthru
        _
      // Predicated region
      $region17: #{residual_block_forward.5} parent=11 // pred_check
        %p166 = pneg %p120
      $region18: #{residual_block_forward.5} parent=11 // pred_check_branch
        %168 = sbr.rel (%p166) target = $region20
      $region19: #{residual_block_forward.5} parent=11 // pred_region
        _
      $region20: #{residual_block_forward.5} parent=11 // pred_fallthru
        _
    $region12: #{residual_block_forward.5} parent=5 // pred_fallthru
      _
    %p169 = scmp.lt.s32.totalorder %s10, 4
    // Predicated region
    $region21: #{residual_block_forward.5} parent=5 // pred_check
      %p170 = pneg %p169
    $region22: #{residual_block_forward.5} parent=5 // pred_check_branch
      %172 = sbr.rel (%p170) target = $region24
    $region23: #{residual_block_forward.5} parent=5 // pred_region
      // Predicated region
      $region25: #{residual_block_forward.5} parent=23 // pred_check
        %p173 = pneg %p44
      $region26: #{residual_block_forward.5} parent=23 // pred_check_branch
        %175 = sbr.rel (%p173) target = $region28
      $region27: #{residual_block_forward.5} parent=23 // pred_region
        %p176 = scmp.lt.s32.totalorder %s17, 1
        %s177 = scalar_select %p176, %s17, 1
        %p178 = scmp.lt.s32.totalorder %s18, 1
        %s179 = scalar_select %p178, %s18, 1
        %s180 = smul.addr %s177, 2
        %s181 = sadd.s32 %s179, %s180
        %s182 = smul.addr %s181, 8
        %s183 = scalar_lea.vmem %s0, %s182
      $region28: #{residual_block_forward.5} parent=23 // pred_fallthru
        _
      // Predicated region
      $region29: #{residual_block_forward.5} parent=23 // pred_check
        %p184 = pneg %p72
      $region30: #{residual_block_forward.5} parent=23 // pred_check_branch
        %186 = sbr.rel (%p184) target = $region32
      $region31: #{residual_block_forward.5} parent=23 // pred_region
        %p187 = scmp.lt.s32.totalorder %s17, 1
        %s188 = scalar_select %p187, %s17, 1
        %p189 = scmp.lt.s32.totalorder %s18, 1
        %s190 = scalar_select %p189, %s18, 1
        %s191 = smul.addr %s188, 2
        %s192 = sadd.s32 %s190, %s191
        %s193 = smul.addr %s192, 8
        %s194 = scalar_lea.vmem %s1, %s193
      $region32: #{residual_block_forward.5} parent=23 // pred_fallthru
        _
    $region24: #{residual_block_forward.5} parent=5 // pred_fallthru
      _
    %p195 = scmp.le.s32.totalorder 1, %s10
    %p196 = scmp.lt.s32.totalorder %s10, 5
    %p197 = pnand %p195, %p196
    %p198 = pneg %p197
    // Predicated region
    $region33: #{residual_block_forward.5} parent=5 // pred_check
      _
    $region34: #{residual_block_forward.5} parent=5 // pred_check_branch
      %200 = sbr.rel (%p197) target = $region36
    $region35: #{residual_block_forward.5} parent=5 // pred_region
      %s201 = ssub.s32 %s10, 1
      %p202 = scmp.lt.s32.totalorder %s19, 1
      %s203 = scalar_select %p202, %s19, 1
      %p204 = scmp.lt.s32.totalorder %s20, 1
      %s205 = scalar_select %p204, %s20, 1
      %s206 = smul.addr %s203, 2
      %s207 = sadd.s32 %s205, %s206
      %s208 = smul.addr %s207, 8
      %s209 = scalar_lea.vmem %s0, %s208
      %p210 = pneg %p50
      %p211 = pneg %p47
      %p212 = scmp.lt.s32.totalorder %s19, 1
      %s213 = scalar_select %p212, %s19, 1
      %p214 = scmp.lt.s32.totalorder %s20, 1
      %s215 = scalar_select %p214, %s20, 1
      %s216 = smul.addr %s213, 2
      %s217 = sadd.s32 %s215, %s216
      %s218 = smul.addr %s217, 8
      %s219 = scalar_lea.vmem %s1, %s218
      %p220 = pneg %p78
      %p221 = pneg %p75
      %p222 = pneg %p99
      %p223 = pneg %p96
      %p224 = pneg %p120
      %p225 = pneg %p117
      %p226 = pneg %p148
      %p227 = pneg %p145
      %p228 = scmp.lt.s32.totalorder %s19, 1
      %s229 = scalar_select %p228, %s19, 1
      %p230 = scmp.lt.s32.totalorder %s20, 1
      %s231 = scalar_select %p230, %s20, 1
      %s232 = smul.addr %s229, 2
      %s233 = sadd.s32 %s231, %s232
      %s234 = smul.addr %s233, 8
      %s235 = scalar_lea.vmem %s4, %s234
      %p236 = scmp.lt.s32.totalorder %s19, 1
      %s237 = scalar_select %p236, %s19, 1
      %p238 = scmp.lt.s32.totalorder %s20, 1
      %s239 = scalar_select %p238, %s20, 1
      %s240 = smul.addr %s237, 2
      %s241 = sadd.s32 %s239, %s240
      %s242 = smul.addr %s241, 8
      %s243 = scalar_lea.vmem %s0, %s242
      %p244 = scmp.lt.s32.totalorder %s19, 1
      %s245 = scalar_select %p244, %s19, 1
      %p246 = scmp.lt.s32.totalorder %s20, 1
      %s247 = scalar_select %p246, %s20, 1
      %s248 = smul.addr %s245, 2
      %s249 = sadd.s32 %s247, %s248
      %s250 = smul.addr %s249, 8
      %s251 = scalar_lea.vmem %s1, %s250
      %p252 = scmp.lt.s32.totalorder %s19, 1
      %s253 = scalar_select %p252, %s19, 1
      %p254 = scmp.lt.s32.totalorder %s20, 1
      %s255 = scalar_select %p254, %s20, 1
      %s256 = smul.addr %s253, 2
      %s257 = sadd.s32 %s255, %s256
      %s258 = smul.addr %s257, 8
      %s259 = scalar_lea.vmem %s4, %s258
      %v260 = vld [vmem:[%s251] sm:$0xff]
      %v261 = vld [vmem:[%s243] sm:$0xff]
      %v262 = vld [vmem:[%s2] sm:$0x1]
      %v264 = vlaneseq
      %v265 = vshrl.u32 %v264, 7
      %v266 = vsub.s32 0, %v265
      %v267 = vrot.slane %v262, %v266
      %v269 = vmul.f32 %v261, %v267
      %v270 = vld [vmem:[%s3] sm:$0x1]
      %v272 = vlaneseq
      %v273 = vshrl.u32 %v272, 7
      %v274 = vsub.s32 0, %v273
      %v275 = vrot.slane %v270, %v274
      %v277 = vadd.f32 %v269, %v275
      %v278 = vadd.f32 %v260, %v277
      %vm279 = vcmask 523264
      %280 = vst.msk [vmem:[%s259] sm:$0xff] %vm279, %v278
      %p281 = scmp.lt.s32.totalorder %s19, 1
      %s282 = scalar_select %p281, %s19, 1
      %p283 = scmp.lt.s32.totalorder %s20, 1
      %s284 = scalar_select %p283, %s20, 1
      %s285 = smul.addr %s282, 2
      %s286 = sadd.s32 %s284, %s285
      %s287 = smul.addr %s286, 8
      %s288 = scalar_lea.vmem %s4, %s287
      // Predicated region
      $region37: #{residual_block_forward.5} parent=35 // pred_check
        %p289 = pneg %p145
      $region38: #{residual_block_forward.5} parent=35 // pred_check_branch
        %291 = sbr.rel (%p289) target = $region40
      $region39: #{residual_block_forward.5} parent=35 // pred_region
        _
      $region40: #{residual_block_forward.5} parent=35 // pred_fallthru
        _
    $region36: #{residual_block_forward.5} parent=5 // pred_fallthru
      _
    %p292 = scmp.le.s32.totalorder 2, %s10
    // Predicated region
    $region41: #{residual_block_forward.5} parent=5 // pred_check
      %p293 = pneg %p292
    $region42: #{residual_block_forward.5} parent=5 // pred_check_branch
      %295 = sbr.rel (%p293) target = $region44
    $region43: #{residual_block_forward.5} parent=5 // pred_region
      %s296 = ssub.s32 %s10, 2
      // Predicated region
      $region45: #{residual_block_forward.5} parent=43 // pred_check
        %p297 = pneg %p151
      $region46: #{residual_block_forward.5} parent=43 // pred_check_branch
        %299 = sbr.rel (%p297) target = $region48
      $region47: #{residual_block_forward.5} parent=43 // pred_region
        %p300 = scmp.lt.s32.totalorder %s21, 1
        %s301 = scalar_select %p300, %s21, 1
        %p302 = scmp.lt.s32.totalorder %s22, 1
        %s303 = scalar_select %p302, %s22, 1
        %s304 = smul.addr %s301, 2
        %s305 = sadd.s32 %s303, %s304
        %s306 = smul.addr %s305, 8
        %s307 = scalar_lea.vmem %s4, %s306
      $region48: #{residual_block_forward.5} parent=43 // pred_fallthru
        _
    $region44: #{residual_block_forward.5} parent=5 // pred_fallthru
      _
  $region6: #{residual_block_forward.5} parent=0 // loop_footer
    %s14 = sadd.s32 1, %s10
  $region7: #{residual_block_forward.5} parent=0 // loop_footer_branch
    %9 = sbr.rel target = $region3
  $region8: #{residual_block_forward.5} parent=0 // loop_exit
    _

// kernel: residual_block_forward.4
$region0: #{residual_block_forward.4}
  #allocation0 [shape = 'u32[]', space=smem, size = 0x4, offset = 0x4, fixed_abs, tag = 'smem constant byte address 0x4 - core index']
  #allocation1 [shape = 'u32[144,128]{1,0:T(1,128)}', space=vmem, size = 0x12000, scoped, tag = 'internal scratch']
  #allocation2 [shape = 'f32[1]{0:T(128)S(6)}', space=smem, size = 0x200, scoped, tag = 'scoped memory for residual_block_forward.4']
  %s0 = inlined_call_operand.vmem [shape: f32[2,16,16,4], index: 0, kind: input, shape index: {}, may-alias: {0,1,2}]
  %s1 = inlined_call_operand.vmem [shape: f32[2,16,16,4], index: 1, kind: input, shape index: {}, may-alias: {0,1,2}]
  %s2 = inlined_call_operand.vmem [shape: f32[2,16,16,4], index: 2, kind: input, shape index: {}, may-alias: {0,1,2}]
  %s3 = inlined_call_operand.vmem [shape: f32[36,4], index: 3, kind: input, shape index: {}]
  %s4 = inlined_call_operand.vmem [shape: f32[1,4], index: 4, kind: input, shape index: {}]
  %s5 = inlined_call_operand.vmem [shape: f32[1,4], index: 5, kind: input, shape index: {}]
  %s6 = inlined_call_operand.vmem [shape: f32[1,4], index: 6, kind: input, shape index: {}]
  %s7 = inlined_call_operand.<no memory space> [shape: f32[1], index: 7, kind: input, shape index: {}]
  %s8 = inlined_call_operand.vmem [shape: f32[2,16,16,4], index: 8, kind: output, shape index: {0}]
  %s9 = inlined_call_operand.vmem [shape: f32[2,2,2,4], index: 9, kind: output, shape index: {1}]
  %10 = xla_tuple %s8, %s9
  %s11 = sld [smem:[#allocation0]]
  $region73: #{residual_block_forward.4} parent=0
    _
  %s13 = ssub.s32 1, %s11
  %s14 = scalar_select 0, %s13, %s11
  %15 = sst [smem:[#allocation2]] %s7
  loop: start=0, step=1, limit=6
  $region2: #{residual_block_forward.4} parent=0 // loop_pre_header
    _
  $region3: #{residual_block_forward.4} parent=0 // loop_header
    %s17 = sphi 0, %s21
    %p18 = scmp.ge.s32.totalorder %s17, 6
    %s24 = sphi 0, %s36
    %s25 = sphi 0, %s32
    %s26 = sphi 0, %s24
    %s27 = sphi 0, %s25
    %s28 = sphi 0, %s26
    %s29 = sphi 0, %s27
    %s49 = sphi 0, %s51
    %s52 = sphi 0, %s49
    %s53 = sphi 0, %s52
    %s69 = sphi 0, %s53
    %s77 = sphi 0, %s79
    %s80 = sphi 0, %s77
    %s81 = sphi 0, %s80
    %s97 = sphi 0, %s81
    %s113 = sphi 0, %s115
    %s116 = sphi 0, %s113
    %s117 = sphi 0, %s116
    %s133 = sphi 0, %s117
    %s137 = sphi 0, %s137
    %s139 = sphi 0, %s137
    %s140 = sphi 0, %s139
    %s154 = sphi 0, %s140
    %s158 = sphi 0, %s158
    %s160 = sphi 0, %s158
    %s161 = sphi 0, %s160
    %s175 = sphi 0, %s161
    %s179 = sphi 0, %s179
    %s181 = sphi 0, %s179
    %s182 = sphi 0, %s181
    %s196 = sphi 0, %s182
    %s200 = sphi 0, %s200
    %s202 = sphi 0, %s200
    %s203 = sphi 0, %s202
    %s217 = sphi 0, %s203
    %s221 = sphi 0, %s221
    %s223 = sphi 0, %s221
    %s224 = sphi 0, %s223
    %s238 = sphi 0, %s224
    %s246 = sphi 0, %s248
    %s249 = sphi 0, %s246
    %s250 = sphi 0, %s249
    %s266 = sphi 0, %s250
    %s274 = sphi 0, %s276
    %s277 = sphi 0, %s274
    %s278 = sphi 0, %s277
    %s294 = sphi 0, %s278
  $region4: #{residual_block_forward.4} parent=0 // loop_header_branch
    %20 = sbr.rel (%p18) target = $region8
  $region5: #{residual_block_forward.4} parent=0 // loop_body
    %s22 = ssub.s32 %s17, 1
    %s23 = ssub.s32 %s17, 2
    %s30 = sadd.s32 1, %s25
    %p31 = scmp.ge.s32.totalorder %s30, 2
    %s32 = scalar_select %p31, 0, %s30
    %s33 = sadd.s32 1, %s24
    %s34 = scalar_select %p31, %s33, %s24
    %p35 = scmp.ge.s32.totalorder %s34, 2
    %s36 = scalar_select %p35, 0, %s34
    %s37 = smul.u32 %s25, 8
    %s38 = ssub.s32 %s37, 1
    %p39 = scmp.gt.s32.totalorder %s38, 0
    %s40 = scalar_select %p39, %s38, 0
    %s41 = smul.u32 %s32, 8
    %s42 = ssub.s32 %s41, 1
    %p43 = scmp.gt.s32.totalorder %s42, 0
    %s44 = scalar_select %p43, %s42, 0
    %s45 = ssub.s32 %s24, %s36
    %s46 = ssub.s32 %s40, %s44
    %s47 = sor.u32 %s45, %s46
    %p48 = scmp.eq.s32.totalorder %s47, 0
    %s50 = sadd.s32 %s49, 1
    %s51 = scalar_select %p48, %s49, %s50
    %p54 = pneg %p48
    %p55 = scmp.eq.s32.totalorder %s17, 3
    %p56 = por %p54, %p55
    %p57 = scmp.ne.s32.totalorder %s49, %s52
    %p58 = scmp.eq.s32.totalorder %s17, 0
    %p59 = por %p57, %p58
    %p60 = scmp.ne.s32.totalorder %s49, %s52
    %p61 = scmp.eq.s32.totalorder %s22, 3
    %p62 = por %p60, %p61
    %p63 = scmp.ne.s32.totalorder %s52, %s53
    %p64 = scmp.eq.s32.totalorder %s22, 0
    %p65 = por %p63, %p64
    %p66 = scmp.ne.s32.totalorder %s52, %s53
    %p67 = scmp.eq.s32.totalorder %s23, 3
    %p68 = por %p66, %p67
    %p70 = scmp.ne.s32.totalorder %s53, %s69
    %p71 = scmp.eq.s32.totalorder %s23, 0
    %p72 = por %p70, %p71
    %s73 = ssub.s32 %s24, %s36
    %s74 = ssub.s32 %s25, %s32
    %s75 = sor.u32 %s73, %s74
    %p76 = scmp.eq.s32.totalorder %s75, 0
    %s78 = sadd.s32 %s77, 1
    %s79 = scalar_select %p76, %s77, %s78
    %p82 = pneg %p76
    %p83 = scmp.eq.s32.totalorder %s17, 3
    %p84 = por %p82, %p83
    %p85 = scmp.ne.s32.totalorder %s77, %s80
    %p86 = scmp.eq.s32.totalorder %s17, 0
    %p87 = por %p85, %p86
    %p88 = scmp.ne.s32.totalorder %s77, %s80
    %p89 = scmp.eq.s32.totalorder %s22, 3
    %p90 = por %p88, %p89
    %p91 = scmp.ne.s32.totalorder %s80, %s81
    %p92 = scmp.eq.s32.totalorder %s22, 0
    %p93 = por %p91, %p92
    %p94 = scmp.ne.s32.totalorder %s80, %s81
    %p95 = scmp.eq.s32.totalorder %s23, 3
    %p96 = por %p94, %p95
    %p98 = scmp.ne.s32.totalorder %s81, %s97
    %p99 = scmp.eq.s32.totalorder %s23, 0
    %p100 = por %p98, %p99
    %s101 = sadd.s32 %s25, 1
    %s102 = smul.u32 %s101, 8
    %p103 = scmp.lt.s32.totalorder %s102, 15
    %s104 = scalar_select %p103, %s102, 15
    %s105 = sadd.s32 %s32, 1
    %s106 = smul.u32 %s105, 8
    %p107 = scmp.lt.s32.totalorder %s106, 15
    %s108 = scalar_select %p107, %s106, 15
    %s109 = ssub.s32 %s24, %s36
    %s110 = ssub.s32 %s104, %s108
    %s111 = sor.u32 %s109, %s110
    %p112 = scmp.eq.s32.totalorder %s111, 0
    %s114 = sadd.s32 %s113, 1
    %s115 = scalar_select %p112, %s113, %s114
    %p118 = pneg %p112
    %p119 = scmp.eq.s32.totalorder %s17, 3
    %p120 = por %p118, %p119
    %p121 = scmp.ne.s32.totalorder %s113, %s116
    %p122 = scmp.eq.s32.totalorder %s17, 0
    %p123 = por %p121, %p122
    %p124 = scmp.ne.s32.totalorder %s113, %s116
    %p125 = scmp.eq.s32.totalorder %s22, 3
    %p126 = por %p124, %p125
    %p127 = scmp.ne.s32.totalorder %s116, %s117
    %p128 = scmp.eq.s32.totalorder %s22, 0
    %p129 = por %p127, %p128
    %p130 = scmp.ne.s32.totalorder %s116, %s117
    %p131 = scmp.eq.s32.totalorder %s23, 3
    %p132 = por %p130, %p131
    %p134 = scmp.ne.s32.totalorder %s117, %s133
    %p135 = scmp.eq.s32.totalorder %s23, 0
    %p136 = por %p134, %p135
    %s138 = sadd.s32 %s137, 1
    %p141 = scmp.eq.s32.totalorder %s17, 3
    %p142 = scmp.ne.s32.totalorder %s137, %s139
    %p143 = scmp.eq.s32.totalorder %s17, 0
    %p144 = por %p142, %p143
    %p145 = scmp.ne.s32.totalorder %s137, %s139
    %p146 = scmp.eq.s32.totalorder %s22, 3
    %p147 = por %p145, %p146
    %p148 = scmp.ne.s32.totalorder %s139, %s140
    %p149 = scmp.eq.s32.totalorder %s22, 0
    %p150 = por %p148, %p149
    %p151 = scmp.ne.s32.totalorder %s139, %s140
    %p152 = scmp.eq.s32.totalorder %s23, 3
    %p153 = por %p151, %p152
    %p155 = scmp.ne.s32.totalorder %s140, %s154
    %p156 = scmp.eq.s32.totalorder %s23, 0
    %p157 = por %p155, %p156
    %s159 = sadd.s32 %s158, 1
    %p162 = scmp.eq.s32.totalorder %s17, 3
    %p163 = scmp.ne.s32.totalorder %s158, %s160
    %p164 = scmp.eq.s32.totalorder %s17, 0
    %p165 = por %p163, %p164
    %p166 = scmp.ne.s32.totalorder %s158, %s160
    %p167 = scmp.eq.s32.totalorder %s22, 3
    %p168 = por %p166, %p167
    %p169 = scmp.ne.s32.totalorder %s160, %s161
    %p170 = scmp.eq.s32.totalorder %s22, 0
    %p171 = por %p169, %p170
    %p172 = scmp.ne.s32.totalorder %s160, %s161
    %p173 = scmp.eq.s32.totalorder %s23, 3
    %p174 = por %p172, %p173
    %p176 = scmp.ne.s32.totalorder %s161, %s175
    %p177 = scmp.eq.s32.totalorder %s23, 0
    %p178 = por %p176, %p177
    %s180 = sadd.s32 %s179, 1
    %p183 = scmp.eq.s32.totalorder %s17, 3
    %p184 = scmp.ne.s32.totalorder %s179, %s181
    %p185 = scmp.eq.s32.totalorder %s17, 0
    %p186 = por %p184, %p185
    %p187 = scmp.ne.s32.totalorder %s179, %s181
    %p188 = scmp.eq.s32.totalorder %s22, 3
    %p189 = por %p187, %p188
    %p190 = scmp.ne.s32.totalorder %s181, %s182
    %p191 = scmp.eq.s32.totalorder %s22, 0
    %p192 = por %p190, %p191
    %p193 = scmp.ne.s32.totalorder %s181, %s182
    %p194 = scmp.eq.s32.totalorder %s23, 3
    %p195 = por %p193, %p194
    %p197 = scmp.ne.s32.totalorder %s182, %s196
    %p198 = scmp.eq.s32.totalorder %s23, 0
    %p199 = por %p197, %p198
    %s201 = sadd.s32 %s200, 1
    %p204 = scmp.eq.s32.totalorder %s17, 3
    %p205 = scmp.ne.s32.totalorder %s200, %s202
    %p206 = scmp.eq.s32.totalorder %s17, 0
    %p207 = por %p205, %p206
    %p208 = scmp.ne.s32.totalorder %s200, %s202
    %p209 = scmp.eq.s32.totalorder %s22, 3
    %p210 = por %p208, %p209
    %p211 = scmp.ne.s32.totalorder %s202, %s203
    %p212 = scmp.eq.s32.totalorder %s22, 0
    %p213 = por %p211, %p212
    %p214 = scmp.ne.s32.totalorder %s202, %s203
    %p215 = scmp.eq.s32.totalorder %s23, 3
    %p216 = por %p214, %p215
    %p218 = scmp.ne.s32.totalorder %s203, %s217
    %p219 = scmp.eq.s32.totalorder %s23, 0
    %p220 = por %p218, %p219
    %s222 = sadd.s32 %s221, 1
    %p225 = scmp.eq.s32.totalorder %s17, 3
    %p226 = scmp.ne.s32.totalorder %s221, %s223
    %p227 = scmp.eq.s32.totalorder %s17, 0
    %p228 = por %p226, %p227
    %p229 = scmp.ne.s32.totalorder %s221, %s223
    %p230 = scmp.eq.s32.totalorder %s22, 3
    %p231 = por %p229, %p230
    %p232 = scmp.ne.s32.totalorder %s223, %s224
    %p233 = scmp.eq.s32.totalorder %s22, 0
    %p234 = por %p232, %p233
    %p235 = scmp.ne.s32.totalorder %s223, %s224
    %p236 = scmp.eq.s32.totalorder %s23, 3
    %p237 = por %p235, %p236
    %p239 = scmp.ne.s32.totalorder %s224, %s238
    %p240 = scmp.eq.s32.totalorder %s23, 0
    %p241 = por %p239, %p240
    %s242 = ssub.s32 %s24, %s36
    %s243 = ssub.s32 %s25, %s32
    %s244 = sor.u32 %s242, %s243
    %p245 = scmp.eq.s32.totalorder %s244, 0
    %s247 = sadd.s32 %s246, 1
    %s248 = scalar_select %p245, %s246, %s247
    %p251 = pneg %p245
    %p252 = scmp.eq.s32.totalorder %s17, 3
    %p253 = por %p251, %p252
    %p254 = scmp.ne.s32.totalorder %s246, %s249
    %p255 = scmp.eq.s32.totalorder %s17, 0
    %p256 = por %p254, %p255
    %p257 = scmp.ne.s32.totalorder %s246, %s249
    %p258 = scmp.eq.s32.totalorder %s22, 3
    %p259 = por %p257, %p258
    %p260 = scmp.ne.s32.totalorder %s249, %s250
    %p261 = scmp.eq.s32.totalorder %s22, 0
    %p262 = por %p260, %p261
    %p263 = scmp.ne.s32.totalorder %s249, %s250
    %p264 = scmp.eq.s32.totalorder %s23, 3
    %p265 = por %p263, %p264
    %p267 = scmp.ne.s32.totalorder %s250, %s266
    %p268 = scmp.eq.s32.totalorder %s23, 0
    %p269 = por %p267, %p268
    %s270 = ssub.s32 %s24, %s36
    %s271 = ssub.s32 %s25, %s32
    %s272 = sor.u32 %s270, %s271
    %p273 = scmp.eq.s32.totalorder %s272, 0
    %s275 = sadd.s32 %s274, 1
    %s276 = scalar_select %p273, %s274, %s275
    %p279 = pneg %p273
    %p280 = scmp.eq.s32.totalorder %s17, 3
    %p281 = por %p279, %p280
    %p282 = scmp.ne.s32.totalorder %s274, %s277
    %p283 = scmp.eq.s32.totalorder %s17, 0
    %p284 = por %p282, %p283
    %p285 = scmp.ne.s32.totalorder %s274, %s277
    %p286 = scmp.eq.s32.totalorder %s22, 3
    %p287 = por %p285, %p286
    %p288 = scmp.ne.s32.totalorder %s277, %s278
    %p289 = scmp.eq.s32.totalorder %s22, 0
    %p290 = por %p288, %p289
    %p291 = scmp.ne.s32.totalorder %s277, %s278
    %p292 = scmp.eq.s32.totalorder %s23, 3
    %p293 = por %p291, %p292
    %p295 = scmp.ne.s32.totalorder %s278, %s294
    %p296 = scmp.eq.s32.totalorder %s23, 0
    %p297 = por %p295, %p296
    %p298 = scmp.le.s32.totalorder 1, %s17
    %p299 = scmp.lt.s32.totalorder %s17, 5
    %p300 = pnand %p298, %p299
    %p301 = pneg %p300
    // Predicated region
    $region9: #{residual_block_forward.4} parent=5 // pred_check
      _
    $region10: #{residual_block_forward.4} parent=5 // pred_check_branch
      %303 = sbr.rel (%p300) target = $region12
    $region11: #{residual_block_forward.4} parent=5 // pred_region
      %s304 = ssub.s32 %s17, 1
      // Predicated region
      $region13: #{residual_block_forward.4} parent=11 // pred_check
        %p305 = pneg %p150
      $region14: #{residual_block_forward.4} parent=11 // pred_check_branch
        %307 = sbr.rel (%p305) target = $region16
      $region15: #{residual_block_forward.4} parent=11 // pred_region
        _
      $region16: #{residual_block_forward.4} parent=11 // pred_fallthru
        _
      // Predicated region
      $region17: #{residual_block_forward.4} parent=11 // pred_check
        %p308 = pneg %p171
      $region18: #{residual_block_forward.4} parent=11 // pred_check_branch
        %310 = sbr.rel (%p308) target = $region20
      $region19: #{residual_block_forward.4} parent=11 // pred_region
        _
      $region20: #{residual_block_forward.4} parent=11 // pred_fallthru
        _
      // Predicated region
      $region21: #{residual_block_forward.4} parent=11 // pred_check
        %p311 = pneg %p192
      $region22: #{residual_block_forward.4} parent=11 // pred_check_branch
        %313 = sbr.rel (%p311) target = $region24
      $region23: #{residual_block_forward.4} parent=11 // pred_region
        _
      $region24: #{residual_block_forward.4} parent=11 // pred_fallthru
        _
      // Predicated region
      $region25: #{residual_block_forward.4} parent=11 // pred_check
        %p314 = pneg %p213
      $region26: #{residual_block_forward.4} parent=11 // pred_check_branch
        %316 = sbr.rel (%p314) target = $region28
      $region27: #{residual_block_forward.4} parent=11 // pred_region
        _
      $region28: #{residual_block_forward.4} parent=11 // pred_fallthru
        _
      // Predicated region
      $region29: #{residual_block_forward.4} parent=11 // pred_check
        %p317 = pneg %p234
      $region30: #{residual_block_forward.4} parent=11 // pred_check_branch
        %319 = sbr.rel (%p317) target = $region32
      $region31: #{residual_block_forward.4} parent=11 // pred_region
        _
      $region32: #{residual_block_forward.4} parent=11 // pred_fallthru
        _
    $region12: #{residual_block_forward.4} parent=5 // pred_fallthru
      _
    %p320 = scmp.lt.s32.totalorder %s17, 4
    // Predicated region
    $region33: #{residual_block_forward.4} parent=5 // pred_check
      %p321 = pneg %p320
    $region34: #{residual_block_forward.4} parent=5 // pred_check_branch
      %323 = sbr.rel (%p321) target = $region36
    $region35: #{residual_block_forward.4} parent=5 // pred_region
      // Predicated region
      $region37: #{residual_block_forward.4} parent=35 // pred_check
        %p324 = pneg %p59
      $region38: #{residual_block_forward.4} parent=35 // pred_check_branch
        %326 = sbr.rel (%p324) target = $region40
      $region39: #{residual_block_forward.4} parent=35 // pred_region
        %s327 = smul.u32 %s25, 8
        %s328 = ssub.s32 %s327, 1
        %p329 = scmp.gt.s32.totalorder %s328, 0
        %s330 = scalar_select %p329, %s328, 0
        %p331 = scmp.lt.s32.totalorder %s24, 1
        %s332 = scalar_select %p331, %s24, 1
        %p333 = scmp.lt.s32.totalorder %s330, 15
        %s334 = scalar_select %p333, %s330, 15
        %s335 = smul.addr %s334, 2
        %s336 = smul.addr %s332, 32
        %s337 = sadd.s32 %s335, %s336
        %s338 = smul.addr %s337, 8
        %s339 = scalar_lea.vmem %s0, %s338
        %s340 = smul.u32 %s25, 8
        %s341 = ssub.s32 %s340, 1
        %p342 = scmp.gt.s32.totalorder %s341, 0
        %s343 = scalar_select %p342, %s341, 0
      $region40: #{residual_block_forward.4} parent=35 // pred_fallthru
        _
      // Predicated region
      $region41: #{residual_block_forward.4} parent=35 // pred_check
        %p344 = pneg %p87
      $region42: #{residual_block_forward.4} parent=35 // pred_check_branch
        %346 = sbr.rel (%p344) target = $region44
      $region43: #{residual_block_forward.4} parent=35 // pred_region
        %s347 = smul.u32 8, %s25
        %p348 = scmp.lt.s32.totalorder %s24, 1
        %s349 = scalar_select %p348, %s24, 1
        %p350 = scmp.lt.s32.totalorder %s347, 15
        %s351 = scalar_select %p350, %s347, 15
        %s352 = smul.addr %s351, 2
        %s353 = smul.addr %s349, 32
        %s354 = sadd.s32 %s352, %s353
        %s355 = smul.addr %s354, 8
        %s356 = scalar_lea.vmem %s1, %s355
        %s357 = smul.u32 8, %s25
      $region44: #{residual_block_forward.4} parent=35 // pred_fallthru
        _
      // Predicated region
      $region45: #{residual_block_forward.4} parent=35 // pred_check
        %p358 = pneg %p123
      $region46: #{residual_block_forward.4} parent=35 // pred_check_branch
        %360 = sbr.rel (%p358) target = $region48
      $region47: #{residual_block_forward.4} parent=35 // pred_region
        %s361 = sadd.s32 %s25, 1
        %s362 = smul.u32 %s361, 8
        %p363 = scmp.lt.s32.totalorder %s362, 15
        %s364 = scalar_select %p363, %s362, 15
        %p365 = scmp.lt.s32.totalorder %s24, 1
        %s366 = scalar_select %p365, %s24, 1
        %p367 = scmp.lt.s32.totalorder %s364, 15
        %s368 = scalar_select %p367, %s364, 15
        %s369 = smul.addr %s368, 2
        %s370 = smul.addr %s366, 32
        %s371 = sadd.s32 %s369, %s370
        %s372 = smul.addr %s371, 8
        %s373 = scalar_lea.vmem %s2, %s372
        %s374 = sadd.s32 %s25, 1
        %s375 = smul.u32 %s374, 8
        %p376 = scmp.lt.s32.totalorder %s375, 15
        %s377 = scalar_select %p376, %s375, 15
      $region48: #{residual_block_forward.4} parent=35 // pred_fallthru
        _
    $region36: #{residual_block_forward.4} parent=5 // pred_fallthru
      _
    %p378 = scmp.le.s32.totalorder 1, %s17
    %p379 = scmp.lt.s32.totalorder %s17, 5
    %p380 = pnand %p378, %p379
    %p381 = pneg %p380
    // Predicated region
    $region49: #{residual_block_forward.4} parent=5 // pred_check
      _
    $region50: #{residual_block_forward.4} parent=5 // pred_check_branch
      %383 = sbr.rel (%p380) target = $region52
    $region51: #{residual_block_forward.4} parent=5 // pred_region
      %s384 = ssub.s32 %s17, 1
      %s385 = smul.u32 %s27, 8
      %s386 = ssub.s32 %s385, 1
      %p387 = scmp.gt.s32.totalorder %s386, 0
      %s388 = scalar_select %p387, %s386, 0
      %p389 = scmp.lt.s32.totalorder %s26, 1
      %s390 = scalar_select %p389, %s26, 1
      %p391 = scmp.lt.s32.totalorder %s388, 15
      %s392 = scalar_select %p391, %s388, 15
      %s393 = smul.addr %s392, 2
      %s394 = smul.addr %s390, 32
      %s395 = sadd.s32 %s393, %s394
      %s396 = smul.addr %s395, 8
      %s397 = scalar_lea.vmem %s0, %s396
      %p398 = pneg %p65
      %p399 = pneg %p62
      %s400 = smul.u32 8, %s27
      %p401 = scmp.lt.s32.totalorder %s26, 1
      %s402 = scalar_select %p401, %s26, 1
      %p403 = scmp.lt.s32.totalorder %s400, 15
      %s404 = scalar_select %p403, %s400, 15
      %s405 = smul.addr %s404, 2
      %s406 = smul.addr %s402, 32
      %s407 = sadd.s32 %s405, %s406
      %s408 = smul.addr %s407, 8
      %s409 = scalar_lea.vmem %s1, %s408
      %p410 = pneg %p93
      %p411 = pneg %p90
      %s412 = sadd.s32 %s27, 1
      %s413 = smul.u32 %s412, 8
      %p414 = scmp.lt.s32.totalorder %s413, 15
      %s415 = scalar_select %p414, %s413, 15
      %p416 = scmp.lt.s32.totalorder %s26, 1
      %s417 = scalar_select %p416, %s26, 1
      %p418 = scmp.lt.s32.totalorder %s415, 15
      %s419 = scalar_select %p418, %s415, 15
      %s420 = smul.addr %s419, 2
      %s421 = smul.addr %s417, 32
      %s422 = sadd.s32 %s420, %s421
      %s423 = smul.addr %s422, 8
      %s424 = scalar_lea.vmem %s2, %s423
      %p425 = pneg %p129
      %p426 = pneg %p126
      %p427 = pneg %p150
      %p428 = pneg %p147
      %p429 = pneg %p171
      %p430 = pneg %p168
      %p431 = pneg %p192
      %p432 = pneg %p189
      %p433 = pneg %p213
      %p434 = pneg %p210
      %p435 = pneg %p234
      %p436 = pneg %p231
      %p437 = pneg %p262
      %p438 = pneg %p259
      %s439 = smul.u32 8, %s27
      %p440 = scmp.lt.s32.totalorder %s26, 1
      %s441 = scalar_select %p440, %s26, 1
      %p442 = scmp.lt.s32.totalorder %s439, 15
      %s443 = scalar_select %p442, %s439, 15
      %s444 = smul.addr %s443, 2
      %s445 = smul.addr %s441, 32
      %s446 = sadd.s32 %s444, %s445
      %s447 = smul.addr %s446, 8
      %s448 = scalar_lea.vmem %s8, %s447
      %p449 = pneg %p290
      %p450 = pneg %p287
      %p451 = scmp.lt.s32.totalorder %s26, 1
      %s452 = scalar_select %p451, %s26, 1
      %p453 = scmp.lt.s32.totalorder %s27, 1
      %s454 = scalar_select %p453, %s27, 1
      %s455 = smul.addr %s452, 2
      %s456 = sadd.s32 %s454, %s455
      %s457 = smul.addr %s456, 2
      %s458 = scalar_lea.vmem %s9, %s457
      %s459 = smul.u32 %s27, 8
      %s460 = ssub.s32 %s459, 1
      %p461 = scmp.gt.s32.totalorder %s460, 0
      %s462 = scalar_select %p461, %s460, 0
      %p463 = scmp.lt.s32.totalorder %s26, 1
      %s464 = scalar_select %p463, %s26, 1
      %p465 = scmp.lt.s32.totalorder %s462, 15
      %s466 = scalar_select %p465, %s462, 15
      %s467 = smul.addr %s466, 2
      %s468 = smul.addr %s464, 32
      %s469 = sadd.s32 %s467, %s468
      %s470 = smul.addr %s469, 8
      %s471 = scalar_lea.vmem %s0, %s470
      %s472 = smul.u32 %s27, 8
      %s473 = ssub.s32 %s472, 1
      %p474 = scmp.gt.s32.totalorder %s473, 0
      %s475 = scalar_select %p474, %s473, 0
      %s476 = smul.u32 8, %s27
      %p477 = scmp.lt.s32.totalorder %s26, 1
      %s478 = scalar_select %p477, %s26, 1
      %p479 = scmp.lt.s32.totalorder %s476, 15
      %s480 = scalar_select %p479, %s476, 15
      %s481 = smul.addr %s480, 2
      %s482 = smul.addr %s478, 32
      %s483 = sadd.s32 %s481, %s482
      %s484 = smul.addr %s483, 8
      %s485 = scalar_lea.vmem %s1, %s484
      %s486 = smul.u32 8, %s27
      %s487 = sadd.s32 %s27, 1
      %s488 = smul.u32 %s487, 8
      %p489 = scmp.lt.s32.totalorder %s488, 15
      %s490 = scalar_select %p489, %s488, 15
      %p491 = scmp.lt.s32.totalorder %s26, 1
      %s492 = scalar_select %p491, %s26, 1
      %p493 = scmp.lt.s32.totalorder %s490, 15
      %s494 = scalar_select %p493, %s490, 15
      %s495 = smul.addr %s494, 2
      %s496 = smul.addr %s492, 32
      %s497 = sadd.s32 %s495, %s496
      %s498 = smul.addr %s497, 8
      %s499 = scalar_lea.vmem %s2, %s498
      %s500 = sadd.s32 %s27, 1
      %s501 = smul.u32 %s500, 8
      %p502 = scmp.lt.s32.totalorder %s501, 15
      %s503 = scalar_select %p502, %s501, 15
      %s504 = smul.u32 8, %s27
      %p505 = scmp.lt.s32.totalorder %s26, 1
      %s506 = scalar_select %p505, %s26, 1
      %p507 = scmp.lt.s32.totalorder %s504, 15
      %s508 = scalar_select %p507, %s504, 15
      %s509 = smul.addr %s508, 2
      %s510 = smul.addr %s506, 32
      %s511 = sadd.s32 %s509, %s510
      %s512 = smul.addr %s511, 8
      %s513 = scalar_lea.vmem %s8, %s512
      %s514 = smul.u32 8, %s27
      %p515 = scmp.lt.s32.totalorder %s26, 1
      %s516 = scalar_select %p515, %s26, 1
      %p517 = scmp.lt.s32.totalorder %s27, 1
      %s518 = scalar_select %p517, %s27, 1
      %s519 = smul.addr %s516, 2
      %s520 = sadd.s32 %s518, %s519
      %s521 = smul.addr %s520, 2
      %s522 = scalar_lea.vmem %s9, %s521
      %s523 = sld [smem:[#allocation2]]
      %v524 = vld [vmem:[%s5] sm:$0x1]
      %v525 = vld [vmem:[%s6] sm:$0x1]
      %p526 = scmp.eq.s32.totalorder %s27, 0
      %v527 = vld [vmem:[%s471] sm:$0xff]
      %v528 = vld [vmem:[%s471 + $0x8] sm:$0xff]
      %v530 = vlaneseq
      %v531 = vshrl.u32 %v530, 7
      %v532 = vsub.s32 0, %v531
      %v533 = vrot.slane %v524, %v532
      %v535 = vmul.f32 %v527, %v533
      %v536 = vmul.f32 %v528, %v533
      %v538 = vlaneseq
      %v539 = vshrl.u32 %v538, 7
      %v540 = vsub.s32 0, %v539
      %v541 = vrot.slane %v525, %v540
      %v543 = vadd.f32 %v535, %v541
      %v544 = vadd.f32 %v536, %v541
      %vm545 = vcmp.gt.f32.partialorder %v543, 0.0
      %vm546 = vcmp.gt.f32.partialorder %v544, 0.0
      %v547 = vstv %s523
      %v548 = vmul.f32 %v547, %v543
      %v549 = vmul.f32 %v547, %v544
      %v550 = vsel %vm545, %v543, %v548
      %v551 = vsel %vm546, %v544, %v549
      %s552 = scalar_select %p526, 1, 0
      %v553 = vstv %s552
      %vm554 = vcmp.eq.s32.totalorder %v553, 1
      %v555 = vsel %vm554, 0.0, %v550
      %v556 = vsel %vm554, 0.0, %v551
      %p557 = scmp.eq.s32.totalorder %s27, 1
      %v558 = vld [vmem:[%s499] sm:$0xff]
      %v559 = vld [vmem:[%s499 + $0x8] sm:$0xff]
      %v560 = vmul.f32 %v558, %v533
      %v561 = vmul.f32 %v559, %v533
      %v562 = vadd.f32 %v560, %v541
      %v563 = vadd.f32 %v561, %v541
      %vm564 = vcmp.gt.f32.partialorder %v562, 0.0
      %vm565 = vcmp.gt.f32.partialorder %v563, 0.0
      %v566 = vmul.f32 %v547, %v562
      %v567 = vmul.f32 %v547, %v563
      %v568 = vsel %vm564, %v562, %v566
      %v569 = vsel %vm565, %v563, %v567
      %s570 = scalar_select %p557, 1, 0
      %v571 = vstv %s570
      %vm572 = vcmp.eq.s32.totalorder %v571, 1
      %v573 = vsel %vm572, 0.0, %v568
      %v574 = vsel %vm572, 0.0, %v569
      %v575 = vld [vmem:[%s485] sm:$0xff]
      %v576 = vld [vmem:[%s485 + $0x8] sm:$0xff]
      %v577 = vld [vmem:[%s485 + $0x10] sm:$0xff]
      %v578 = vld [vmem:[%s485 + $0x18] sm:$0xff]
      %v579 = vld [vmem:[%s485 + $0x20] sm:$0xff]
      %v580 = vld [vmem:[%s485 + $0x28] sm:$0xff]
      %v581 = vld [vmem:[%s485 + $0x30] sm:$0xff]
      %v582 = vld [vmem:[%s485 + $0x38] sm:$0xff]
      %v583 = vld [vmem:[%s485 + $0x40] sm:$0xff]
      %v584 = vld [vmem:[%s485 + $0x48] sm:$0xff]
      %v585 = vld [vmem:[%s485 + $0x50] sm:$0xff]
      %v586 = vld [vmem:[%s485 + $0x58] sm:$0xff]
      %v587 = vld [vmem:[%s485 + $0x60] sm:$0xff]
      %v588 = vld [vmem:[%s485 + $0x68] sm:$0xff]
      %v589 = vld [vmem:[%s485 + $0x70] sm:$0xff]
      %v590 = vld [vmem:[%s485 + $0x78] sm:$0xff]
      %v591 = vmul.f32 %v575, %v533
      %v592 = vmul.f32 %v576, %v533
      %v593 = vmul.f32 %v577, %v533
      %v594 = vmul.f32 %v578, %v533
      %v595 = vmul.f32 %v579, %v533
      %v596 = vmul.f32 %v580, %v533
      %v597 = vmul.f32 %v581, %v533
      %v598 = vmul.f32 %v582, %v533
      %v599 = vmul.f32 %v583, %v533
      %v600 = vmul.f32 %v584, %v533
      %v601 = vmul.f32 %v585, %v533
      %v602 = vmul.f32 %v586, %v533
      %v603 = vmul.f32 %v587, %v533
      %v604 = vmul.f32 %v588, %v533
      %v605 = vmul.f32 %v589, %v533
      %v606 = vmul.f32 %v590, %v533
      %v607 = vadd.f32 %v591, %v541
      %v608 = vadd.f32 %v592, %v541
      %v609 = vadd.f32 %v593, %v541
      %v610 = vadd.f32 %v594, %v541
      %v611 = vadd.f32 %v595, %v541
      %v612 = vadd.f32 %v596, %v541
      %v613 = vadd.f32 %v597, %v541
      %v614 = vadd.f32 %v598, %v541
      %v615 = vadd.f32 %v599, %v541
      %v616 = vadd.f32 %v600, %v541
      %v617 = vadd.f32 %v601, %v541
      %v618 = vadd.f32 %v602, %v541
      %v619 = vadd.f32 %v603, %v541
      %v620 = vadd.f32 %v604, %v541
      %v621 = vadd.f32 %v605, %v541
      %v622 = vadd.f32 %v606, %v541
      %vm623 = vcmp.gt.f32.partialorder %v607, 0.0
      %vm624 = vcmp.gt.f32.partialorder %v608, 0.0
      %vm625 = vcmp.gt.f32.partialorder %v609, 0.0
      %vm626 = vcmp.gt.f32.partialorder %v610, 0.0
      %vm627 = vcmp.gt.f32.partialorder %v611, 0.0
      %vm628 = vcmp.gt.f32.partialorder %v612, 0.0
      %vm629 = vcmp.gt.f32.partialorder %v613, 0.0
      %vm630 = vcmp.gt.f32.partialorder %v614, 0.0
      %vm631 = vcmp.gt.f32.partialorder %v615, 0.0
      %vm632 = vcmp.gt.f32.partialorder %v616, 0.0
      %vm633 = vcmp.gt.f32.partialorder %v617, 0.0
      %vm634 = vcmp.gt.f32.partialorder %v618, 0.0
      %vm635 = vcmp.gt.f32.partialorder %v619, 0.0
      %vm636 = vcmp.gt.f32.partialorder %v620, 0.0
      %vm637 = vcmp.gt.f32.partialorder %v621, 0.0
      %vm638 = vcmp.gt.f32.partialorder %v622, 0.0
      %v639 = vmul.f32 %v547, %v607
      %v640 = vmul.f32 %v547, %v608
      %v641 = vmul.f32 %v547, %v609
      %v642 = vmul.f32 %v547, %v610
      %v643 = vmul.f32 %v547, %v611
      %v644 = vmul.f32 %v547, %v612
      %v645 = vmul.f32 %v547, %v613
      %v646 = vmul.f32 %v547, %v614
      %v647 = vmul.f32 %v547, %v615
      %v648 = vmul.f32 %v547, %v616
      %v649 = vmul.f32 %v547, %v617
      %v650 = vmul.f32 %v547, %v618
      %v651 = vmul.f32 %v547, %v619
      %v652 = vmul.f32 %v547, %v620
      %v653 = vmul.f32 %v547, %v621
      %v654 = vmul.f32 %v547, %v622
      %v655 = vsel %vm623, %v607, %v639
      %v656 = vsel %vm624, %v608, %v640
      %v657 = vsel %vm625, %v609, %v641
      %v658 = vsel %vm626, %v610, %v642
      %v659 = vsel %vm627, %v611, %v643
      %v660 = vsel %vm628, %v612, %v644
      %v661 = vsel %vm629, %v613, %v645
      %v662 = vsel %vm630, %v614, %v646
      %v663 = vsel %vm631, %v615, %v647
      %v664 = vsel %vm632, %v616, %v648
      %v665 = vsel %vm633, %v617, %v649
      %v666 = vsel %vm634, %v618, %v650
      %v667 = vsel %vm635, %v619, %v651
      %v668 = vsel %vm636, %v620, %v652
      %v669 = vsel %vm637, %v621, %v653
      %v670 = vsel %vm638, %v622, %v654
      %v671 = vld [vmem:[%s3] sm:$0xff]
      %v672 = vld [vmem:[%s3 + $0x8] sm:$0xff]
      %v673 = vld [vmem:[%s3 + $0x10] sm:$0xff]
      %v674 = vld [vmem:[%s3 + $0x18] sm:$0xff]
      %v675 = vld [vmem:[%s3 + $0x20] sm:$0xf]
      %v676 = vld [vmem:[%s4] sm:$0x1]
      %vm697 = vcmask 1040384
      %v698 = vrot.slane %v555, 7
      %v699 = vrot.slane %v556, 7
      %v700 = vsel %vm697, %v698, %v699
      %v701 = vrot.slane %v655, 7
      %v702 = vrot.slane %v656, 7
      %v703 = vsel %vm697, %v701, %v702
      %v704 = vrot.slane %v657, 7
      %v705 = vrot.slane %v658, 7
      %v706 = vsel %vm697, %v704, %v705
      %v707 = vrot.slane %v659, 7
      %v708 = vrot.slane %v660, 7
      %v709 = vsel %vm697, %v707, %v708
      %v710 = vrot.slane %v661, 7
      %v711 = vrot.slane %v662, 7
      %v712 = vsel %vm697, %v710, %v711
      %v713 = vrot.slane %v663, 7
      %v714 = vrot.slane %v664, 7
      %v715 = vsel %vm697, %v713, %v714
      %v716 = vrot.slane %v665, 7
      %v717 = vrot.slane %v666, 7
      %v718 = vsel %vm697, %v716, %v717
      %v719 = vrot.slane %v667, 7
      %v720 = vrot.slane %v668, 7
      %v721 = vsel %vm697, %v719, %v720
      %v722 = vrot.slane %v669, 7
      %v723 = vrot.slane %v670, 7
      %v724 = vsel %vm697, %v722, %v723
      %v725 = vrot.slane %v573, 7
      %v726 = vrot.slane %v574, 7
      %v727 = vsel %vm697, %v725, %v726
      %v756 = vsel %vm697, 0.0, %v698
      %v757 = vsel %vm697, 0.0, %v701
      %v758 = vsel %vm697, 0.0, %v704
      %v759 = vsel %vm697, 0.0, %v707
      %v760 = vsel %vm697, 0.0, %v710
      %v761 = vsel %vm697, 0.0, %v713
      %v762 = vsel %vm697, 0.0, %v716
      %v763 = vsel %vm697, 0.0, %v719
      %v764 = vsel %vm697, 0.0, %v722
      %v765 = vsel %vm697, 0.0, %v725
      %v766 = vsel %vm697, %v699, 0.0
      %v767 = vsel %vm697, %v702, 0.0
      %v768 = vsel %vm697, %v705, 0.0
      %v769 = vsel %vm697, %v708, 0.0
      %v770 = vsel %vm697, %v711, 0.0
      %v771 = vsel %vm697, %v714, 0.0
      %v772 = vsel %vm697, %v717, 0.0
      %v773 = vsel %vm697, %v720, 0.0
      %v774 = vsel %vm697, %v723, 0.0
      %v775 = vsel %vm697, %v726, 0.0
      %vm792 = vcmask 1046528
      %v793 = vrot.slane %v756, 1
      %v794 = vrot.slane %v700, 1
      %v795 = vsel %vm792, %v793, %v794
      %v796 = vrot.slane %v766, 1
      %v797 = vsel %vm792, %v794, %v796
      %v798 = vrot.slane %v757, 1
      %v799 = vrot.slane %v703, 1
      %v800 = vsel %vm792, %v798, %v799
      %v801 = vrot.slane %v767, 1
      %v802 = vsel %vm792, %v799, %v801
      %v803 = vrot.slane %v758, 1
      %v804 = vrot.slane %v706, 1
      %v805 = vsel %vm792, %v803, %v804
      %v806 = vrot.slane %v768, 1
      %v807 = vsel %vm792, %v804, %v806
      %v808 = vrot.slane %v759, 1
      %v809 = vrot.slane %v709, 1
      %v810 = vsel %vm792, %v808, %v809
      %v811 = vrot.slane %v769, 1
      %v812 = vsel %vm792, %v809, %v811
      %v813 = vrot.slane %v760, 1
      %v814 = vrot.slane %v712, 1
      %v815 = vsel %vm792, %v813, %v814
      %v816 = vrot.slane %v770, 1
      %v817 = vsel %vm792, %v814, %v816
      %v818 = vrot.slane %v761, 1
      %v819 = vrot.slane %v715, 1
      %v820 = vsel %vm792, %v818, %v819
      %v821 = vrot.slane %v771, 1
      %v822 = vsel %vm792, %v819, %v821
      %v823 = vrot.slane %v762, 1
      %v824 = vrot.slane %v718, 1
      %v825 = vsel %vm792, %v823, %v824
      %v826 = vrot.slane %v772, 1
      %v827 = vsel %vm792, %v824, %v826
      %v828 = vrot.slane %v763, 1
      %v829 = vrot.slane %v721, 1
      %v830 = vsel %vm792, %v828, %v829
      %v831 = vrot.slane %v773, 1
      %v832 = vsel %vm792, %v829, %v831
      %833 = vrot.lane.b32.xlu0 %v795, 4
      %v834 = vpop.permute.xlu0 %833
      %835 = vrot.lane.b32.xlu0 %v797, 4
      %v836 = vpop.permute.xlu0 %835
      %837 = vrot.lane.b32.xlu0 %v800, 4
      %v838 = vpop.permute.xlu0 %837
      %839 = vrot.lane.b32.xlu0 %v802, 4
      %v840 = vpop.permute.xlu0 %839
      %841 = vrot.lane.b32.xlu0 %v805, 4
      %v842 = vpop.permute.xlu0 %841
      %843 = vrot.lane.b32.xlu0 %v807, 4
      %v844 = vpop.permute.xlu0 %843
      %845 = vrot.lane.b32.xlu0 %v810, 4
      %v846 = vpop.permute.xlu0 %845
      %847 = vrot.lane.b32.xlu0 %v812, 4
      %v848 = vpop.permute.xlu0 %847
      %849 = vrot.lane.b32.xlu0 %v815, 4
      %v850 = vpop.permute.xlu0 %849
      %851 = vrot.lane.b32.xlu0 %v817, 4
      %v852 = vpop.permute.xlu0 %851
      %853 = vrot.lane.b32.xlu0 %v820, 4
      %v854 = vpop.permute.xlu0 %853
      %855 = vrot.lane.b32.xlu0 %v822, 4
      %v856 = vpop.permute.xlu0 %855
      %857 = vrot.lane.b32.xlu0 %v825, 4
      %v858 = vpop.permute.xlu0 %857
      %859 = vrot.lane.b32.xlu0 %v827, 4
      %v860 = vpop.permute.xlu0 %859
      %861 = vrot.lane.b32.xlu0 %v830, 4
      %v862 = vpop.permute.xlu0 %861
      %863 = vrot.lane.b32.xlu0 %v832, 4
      %v864 = vpop.permute.xlu0 %863
      %vm881 = vcmask 1045504
      %v882 = vrot.slane %v756, 2
      %v883 = vrot.slane %v700, 2
      %v884 = vsel %vm881, %v882, %v883
      %v885 = vrot.slane %v766, 2
      %v886 = vsel %vm881, %v883, %v885
      %v887 = vrot.slane %v757, 2
      %v888 = vrot.slane %v703, 2
      %v889 = vsel %vm881, %v887, %v888
      %v890 = vrot.slane %v767, 2
      %v891 = vsel %vm881, %v888, %v890
      %v892 = vrot.slane %v758, 2
      %v893 = vrot.slane %v706, 2
      %v894 = vsel %vm881, %v892, %v893
      %v895 = vrot.slane %v768, 2
      %v896 = vsel %vm881, %v893, %v895
      %v897 = vrot.slane %v759, 2
      %v898 = vrot.slane %v709, 2
      %v899 = vsel %vm881, %v897, %v898
      %v900 = vrot.slane %v769, 2
      %v901 = vsel %vm881, %v898, %v900
      %v902 = vrot.slane %v760, 2
      %v903 = vrot.slane %v712, 2
      %v904 = vsel %vm881, %v902, %v903
      %v905 = vrot.slane %v770, 2
      %v906 = vsel %vm881, %v903, %v905
      %v907 = vrot.slane %v761, 2
      %v908 = vrot.slane %v715, 2
      %v909 = vsel %vm881, %v907, %v908
      %v910 = vrot.slane %v771, 2
      %v911 = vsel %vm881, %v908, %v910
      %v912 = vrot.slane %v762, 2
      %v913 = vrot.slane %v718, 2
      %v914 = vsel %vm881, %v912, %v913
      %v915 = vrot.slane %v772, 2
      %v916 = vsel %vm881, %v913, %v915
      %v917 = vrot.slane %v763, 2
      %v918 = vrot.slane %v721, 2
      %v919 = vsel %vm881, %v917, %v918
      %v920 = vrot.slane %v773, 2
      %v921 = vsel %vm881, %v918, %v920
      %922 = vrot.lane.b32.xlu0 %v884, 8
      %v923 = vpop.permute.xlu0 %922
      %924 = vrot.lane.b32.xlu0 %v886, 8
      %v925 = vpop.permute.xlu0 %924
      %926 = vrot.lane.b32.xlu0 %v889, 8
      %v927 = vpop.permute.xlu0 %926
      %928 = vrot.lane.b32.xlu0 %v891, 8
      %v929 = vpop.permute.xlu0 %928
      %930 = vrot.lane.b32.xlu0 %v894, 8
      %v931 = vpop.permute.xlu0 %930
      %932 = vrot.lane.b32.xlu0 %v896, 8
      %v933 = vpop.permute.xlu0 %932
      %934 = vrot.lane.b32.xlu0 %v899, 8
      %v935 = vpop.permute.xlu0 %934
      %936 = vrot.lane.b32.xlu0 %v901, 8
      %v937 = vpop.permute.xlu0 %936
      %938 = vrot.lane.b32.xlu0 %v904, 8
      %v939 = vpop.permute.xlu0 %938
      %940 = vrot.lane.b32.xlu0 %v906, 8
      %v941 = vpop.permute.xlu0 %940
      %942 = vrot.lane.b32.xlu0 %v909, 8
      %v943 = vpop.permute.xlu0 %942
      %944 = vrot.lane.b32.xlu0 %v911, 8
      %v945 = vpop.permute.xlu0 %944
      %946 = vrot.lane.b32.xlu0 %v914, 8
      %v947 = vpop.permute.xlu0 %946
      %948 = vrot.lane.b32.xlu0 %v916, 8
      %v949 = vpop.permute.xlu0 %948
      %950 = vrot.lane.b32.xlu0 %v919, 8
      %v951 = vpop.permute.xlu0 %950
      %952 = vrot.lane.b32.xlu0 %v921, 8
      %v953 = vpop.permute.xlu0 %952
      %971 = vrot.lane.b32.xlu0 %v757, 12
      %v972 = vpop.permute.xlu0 %971
      %973 = vrot.lane.b32.xlu0 %v703, 12
      %v974 = vpop.permute.xlu0 %973
      %975 = vrot.lane.b32.xlu0 %v758, 12
      %v976 = vpop.permute.xlu0 %975
      %977 = vrot.lane.b32.xlu0 %v706, 12
      %v978 = vpop.permute.xlu0 %977
      %979 = vrot.lane.b32.xlu0 %v759, 12
      %v980 = vpop.permute.xlu0 %979
      %981 = vrot.lane.b32.xlu0 %v709, 12
      %v982 = vpop.permute.xlu0 %981
      %983 = vrot.lane.b32.xlu0 %v760, 12
      %v984 = vpop.permute.xlu0 %983
      %985 = vrot.lane.b32.xlu0 %v712, 12
      %v986 = vpop.permute.xlu0 %985
      %987 = vrot.lane.b32.xlu0 %v761, 12
      %v988 = vpop.permute.xlu0 %987
      %989 = vrot.lane.b32.xlu0 %v715, 12
      %v990 = vpop.permute.xlu0 %989
      %991 = vrot.lane.b32.xlu0 %v762, 12
      %v992 = vpop.permute.xlu0 %991
      %993 = vrot.lane.b32.xlu0 %v718, 12
      %v994 = vpop.permute.xlu0 %993
      %995 = vrot.lane.b32.xlu0 %v763, 12
      %v996 = vpop.permute.xlu0 %995
      %997 = vrot.lane.b32.xlu0 %v721, 12
      %v998 = vpop.permute.xlu0 %997
      %999 = vrot.lane.b32.xlu0 %v764, 12
      %v1000 = vpop.permute.xlu0 %999
      %1001 = vrot.lane.b32.xlu0 %v724, 12
      %v1002 = vpop.permute.xlu0 %1001
      %v1020 = vrot.slane %v764, 1
      %v1021 = vrot.slane %v724, 1
      %v1022 = vsel %vm792, %v1020, %v1021
      %v1023 = vrot.slane %v774, 1
      %v1024 = vsel %vm792, %v1021, %v1023
      %1025 = vrot.lane.b32.xlu0 %v800, 16
      %v1026 = vpop.permute.xlu0 %1025
      %1027 = vrot.lane.b32.xlu0 %v802, 16
      %v1028 = vpop.permute.xlu0 %1027
      %1029 = vrot.lane.b32.xlu0 %v805, 16
      %v1030 = vpop.permute.xlu0 %1029
      %1031 = vrot.lane.b32.xlu0 %v807, 16
      %v1032 = vpop.permute.xlu0 %1031
      %1033 = vrot.lane.b32.xlu0 %v810, 16
      %v1034 = vpop.permute.xlu0 %1033
      %1035 = vrot.lane.b32.xlu0 %v812, 16
      %v1036 = vpop.permute.xlu0 %1035
      %1037 = vrot.lane.b32.xlu0 %v815, 16
      %v1038 = vpop.permute.xlu0 %1037
      %1039 = vrot.lane.b32.xlu0 %v817, 16
      %v1040 = vpop.permute.xlu0 %1039
      %1041 = vrot.lane.b32.xlu0 %v820, 16
      %v1042 = vpop.permute.xlu0 %1041
      %1043 = vrot.lane.b32.xlu0 %v822, 16
      %v1044 = vpop.permute.xlu0 %1043
      %1045 = vrot.lane.b32.xlu0 %v825, 16
      %v1046 = vpop.permute.xlu0 %1045
      %1047 = vrot.lane.b32.xlu0 %v827, 16
      %v1048 = vpop.permute.xlu0 %1047
      %1049 = vrot.lane.b32.xlu0 %v830, 16
      %v1050 = vpop.permute.xlu0 %1049
      %1051 = vrot.lane.b32.xlu0 %v832, 16
      %v1052 = vpop.permute.xlu0 %1051
      %1053 = vrot.lane.b32.xlu0 %v1022, 16
      %v1054 = vpop.permute.xlu0 %1053
      %1055 = vrot.lane.b32.xlu0 %v1024, 16
      %v1056 = vpop.permute.xlu0 %1055
      %v1073 = vrot.slane %v764, 2
      %v1074 = vrot.slane %v724, 2
      %v1075 = vsel %vm881, %v1073, %v1074
      %v1076 = vrot.slane %v774, 2
      %v1077 = vsel %vm881, %v1074, %v1076
      %1078 = vrot.lane.b32.xlu0 %v889, 20
      %v1079 = vpop.permute.xlu0 %1078
      %1080 = vrot.lane.b32.xlu0 %v891, 20
      %v1081 = vpop.permute.xlu0 %1080
      %1082 = vrot.lane.b32.xlu0 %v894, 20
      %v1083 = vpop.permute.xlu0 %1082
      %1084 = vrot.lane.b32.xlu0 %v896, 20
      %v1085 = vpop.permute.xlu0 %1084
      %1086 = vrot.lane.b32.xlu0 %v899, 20
      %v1087 = vpop.permute.xlu0 %1086
      %1088 = vrot.lane.b32.xlu0 %v901, 20
      %v1089 = vpop.permute.xlu0 %1088
      %1090 = vrot.lane.b32.xlu0 %v904, 20
      %v1091 = vpop.permute.xlu0 %1090
      %1092 = vrot.lane.b32.xlu0 %v906, 20
      %v1093 = vpop.permute.xlu0 %1092
      %1094 = vrot.lane.b32.xlu0 %v909, 20
      %v1095 = vpop.permute.xlu0 %1094
      %1096 = vrot.lane.b32.xlu0 %v911, 20
      %v1097 = vpop.permute.xlu0 %1096
      %1098 = vrot.lane.b32.xlu0 %v914, 20
      %v1099 = vpop.permute.xlu0 %1098
      %1100 = vrot.lane.b32.xlu0 %v916, 20
      %v1101 = vpop.permute.xlu0 %1100
      %1102 = vrot.lane.b32.xlu0 %v919, 20
      %v1103 = vpop.permute.xlu0 %1102
      %1104 = vrot.lane.b32.xlu0 %v921, 20
      %v1105 = vpop.permute.xlu0 %1104
      %1106 = vrot.lane.b32.xlu0 %v1075, 20
      %v1107 = vpop.permute.xlu0 %1106
      %1108 = vrot.lane.b32.xlu0 %v1077, 20
      %v1109 = vpop.permute.xlu0 %1108
      %1127 = vrot.lane.b32.xlu0 %v758, 24
      %v1128 = vpop.permute.xlu0 %1127
      %1129 = vrot.lane.b32.xlu0 %v706, 24
      %v1130 = vpop.permute.xlu0 %1129
      %1131 = vrot.lane.b32.xlu0 %v759, 24
      %v1132 = vpop.permute.xlu0 %1131
      %1133 = vrot.lane.b32.xlu0 %v709, 24
      %v1134 = vpop.permute.xlu0 %1133
      %1135 = vrot.lane.b32.xlu0 %v760, 24
      %v1136 = vpop.permute.xlu0 %1135
      %1137 = vrot.lane.b32.xlu0 %v712, 24
      %v1138 = vpop.permute.xlu0 %1137
      %1139 = vrot.lane.b32.xlu0 %v761, 24
      %v1140 = vpop.permute.xlu0 %1139
      %1141 = vrot.lane.b32.xlu0 %v715, 24
      %v1142 = vpop.permute.xlu0 %1141
      %1143 = vrot.lane.b32.xlu0 %v762, 24
      %v1144 = vpop.permute.xlu0 %1143
      %1145 = vrot.lane.b32.xlu0 %v718, 24
      %v1146 = vpop.permute.xlu0 %1145
      %1147 = vrot.lane.b32.xlu0 %v763, 24
      %v1148 = vpop.permute.xlu0 %1147
      %1149 = vrot.lane.b32.xlu0 %v721, 24
      %v1150 = vpop.permute.xlu0 %1149
      %1151 = vrot.lane.b32.xlu0 %v764, 24
      %v1152 = vpop.permute.xlu0 %1151
      %1153 = vrot.lane.b32.xlu0 %v724, 24
      %v1154 = vpop.permute.xlu0 %1153
      %1155 = vrot.lane.b32.xlu0 %v765, 24
      %v1156 = vpop.permute.xlu0 %1155
      %1157 = vrot.lane.b32.xlu0 %v727, 24
      %v1158 = vpop.permute.xlu0 %1157
      %v1176 = vrot.slane %v765, 1
      %v1177 = vrot.slane %v727, 1
      %v1178 = vsel %vm792, %v1176, %v1177
      %v1179 = vrot.slane %v775, 1
      %v1180 = vsel %vm792, %v1177, %v1179
      %1181 = vrot.lane.b32.xlu0 %v805, 28
      %v1182 = vpop.permute.xlu0 %1181
      %1183 = vrot.lane.b32.xlu0 %v807, 28
      %v1184 = vpop.permute.xlu0 %1183
      %1185 = vrot.lane.b32.xlu0 %v810, 28
      %v1186 = vpop.permute.xlu0 %1185
      %1187 = vrot.lane.b32.xlu0 %v812, 28
      %v1188 = vpop.permute.xlu0 %1187
      %1189 = vrot.lane.b32.xlu0 %v815, 28
      %v1190 = vpop.permute.xlu0 %1189
      %1191 = vrot.lane.b32.xlu0 %v817, 28
      %v1192 = vpop.permute.xlu0 %1191
      %1193 = vrot.lane.b32.xlu0 %v820, 28
      %v1194 = vpop.permute.xlu0 %1193
      %1195 = vrot.lane.b32.xlu0 %v822, 28
      %v1196 = vpop.permute.xlu0 %1195
      %1197 = vrot.lane.b32.xlu0 %v825, 28
      %v1198 = vpop.permute.xlu0 %1197
      %1199 = vrot.lane.b32.xlu0 %v827, 28
      %v1200 = vpop.permute.xlu0 %1199
      %1201 = vrot.lane.b32.xlu0 %v830, 28
      %v1202 = vpop.permute.xlu0 %1201
      %1203 = vrot.lane.b32.xlu0 %v832, 28
      %v1204 = vpop.permute.xlu0 %1203
      %1205 = vrot.lane.b32.xlu0 %v1022, 28
      %v1206 = vpop.permute.xlu0 %1205
      %1207 = vrot.lane.b32.xlu0 %v1024, 28
      %v1208 = vpop.permute.xlu0 %1207
      %1209 = vrot.lane.b32.xlu0 %v1178, 28
      %v1210 = vpop.permute.xlu0 %1209
      %1211 = vrot.lane.b32.xlu0 %v1180, 28
      %v1212 = vpop.permute.xlu0 %1211
      %v1229 = vrot.slane %v765, 2
      %v1230 = vrot.slane %v727, 2
      %v1231 = vsel %vm881, %v1229, %v1230
      %v1232 = vrot.slane %v775, 2
      %v1233 = vsel %vm881, %v1230, %v1232
      %1234 = vrot.lane.b32.xlu0 %v894, 32
      %v1235 = vpop.permute.xlu0 %1234
      %1236 = vrot.lane.b32.xlu0 %v896, 32
      %v1237 = vpop.permute.xlu0 %1236
      %1238 = vrot.lane.b32.xlu0 %v899, 32
      %v1239 = vpop.permute.xlu0 %1238
      %1240 = vrot.lane.b32.xlu0 %v901, 32
      %v1241 = vpop.permute.xlu0 %1240
      %1242 = vrot.lane.b32.xlu0 %v904, 32
      %v1243 = vpop.permute.xlu0 %1242
      %1244 = vrot.lane.b32.xlu0 %v906, 32
      %v1245 = vpop.permute.xlu0 %1244
      %1246 = vrot.lane.b32.xlu0 %v909, 32
      %v1247 = vpop.permute.xlu0 %1246
      %1248 = vrot.lane.b32.xlu0 %v911, 32
      %v1249 = vpop.permute.xlu0 %1248
      %1250 = vrot.lane.b32.xlu0 %v914, 32
      %v1251 = vpop.permute.xlu0 %1250
      %1252 = vrot.lane.b32.xlu0 %v916, 32
      %v1253 = vpop.permute.xlu0 %1252
      %1254 = vrot.lane.b32.xlu0 %v919, 32
      %v1255 = vpop.permute.xlu0 %1254
      %1256 = vrot.lane.b32.xlu0 %v921, 32
      %v1257 = vpop.permute.xlu0 %1256
      %1258 = vrot.lane.b32.xlu0 %v1075, 32
      %v1259 = vpop.permute.xlu0 %1258
      %1260 = vrot.lane.b32.xlu0 %v1077, 32
      %v1261 = vpop.permute.xlu0 %1260
      %1262 = vrot.lane.b32.xlu0 %v1231, 32
      %v1263 = vpop.permute.xlu0 %1262
      %1264 = vrot.lane.b32.xlu0 %v1233, 32
      %v1265 = vpop.permute.xlu0 %1264
      %vm1282 = vcmask 31744
      %v1283 = vsel %vm1282, %v756, %v834
      %v1284 = vsel %vm1282, %v700, %v836
      %v1285 = vsel %vm1282, %v757, %v838
      %v1286 = vsel %vm1282, %v703, %v840
      %v1287 = vsel %vm1282, %v758, %v842
      %v1288 = vsel %vm1282, %v706, %v844
      %v1289 = vsel %vm1282, %v759, %v846
      %v1290 = vsel %vm1282, %v709, %v848
      %v1291 = vsel %vm1282, %v760, %v850
      %v1292 = vsel %vm1282, %v712, %v852
      %v1293 = vsel %vm1282, %v761, %v854
      %v1294 = vsel %vm1282, %v715, %v856
      %v1295 = vsel %vm1282, %v762, %v858
      %v1296 = vsel %vm1282, %v718, %v860
      %v1297 = vsel %vm1282, %v763, %v862
      %v1298 = vsel %vm1282, %v721, %v864
      %vm1299 = vcmask 64512
      %v1300 = vsel %vm1299, %v1283, %v923
      %v1301 = vsel %vm1299, %v1284, %v925
      %v1302 = vsel %vm1299, %v1285, %v927
      %v1303 = vsel %vm1299, %v1286, %v929
      %v1304 = vsel %vm1299, %v1287, %v931
      %v1305 = vsel %vm1299, %v1288, %v933
      %v1306 = vsel %vm1299, %v1289, %v935
      %v1307 = vsel %vm1299, %v1290, %v937
      %v1308 = vsel %vm1299, %v1291, %v939
      %v1309 = vsel %vm1299, %v1292, %v941
      %v1310 = vsel %vm1299, %v1293, %v943
      %v1311 = vsel %vm1299, %v1294, %v945
      %v1312 = vsel %vm1299, %v1295, %v947
      %v1313 = vsel %vm1299, %v1296, %v949
      %v1314 = vsel %vm1299, %v1297, %v951
      %v1315 = vsel %vm1299, %v1298, %v953
      %vm1316 = vcmask 97280
      %v1317 = vsel %vm1316, %v1300, %v972
      %v1318 = vsel %vm1316, %v1301, %v974
      %v1319 = vsel %vm1316, %v1302, %v976
      %v1320 = vsel %vm1316, %v1303, %v978
      %v1321 = vsel %vm1316, %v1304, %v980
      %v1322 = vsel %vm1316, %v1305, %v982
      %v1323 = vsel %vm1316, %v1306, %v984
      %v1324 = vsel %vm1316, %v1307, %v986
      %v1325 = vsel %vm1316, %v1308, %v988
      %v1326 = vsel %vm1316, %v1309, %v990
      %v1327 = vsel %vm1316, %v1310, %v992
      %v1328 = vsel %vm1316, %v1311, %v994
      %v1329 = vsel %vm1316, %v1312, %v996
      %v1330 = vsel %vm1316, %v1313, %v998
      %v1331 = vsel %vm1316, %v1314, %v1000
      %v1332 = vsel %vm1316, %v1315, %v1002
      %vm1333 = vcmask 130048
      %v1334 = vsel %vm1333, %v1317, %v1026
      %v1335 = vsel %vm1333, %v1318, %v1028
      %v1336 = vsel %vm1333, %v1319, %v1030
      %v1337 = vsel %vm1333, %v1320, %v1032
      %v1338 = vsel %vm1333, %v1321, %v1034
      %v1339 = vsel %vm1333, %v1322, %v1036
      %v1340 = vsel %vm1333, %v1323, %v1038
      %v1341 = vsel %vm1333, %v1324, %v1040
      %v1342 = vsel %vm1333, %v1325, %v1042
      %v1343 = vsel %vm1333, %v1326, %v1044
      %v1344 = vsel %vm1333, %v1327, %v1046
      %v1345 = vsel %vm1333, %v1328, %v1048
      %v1346 = vsel %vm1333, %v1329, %v1050
      %v1347 = vsel %vm1333, %v1330, %v1052
      %v1348 = vsel %vm1333, %v1331, %v1054
      %v1349 = vsel %vm1333, %v1332, %v1056
      %vm1350 = vcmask 162816
      %v1351 = vsel %vm1350, %v1334, %v1079
      %v1352 = vsel %vm1350, %v1335, %v1081
      %v1353 = vsel %vm1350, %v1336, %v1083
      %v1354 = vsel %vm1350, %v1337, %v1085
      %v1355 = vsel %vm1350, %v1338, %v1087
      %v1356 = vsel %vm1350, %v1339, %v1089
      %v1357 = vsel %vm1350, %v1340, %v1091
      %v1358 = vsel %vm1350, %v1341, %v1093
      %v1359 = vsel %vm1350, %v1342, %v1095
      %v1360 = vsel %vm1350, %v1343, %v1097
      %v1361 = vsel %vm1350, %v1344, %v1099
      %v1362 = vsel %vm1350, %v1345, %v1101
      %v1363 = vsel %vm1350, %v1346, %v1103
      %v1364 = vsel %vm1350, %v1347, %v1105
      %v1365 = vsel %vm1350, %v1348, %v1107
      %v1366 = vsel %vm1350, %v1349, %v1109
      %vm1367 = vcmask 195584
      %v1368 = vsel %vm1367, %v1351, %v1128
      %v1369 = vsel %vm1367, %v1352, %v1130
      %v1370 = vsel %vm1367, %v1353, %v1132
      %v1371 = vsel %vm1367, %v1354, %v1134
      %v1372 = vsel %vm1367, %v1355, %v1136
      %v1373 = vsel %vm1367, %v1356, %v1138
      %v1374 = vsel %vm1367, %v1357, %v1140
      %v1375 = vsel %vm1367, %v1358, %v1142
      %v1376 = vsel %vm1367, %v1359, %v1144
      %v1377 = vsel %vm1367, %v1360, %v1146
      %v1378 = vsel %vm1367, %v1361, %v1148
      %v1379 = vsel %vm1367, %v1362, %v1150
      %v1380 = vsel %vm1367, %v1363, %v1152
      %v1381 = vsel %vm1367, %v1364, %v1154
      %v1382 = vsel %vm1367, %v1365, %v1156
      %v1383 = vsel %vm1367, %v1366, %v1158
      %vm1384 = vcmask 228352
      %v1385 = vsel %vm1384, %v1368, %v1182
      %v1386 = vsel %vm1384, %v1369, %v1184
      %v1387 = vsel %vm1384, %v1370, %v1186
      %v1388 = vsel %vm1384, %v1371, %v1188
      %v1389 = vsel %vm1384, %v1372, %v1190
      %v1390 = vsel %vm1384, %v1373, %v1192
      %v1391 = vsel %vm1384, %v1374, %v1194
      %v1392 = vsel %vm1384, %v1375, %v1196
      %v1393 = vsel %vm1384, %v1376, %v1198
      %v1394 = vsel %vm1384, %v1377, %v1200
      %v1395 = vsel %vm1384, %v1378, %v1202
      %v1396 = vsel %vm1384, %v1379, %v1204
      %v1397 = vsel %vm1384, %v1380, %v1206
      %v1398 = vsel %vm1384, %v1381, %v1208
      %v1399 = vsel %vm1384, %v1382, %v1210
      %v1400 = vsel %vm1384, %v1383, %v1212
      %vm1401 = vcmask 261120
      %v1402 = vsel %vm1401, %v1385, %v1235
      %v1403 = vsel %vm1401, %v1386, %v1237
      %v1404 = vsel %vm1401, %v1387, %v1239
      %v1405 = vsel %vm1401, %v1388, %v1241
      %v1406 = vsel %vm1401, %v1389, %v1243
      %v1407 = vsel %vm1401, %v1390, %v1245
      %v1408 = vsel %vm1401, %v1391, %v1247
      %v1409 = vsel %vm1401, %v1392, %v1249
      %v1410 = vsel %vm1401, %v1393, %v1251
      %v1411 = vsel %vm1401, %v1394, %v1253
      %v1412 = vsel %vm1401, %v1395, %v1255
      %v1413 = vsel %vm1401, %v1396, %v1257
      %v1414 = vsel %vm1401, %v1397, %v1259
      %v1415 = vsel %vm1401, %v1398, %v1261
      %v1416 = vsel %vm1401, %v1399, %v1263
      %v1417 = vsel %vm1401, %v1400, %v1265
      %v1419 = vlaneseq
      %v1420 = vshrl.u32 %v1419, 7
      %v1421 = vsub.s32 0, %v1420
      %v1422 = vrot.slane %v676, %v1421
      %vm1424 = vcmask 293888
      %v1426 = vsel %vm1424, %v1402, 0
      %v1429 = vsel %vm1424, %v1403, 0
      %v1432 = vsel %vm1424, %v1404, 0
      %v1435 = vsel %vm1424, %v1405, 0
      %v1438 = vsel %vm1424, %v1406, 0
      %v1441 = vsel %vm1424, %v1407, 0
      %v1444 = vsel %vm1424, %v1408, 0
      %v1447 = vsel %vm1424, %v1409, 0
      %v1450 = vsel %vm1424, %v1410, 0
      %v1453 = vsel %vm1424, %v1411, 0
      %v1456 = vsel %vm1424, %v1412, 0
      %v1459 = vsel %vm1424, %v1413, 0
      %v1462 = vsel %vm1424, %v1414, 0
      %v1465 = vsel %vm1424, %v1415, 0
      %v1468 = vsel %vm1424, %v1416, 0
      %v1471 = vsel %vm1424, %v1417, 0
      %vm1473 = vcmask 1043456
      %v1475 = vsel %vm1473, %v675, 0
      %1477 = vmatprep.subr.mxu0 0.0
      %1478 = vmatpush1.msra.mxu0 %v671
      %1479 = vmatprep.subr.mxu0 0.0
      %1480 = vmatpush1.msra.mxu0 %v672
      %1481 = vmatprep.subr.mxu0 0.0
      %1482 = vmatpush1.msra.mxu0 %v673
      %1483 = vmatprep.subr.mxu0 0.0
      %1484 = vmatpush1.msra.mxu0 %v674
      %1485 = vmatprep.subr.mxu0 0.0
      %1486 = vmatpush1.msra.mxu0 %v1475
      %1487 = vmatprep.subr.mxu0 0.0
      %1488 = vmatpush1.msra.mxu0 0.0
      %1489 = vmatprep.subr.mxu0 0.0
      %1490 = vmatpush1.msra.mxu0 0.0
      %1491 = vmatprep.subr.mxu0 0.0
      %1492 = vmatpush1.msra.mxu0 0.0
      %1493 = vmatprep.subr.mxu0 0.0
      %1494 = vmatpush1.msra.mxu0 0.0
      %1495 = vmatprep.subr.mxu0 0.0
      %1496 = vmatpush1.msra.mxu0 0.0
      %1497 = vmatprep.subr.mxu0 0.0
      %1498 = vmatpush1.msra.mxu0 0.0
      %1499 = vmatprep.subr.mxu0 0.0
      %1500 = vmatpush1.msra.mxu0 0.0
      %1501 = vmatprep.subr.mxu0 0.0
      %1502 = vmatpush1.msra.mxu0 0.0
      %1503 = vmatprep.subr.mxu0 0.0
      %1504 = vmatpush1.msra.mxu0 0.0
      %1505 = vmatprep.subr.mxu0 0.0
      %1506 = vmatpush1.msra.mxu0 0.0
      %1507 = vmatprep.subr.mxu0 0.0
      %1508 = vmatpush1.msra.mxu0 0.0
      %1509 = vmatprep.subr.mxu0 0.0
      %1510 = vmatpush1.msra.mxu0 0.0
      %1511 = vmatprep.subr.mxu0 0.0
      %1512 = vmatpush1.msra.mxu0 0.0
      %1513 = vmatprep.subr.mxu0 0.0
      %1514 = vmatpush1.msra.mxu0 0.0
      %1515 = vmatprep.subr.mxu0 0.0
      %1516 = vmatpush1.msra.mxu0 0.0
      %1517 = vmatprep.subr.mxu0 0.0
      %1518 = vmatpush1.msra.mxu0 0.0
      %1519 = vmatprep.subr.mxu0 0.0
      %1520 = vmatpush1.msra.mxu0 0.0
      %1521 = vmatprep.subr.mxu0 0.0
      %1522 = vmatpush1.msra.mxu0 0.0
      %1523 = vmatprep.subr.mxu0 0.0
      %1524 = vmatpush1.msra.mxu0 0.0
      %1525 = vmatprep.subr.mxu0 0.0
      %1526 = vmatpush1.msra.mxu0 0.0
      %1527 = vmatprep.subr.mxu0 0.0
      %1528 = vmatpush1.msra.mxu0 0.0
      %1529 = vmatprep.subr.mxu0 0.0
      %1530 = vmatpush1.msra.mxu0 0.0
      %1531 = vmatprep.subr.mxu0 0.0
      %1532 = vmatpush1.msra.mxu0 0.0
      %1533 = vmatprep.subr.mxu0 0.0
      %1534 = vmatpush1.msra.mxu0 0.0
      %1535 = vmatprep.subr.mxu0 0.0
      %1536 = vmatpush1.msra.mxu0 0.0
      %1537 = vmatprep.subr.mxu0 0.0
      %1538 = vmatpush1.msra.mxu0 0.0
      %1539 = vmatprep.subr.mxu0 0.0
      %1540 = vmatpush1.msra.mxu0 0.0
      %1541 = vmatprep.mubr.f32.mxu0 0.0
      %1542 = vmatmul.mubr.f32.gmra.mrb[0].mxu0 %v1426
      %v1543 = vpop.f32.mrb[0].mxu0
      %v1544 = vadd.f32 %v1422, %v1543
      %v1545 = vpop.f32.mrb[0].mxu0
      %1546 = vmatprep.mubr.f32.mxu0 0.0
      %1547 = vmatmul.mubr.f32.gmra.mrb[0].mxu0 %v1429
      %v1548 = vpop.f32.mrb[0].mxu0
      %v1549 = vadd.f32 %v1422, %v1548
      %v1550 = vpop.f32.mrb[0].mxu0
      %1551 = vmatprep.mubr.f32.mxu0 0.0
      %1552 = vmatmul.mubr.f32.gmra.mrb[0].mxu0 %v1432
      %v1553 = vpop.f32.mrb[0].mxu0
      %v1554 = vadd.f32 %v1422, %v1553
      %v1555 = vpop.f32.mrb[0].mxu0
      %1556 = vmatprep.mubr.f32.mxu0 0.0
      %1557 = vmatmul.mubr.f32.gmra.mrb[0].mxu0 %v1435
      %v1558 = vpop.f32.mrb[0].mxu0
      %v1559 = vadd.f32 %v1422, %v1558
      %v1560 = vpop.f32.mrb[0].mxu0
      %1561 = vmatprep.mubr.f32.mxu0 0.0
      %1562 = vmatmul.mubr.f32.gmra.mrb[0].mxu0 %v1438
      %v1563 = vpop.f32.mrb[0].mxu0
      %v1564 = vadd.f32 %v1422, %v1563
      %v1565 = vpop.f32.mrb[0].mxu0
      %1566 = vmatprep.mubr.f32.mxu0 0.0
      %1567 = vmatmul.mubr.f32.gmra.mrb[0].mxu0 %v1441
      %v1568 = vpop.f32.mrb[0].mxu0
      %v1569 = vadd.f32 %v1422, %v1568
      %v1570 = vpop.f32.mrb[0].mxu0
      %1571 = vmatprep.mubr.f32.mxu0 0.0
      %1572 = vmatmul.mubr.f32.gmra.mrb[0].mxu0 %v1444
      %v1573 = vpop.f32.mrb[0].mxu0
      %v1574 = vadd.f32 %v1422, %v1573
      %v1575 = vpop.f32.mrb[0].mxu0
      %1576 = vmatprep.mubr.f32.mxu0 0.0
      %1577 = vmatmul.mubr.f32.gmra.mrb[0].mxu0 %v1447
      %v1578 = vpop.f32.mrb[0].mxu0
      %v1579 = vadd.f32 %v1422, %v1578
      %v1580 = vpop.f32.mrb[0].mxu0
      %1581 = vmatprep.mubr.f32.mxu0 0.0
      %1582 = vmatmul.mubr.f32.gmra.mrb[0].mxu0 %v1450
      %v1583 = vpop.f32.mrb[0].mxu0
      %v1584 = vadd.f32 %v1422, %v1583
      %v1585 = vpop.f32.mrb[0].mxu0
      %1586 = vmatprep.mubr.f32.mxu0 0.0
      %1587 = vmatmul.mubr.f32.gmra.mrb[0].mxu0 %v1453
      %v1588 = vpop.f32.mrb[0].mxu0
      %v1589 = vadd.f32 %v1422, %v1588
      %v1590 = vpop.f32.mrb[0].mxu0
      %1591 = vmatprep.mubr.f32.mxu0 0.0
      %1592 = vmatmul.mubr.f32.gmra.mrb[0].mxu0 %v1456
      %v1593 = vpop.f32.mrb[0].mxu0
      %v1594 = vadd.f32 %v1422, %v1593
      %v1595 = vpop.f32.mrb[0].mxu0
      %1596 = vmatprep.mubr.f32.mxu0 0.0
      %1597 = vmatmul.mubr.f32.gmra.mrb[0].mxu0 %v1459
      %v1598 = vpop.f32.mrb[0].mxu0
      %v1599 = vadd.f32 %v1422, %v1598
      %v1600 = vpop.f32.mrb[0].mxu0
      %1601 = vmatprep.mubr.f32.mxu0 0.0
      %1602 = vmatmul.mubr.f32.gmra.mrb[0].mxu0 %v1462
      %v1603 = vpop.f32.mrb[0].mxu0
      %v1604 = vadd.f32 %v1422, %v1603
      %v1605 = vpop.f32.mrb[0].mxu0
      %1606 = vmatprep.mubr.f32.mxu0 0.0
      %1607 = vmatmul.mubr.f32.gmra.mrb[0].mxu0 %v1465
      %v1608 = vpop.f32.mrb[0].mxu0
      %v1609 = vadd.f32 %v1422, %v1608
      %v1610 = vpop.f32.mrb[0].mxu0
      %1611 = vmatprep.mubr.f32.mxu0 0.0
      %1612 = vmatmul.mubr.f32.gmra.mrb[0].mxu0 %v1468
      %v1613 = vpop.f32.mrb[0].mxu0
      %v1614 = vadd.f32 %v1422, %v1613
      %v1615 = vpop.f32.mrb[0].mxu0
      %1616 = vmatprep.mubr.f32.mxu0 0.0
      %1617 = vmatmul.mubr.f32.gmra.mrb[0].mxu0 %v1471
      %v1618 = vpop.f32.mrb[0].mxu0
      %v1619 = vadd.f32 %v1422, %v1618
      %v1620 = vpop.f32.mrb[0].mxu0
      %1621 = vdwg.mxu0
      %1622 = vst.msk [vmem:[%s513] sm:$0xff] %vm1282, %v1544
      %1623 = vst.msk [vmem:[%s513 + $0x8] sm:$0xff] %vm1282, %v1549
      %1624 = vst.msk [vmem:[%s513 + $0x10] sm:$0xff] %vm1282, %v1554
      %1625 = vst.msk [vmem:[%s513 + $0x18] sm:$0xff] %vm1282, %v1559
      %1626 = vst.msk [vmem:[%s513 + $0x20] sm:$0xff] %vm1282, %v1564
      %1627 = vst.msk [vmem:[%s513 + $0x28] sm:$0xff] %vm1282, %v1569
      %1628 = vst.msk [vmem:[%s513 + $0x30] sm:$0xff] %vm1282, %v1574
      %1629 = vst.msk [vmem:[%s513 + $0x38] sm:$0xff] %vm1282, %v1579
      %1630 = vst.msk [vmem:[%s513 + $0x40] sm:$0xff] %vm1282, %v1584
      %1631 = vst.msk [vmem:[%s513 + $0x48] sm:$0xff] %vm1282, %v1589
      %1632 = vst.msk [vmem:[%s513 + $0x50] sm:$0xff] %vm1282, %v1594
      %1633 = vst.msk [vmem:[%s513 + $0x58] sm:$0xff] %vm1282, %v1599
      %1634 = vst.msk [vmem:[%s513 + $0x60] sm:$0xff] %vm1282, %v1604
      %1635 = vst.msk [vmem:[%s513 + $0x68] sm:$0xff] %vm1282, %v1609
      %1636 = vst.msk [vmem:[%s513 + $0x70] sm:$0xff] %vm1282, %v1614
      %1637 = vst.msk [vmem:[%s513 + $0x78] sm:$0xff] %vm1282, %v1619
      %v1638 = vsel %vm1282, %v1544, 0.0
      %v1639 = vsel %vm1282, %v1549, 0.0
      %v1640 = vadd.f32 %v1638, %v1639
      %v1641 = vsel %vm1282, %v1554, 0.0
      %v1642 = vadd.f32 %v1640, %v1641
      %v1643 = vsel %vm1282, %v1559, 0.0
      %v1644 = vadd.f32 %v1642, %v1643
      %v1645 = vsel %vm1282, %v1564, 0.0
      %v1646 = vadd.f32 %v1644, %v1645
      %v1647 = vsel %vm1282, %v1569, 0.0
      %v1648 = vadd.f32 %v1646, %v1647
      %v1649 = vsel %vm1282, %v1574, 0.0
      %v1650 = vadd.f32 %v1648, %v1649
      %v1651 = vsel %vm1282, %v1579, 0.0
      %v1652 = vadd.f32 %v1650, %v1651
      %v1653 = vsel %vm1282, %v1584, 0.0
      %v1654 = vadd.f32 %v1652, %v1653
      %v1655 = vsel %vm1282, %v1589, 0.0
      %v1656 = vadd.f32 %v1654, %v1655
      %v1657 = vsel %vm1282, %v1594, 0.0
      %v1658 = vadd.f32 %v1656, %v1657
      %v1659 = vsel %vm1282, %v1599, 0.0
      %v1660 = vadd.f32 %v1658, %v1659
      %v1661 = vsel %vm1282, %v1604, 0.0
      %v1662 = vadd.f32 %v1660, %v1661
      %v1663 = vsel %vm1282, %v1609, 0.0
      %v1664 = vadd.f32 %v1662, %v1663
      %v1665 = vsel %vm1282, %v1614, 0.0
      %v1666 = vadd.f32 %v1664, %v1665
      %v1667 = vsel %vm1282, %v1619, 0.0
      %v1668 = vadd.f32 %v1666, %v1667
      %v1669 = vrot.slane %v1668, 4
      %v1670 = vadd.f32 %v1668, %v1669
      %v1671 = vrot.slane %v1670, 2
      %v1672 = vadd.f32 %v1670, %v1671
      %v1673 = vrot.slane %v1672, 1
      %v1674 = vadd.f32 %v1672, %v1673
      %v1675 = vmul.f32 %v1544, %v1544
      %v1676 = vmul.f32 %v1549, %v1549
      %v1677 = vmul.f32 %v1554, %v1554
      %v1678 = vmul.f32 %v1559, %v1559
      %v1679 = vmul.f32 %v1564, %v1564
      %v1680 = vmul.f32 %v1569, %v1569
      %v1681 = vmul.f32 %v1574, %v1574
      %v1682 = vmul.f32 %v1579, %v1579
      %v1683 = vmul.f32 %v1584, %v1584
      %v1684 = vmul.f32 %v1589, %v1589
      %v1685 = vmul.f32 %v1594, %v1594
      %v1686 = vmul.f32 %v1599, %v1599
      %v1687 = vmul.f32 %v1604, %v1604
      %v1688 = vmul.f32 %v1609, %v1609
      %v1689 = vmul.f32 %v1614, %v1614
      %v1690 = vmul.f32 %v1619, %v1619
      %v1691 = vsel %vm1282, %v1675, 0.0
      %v1692 = vsel %vm1282, %v1676, 0.0
      %v1693 = vadd.f32 %v1691, %v1692
      %v1694 = vsel %vm1282, %v1677, 0.0
      %v1695 = vadd.f32 %v1693, %v1694
      %v1696 = vsel %vm1282, %v1678, 0.0
      %v1697 = vadd.f32 %v1695, %v1696
      %v1698 = vsel %vm1282, %v1679, 0.0
      %v1699 = vadd.f32 %v1697, %v1698
      %v1700 = vsel %vm1282, %v1680, 0.0
      %v1701 = vadd.f32 %v1699, %v1700
      %v1702 = vsel %vm1282, %v1681, 0.0
      %v1703 = vadd.f32 %v1701, %v1702
      %v1704 = vsel %vm1282, %v1682, 0.0
      %v1705 = vadd.f32 %v1703, %v1704
      %v1706 = vsel %vm1282, %v1683, 0.0
      %v1707 = vadd.f32 %v1705, %v1706
      %v1708 = vsel %vm1282, %v1684, 0.0
      %v1709 = vadd.f32 %v1707, %v1708
      %v1710 = vsel %vm1282, %v1685, 0.0
      %v1711 = vadd.f32 %v1709, %v1710
      %v1712 = vsel %vm1282, %v1686, 0.0
      %v1713 = vadd.f32 %v1711, %v1712
      %v1714 = vsel %vm1282, %v1687, 0.0
      %v1715 = vadd.f32 %v1713, %v1714
      %v1716 = vsel %vm1282, %v1688, 0.0
      %v1717 = vadd.f32 %v1715, %v1716
      %v1718 = vsel %vm1282, %v1689, 0.0
      %v1719 = vadd.f32 %v1717, %v1718
      %v1720 = vsel %vm1282, %v1690, 0.0
      %v1721 = vadd.f32 %v1719, %v1720
      %v1722 = vrot.slane %v1721, 4
      %v1723 = vadd.f32 %v1721, %v1722
      %v1724 = vrot.slane %v1723, 2
      %v1725 = vadd.f32 %v1723, %v1724
      %v1726 = vrot.slane %v1725, 1
      %v1727 = vadd.f32 %v1725, %v1726
      %v1728 = vsel %vm697, %v1674, %v1727
      %vm1729 = vcmask 25600
      %1730 = vst.msk [vmem:[%s522] sm:$0x3] %vm1729, %v1728
      %s1731 = smul.u32 8, %s27
      %p1732 = scmp.lt.s32.totalorder %s26, 1
      %s1733 = scalar_select %p1732, %s26, 1
      %p1734 = scmp.lt.s32.totalorder %s1731, 15
      %s1735 = scalar_select %p1734, %s1731, 15
      %s1736 = smul.addr %s1735, 2
      %s1737 = smul.addr %s1733, 32
      %s1738 = sadd.s32 %s1736, %s1737
      %s1739 = smul.addr %s1738, 8
      %s1740 = scalar_lea.vmem %s8, %s1739
      %p1741 = scmp.lt.s32.totalorder %s26, 1
      %s1742 = scalar_select %p1741, %s26, 1
      %p1743 = scmp.lt.s32.totalorder %s27, 1
      %s1744 = scalar_select %p1743, %s27, 1
      %s1745 = smul.addr %s1742, 2
      %s1746 = sadd.s32 %s1744, %s1745
      %s1747 = smul.addr %s1746, 2
      %s1748 = scalar_lea.vmem %s9, %s1747
      // Predicated region
      $region53: #{residual_block_forward.4} parent=51 // pred_check
        %p1749 = pneg %p259
      $region54: #{residual_block_forward.4} parent=51 // pred_check_branch
        %1751 = sbr.rel (%p1749) target = $region56
      $region55: #{residual_block_forward.4} parent=51 // pred_region
        %s1752 = smul.u32 8, %s27
      $region56: #{residual_block_forward.4} parent=51 // pred_fallthru
        _
      // Predicated region
      $region57: #{residual_block_forward.4} parent=51 // pred_check
        %p1753 = pneg %p287
      $region58: #{residual_block_forward.4} parent=51 // pred_check_branch
        %1755 = sbr.rel (%p1753) target = $region60
      $region59: #{residual_block_forward.4} parent=51 // pred_region
        _
      $region60: #{residual_block_forward.4} parent=51 // pred_fallthru
        _
    $region52: #{residual_block_forward.4} parent=5 // pred_fallthru
      _
    %p1756 = scmp.le.s32.totalorder 2, %s17
    // Predicated region
    $region61: #{residual_block_forward.4} parent=5 // pred_check
      %p1757 = pneg %p1756
    $region62: #{residual_block_forward.4} parent=5 // pred_check_branch
      %1759 = sbr.rel (%p1757) target = $region64
    $region63: #{residual_block_forward.4} parent=5 // pred_region
      %s1760 = ssub.s32 %s17, 2
      // Predicated region
      $region65: #{residual_block_forward.4} parent=63 // pred_check
        %p1761 = pneg %p265
      $region66: #{residual_block_forward.4} parent=63 // pred_check_branch
        %1763 = sbr.rel (%p1761) target = $region68
      $region67: #{residual_block_forward.4} parent=63 // pred_region
        %s1764 = smul.u32 8, %s29
        %p1765 = scmp.lt.s32.totalorder %s28, 1
        %s1766 = scalar_select %p1765, %s28, 1
        %p1767 = scmp.lt.s32.totalorder %s1764, 15
        %s1768 = scalar_select %p1767, %s1764, 15
        %s1769 = smul.addr %s1768, 2
        %s1770 = smul.addr %s1766, 32
        %s1771 = sadd.s32 %s1769, %s1770
        %s1772 = smul.addr %s1771, 8
        %s1773 = scalar_lea.vmem %s8, %s1772
      $region68: #{residual_block_forward.4} parent=63 // pred_fallthru
        _
      // Predicated region
      $region69: #{residual_block_forward.4} parent=63 // pred_check
        %p1774 = pneg %p293
      $region70: #{residual_block_forward.4} parent=63 // pred_check_branch
        %1776 = sbr.rel (%p1774) target = $region72
      $region71: #{residual_block_forward.4} parent=63 // pred_region
        %p1777 = scmp.lt.s32.totalorder %s28, 1
        %s1778 = scalar_select %p1777, %s28, 1
        %p1779 = scmp.lt.s32.totalorder %s29, 1
        %s1780 = scalar_select %p1779, %s29, 1
        %s1781 = smul.addr %s1778, 2
        %s1782 = sadd.s32 %s1780, %s1781
        %s1783 = smul.addr %s1782, 2
        %s1784 = scalar_lea.vmem %s9, %s1783
      $region72: #{residual_block_forward.4} parent=63 // pred_fallthru
        _
    $region64: #{residual_block_forward.4} parent=5 // pred_fallthru
      _
  $region6: #{residual_block_forward.4} parent=0 // loop_footer
    %s21 = sadd.s32 1, %s17
  $region7: #{residual_block_forward.4} parent=0 // loop_footer_branch
    %16 = sbr.rel target = $region3
  $region8: #{residual_block_forward.4} parent=0 // loop_exit
    _

</llo_original>
